<compile_context>
chip_gen: v7x
topology: tpu7x:2x2x1
jax: 0.10.0
libtpu: 0.0.40
codegen_flags: <defaults>
</compile_context>

<pallas_src>
import math

import jax
import jax.numpy as jnp
from jax.experimental import pallas as pl
from jax.experimental.pallas import tpu as pltpu

# ----------------------------- configuration --------------------------------
B = 2                       # batch
INPUT_SIZE = 4              # spatial side -> N = 16 tokens
N = INPUT_SIZE * INPUT_SIZE
DIM = 32                    # embedding dim C
NUM_HEADS = 4
HEAD_DIM = DIM // NUM_HEADS
SCALE = HEAD_DIM ** (-0.5)


# ------------------------------- the kernel ---------------------------------
def attention_kernel(x_ref,        # (Bb, N, C)
                     wqkv_ref,     # (3H, hd, C)   head-major qkv weight
                     bqkv_ref,     # (3H, 1, 1, hd)
                     wproj_ref,    # (H, hd, C)    == W_proj[c, h*hd+d] re-laid-out
                     bproj_ref,    # (1, C)
                     rpe_ref,      # (H, N, N)
                     out_ref):     # (Bb, N, C)
    Bb, n_tok, c = x_ref.shape
    g3, hd, _ = wqkv_ref.shape
    h = g3 // 3
    hb = h * Bb

    x = x_ref[...].astype(jnp.float32)                                   # (Bb,N,C)

    # ---- QKV projection, batched over the 3H (q/k/v x head) weight groups ----
    # Replicating x over the group axis keeps everything head-major without any
    # in-kernel transpose or sub-lane-width slicing (feedback items 1 & 2).
    xg = jnp.broadcast_to(x[None], (g3, Bb, n_tok, c)).reshape(g3 * Bb, n_tok, c)
    wg = jnp.broadcast_to(wqkv_ref[...][:, None],
                          (g3, Bb, hd, c)).reshape(g3 * Bb, hd, c)
    qkv = jnp.einsum('gnc,gdc->gnd', xg, wg,
                     preferred_element_type=jnp.float32)                 # (3H*Bb,N,hd)
    qkv = qkv.reshape(g3, Bb, n_tok, hd) + bqkv_ref[...]                 # + bias

    q = (qkv[0:h] * SCALE).reshape(hb, n_tok, hd)                        # (H*Bb,N,hd)
    k = qkv[h:2 * h].reshape(hb, n_tok, hd)
    v = qkv[2 * h:3 * h].reshape(hb, n_tok, hd)

    # ---- scores + relative-position bias + softmax ----
    attn = jnp.einsum('bqd,bkd->bqk', q, k,
                      preferred_element_type=jnp.float32)                # (H*Bb,N,N)
    attn = attn + jnp.broadcast_to(rpe_ref[...][:, None],
                                   (h, Bb, n_tok, n_tok)).reshape(hb, n_tok, n_tok)
    # NOTE: PyTorch's .float().clamp(f32_min, f32_max) is a numerical no-op in
    # fp32 and is intentionally omitted.
    attn = attn - jnp.max(attn, axis=-1, keepdims=True)
    attn = jnp.exp(attn)
    attn = attn * pl.reciprocal(jnp.sum(attn, axis=-1, keepdims=True), approx=True)

    # ---- attn @ v ----
    ov = jnp.einsum('bqk,bkd->bqd', attn, v,
                    preferred_element_type=jnp.float32)                  # (H*Bb,N,hd)

    # ---- output projection: per-head matmul then reduce over heads ----
    # (avoids head-concat + transpose; wproj is host-prepared head-major)
    wp = jnp.broadcast_to(wproj_ref[...][:, None],
                          (h, Bb, hd, c)).reshape(hb, hd, c)
    proj = jnp.einsum('bqd,bdc->bqc', ov, wp,
                      preferred_element_type=jnp.float32)                # (H*Bb,N,C)
    out = proj.reshape(h, Bb, n_tok, c).sum(axis=0) + bproj_ref[...]     # (Bb,N,C)

    out_ref[...] = out.astype(out_ref.dtype)


# ------------------------------ host wrapper ---------------------------------
def _const_spec(shape):
    nd = len(shape)
    return pl.BlockSpec(shape, lambda i, _nd=nd: (0,) * _nd)


def _pick_batch_block(batch):
    """v7x (2 TCs/chip): keep a parallel grid over batch (one element / core).
    Single-TC parts (v5e/v6e): fold the whole batch into one grid step to avoid
    per-step overhead on this tiny, latency-bound block."""
    try:
        kind = jax.devices()[0].device_kind.lower()
    except Exception:
        kind = ""
    if "7" in kind and batch % 2 == 0:
        return 1
    return batch


def attention_forward(x, w_qkv, b_qkv, w_proj, b_proj, rpe_bias, *, batch_block=None):
    """x: (B, N, C) f32; weights in PyTorch nn.Linear layout; rpe_bias: (H, N, N)."""
    Bq, Nq, Cq = x.shape
    Hh = rpe_bias.shape[0]
    hd = Cq // Hh

    if batch_block is None:
        batch_block = _pick_batch_block(Bq)
    assert Bq % batch_block == 0
    grid = (Bq // batch_block,)

    # Host-side parameter prep: head-major, pre-transposed layouts so the kernel
    # never transposes, lane-slices or concatenates.
    w_qkv_h = w_qkv.reshape(3 * Hh, hd, Cq)            # rows already (s, h, d)-major
    b_qkv_h = b_qkv.reshape(3 * Hh, 1, 1, hd)
    w_proj_h = w_proj.T.reshape(Hh, hd, Cq)            # [h, d, c] = W_proj[c, h*hd+d]
    b_proj_2d = b_proj.reshape(1, Cq)

    # Advisory cost estimate (tiny kernel; lets XLA schedule around it).
    flops = (2 * Bq * Nq * Cq * 3 * Cq               # qkv projection
             + 2 * Bq * Hh * Nq * Nq * hd * 2        # q@k^T and attn@v
             + 2 * Bq * Nq * Cq * Cq)                # output projection
    bytes_accessed = 4 * (2 * x.size + w_qkv.size + b_qkv.size
                          + w_proj.size + b_proj.size + rpe_bias.size)
    cost = pl.CostEstimate(flops=flops,
                           transcendentals=Bq * Hh * Nq * Nq,
                           bytes_accessed=bytes_accessed)

    in_specs = [
        pl.BlockSpec((batch_block, Nq, Cq), lambda i: (i, 0, 0)),   # x
        _const_spec(w_qkv_h.shape),
        _const_spec(b_qkv_h.shape),
        _const_spec(w_proj_h.shape),
        _const_spec(b_proj_2d.shape),
        _const_spec(rpe_bias.shape),
    ]
    out_spec = pl.BlockSpec((batch_block, Nq, Cq), lambda i: (i, 0, 0))

    return pl.pallas_call(
        attention_kernel,
        out_shape=jax.ShapeDtypeStruct((Bq, Nq, Cq), x.dtype),
        grid_spec=pltpu.PrefetchScalarGridSpec(
            num_scalar_prefetch=0,
            grid=grid,
            in_specs=in_specs,
            out_specs=out_spec,
        ),
        compiler_params=pltpu.CompilerParams(
            dimension_semantics=("parallel",)),
        cost_estimate=cost,
    )(x, w_qkv_h, b_qkv_h, w_proj_h, b_proj_2d, rpe_bias)


# ---------------------------- pure-JAX reference ------------------------------
def reference_attention(x, w_qkv, b_qkv, w_proj, b_proj, rpe_bias):
    Bq, Nq, Cq = x.shape
    Hh = rpe_bias.shape[0]
    hd = Cq // Hh
    qkv = x @ w_qkv.T + b_qkv                                          # (B,N,3C)
    qkv = qkv.reshape(Bq, Nq, 3, Hh, hd).transpose(2, 0, 3, 1, 4)
    q, k, v = qkv[0] * (hd ** -0.5), qkv[1], qkv[2]                    # (B,H,N,hd)
    attn = jnp.einsum('bhqd,bhkd->bhqk', q, k) + rpe_bias[None]
    attn = jnp.clip(attn.astype(jnp.float32),
                    jnp.finfo(jnp.float32).min, jnp.finfo(jnp.float32).max)
    attn = jax.nn.softmax(attn, axis=-1)
    out = jnp.einsum('bhqk,bhkd->bhqd', attn, v)
    out = out.transpose(0, 2, 1, 3).reshape(Bq, Nq, Cq)
    return out @ w_proj.T + b_proj


# ---------------------------- parameter / input setup -------------------------
def make_rpe_bias(key):
    # relative_position_bias_table: ((2S-1)^2, H)  (nonzero for a nontrivial test)
    table = 0.02 * jax.random.normal(
        key, ((2 * INPUT_SIZE - 1) ** 2, NUM_HEADS), jnp.float32)
    # Swin-style relative position index for an INPUT_SIZE x INPUT_SIZE grid.
    coords = jnp.stack(jnp.meshgrid(jnp.arange(INPUT_SIZE),
                                    jnp.arange(INPUT_SIZE), indexing="ij"))
    coords = coords.reshape(2, -1)                                     # (2, N)
    rel = coords[:, :, None] - coords[:, None, :]                      # (2, N, N)
    rel = rel.transpose(1, 2, 0) + (INPUT_SIZE - 1)
    rpe_index = (rel[..., 0] * (2 * INPUT_SIZE - 1) + rel[..., 1]).reshape(-1)
    # table[rpe_index].view(-1, N, N, H).permute(0, 3, 1, 2) -> (H, N, N)
    bias = jnp.take(table, rpe_index, axis=0).reshape(N, N, NUM_HEADS)
    return bias.transpose(2, 0, 1).astype(jnp.float32)


if __name__ == "__main__":
    key = jax.random.PRNGKey(0)
    k_x, k_w, k_r = jax.random.split(key, 3)
    kw = jax.random.split(k_w, 4)

    std = 0.02
    x = jax.random.normal(k_x, (B, N, DIM), jnp.float32)
    w_qkv = std * jax.random.normal(kw[0], (3 * DIM, DIM), jnp.float32)   # (3C, C)
    b_qkv = std * jax.random.normal(kw[1], (3 * DIM,), jnp.float32)
    w_proj = std * jax.random.normal(kw[2], (DIM, DIM), jnp.float32)      # (C, C)
    b_proj = std * jax.random.normal(kw[3], (DIM,), jnp.float32)
    rpe_bias = make_rpe_bias(k_r)

    out = attention_forward(x, w_qkv, b_qkv, w_proj, b_proj, rpe_bias)
    out = jax.block_until_ready(out)

    ref = reference_attention(x, w_qkv, b_qkv, w_proj, b_proj, rpe_bias)
    assert out.shape == (B, N, DIM)
    max_err = float(jnp.max(jnp.abs(out - ref)))
    # tolerance loosened slightly vs exact because of approx reciprocal (EUP vrcp)
    assert jnp.allclose(out, ref, rtol=2e-3, atol=2e-3), max_err

    print("KERNEL_OK")
</pallas_src>

<mosaic_0001>
module attributes {stable_mosaic.version = 11 : i64} {
  func.func @attention_kernel(%arg0: i32, %arg1: memref<2x16x32xf32, #tpu.memory_space<vmem>>, %arg2: memref<12x8x32xf32, #tpu.memory_space<vmem>>, %arg3: memref<12x1x1x8xf32, #tpu.memory_space<vmem>>, %arg4: memref<4x8x32xf32, #tpu.memory_space<vmem>>, %arg5: memref<1x32xf32, #tpu.memory_space<vmem>>, %arg6: memref<4x16x16xf32, #tpu.memory_space<vmem>>, %arg7: memref<2x16x32xf32, #tpu.memory_space<vmem>>) attributes {dimension_semantics = [#tpu.dimension_semantics<parallel>], iteration_bounds = array<i64: 1>, scalar_prefetch = 0 : i64, scratch_operands = 0 : i64, tpu.core_type = #tpu.core_type<tc>, window_params = [{transform_indices = @transform_0, window_bounds = array<i64: 2, 16, 32>}, {pipeline_mode = #tpu.pipeline_mode<synchronous>, transform_indices = @transform_1, window_bounds = array<i64: 12, 8, 32>}, {pipeline_mode = #tpu.pipeline_mode<synchronous>, transform_indices = @transform_2, window_bounds = array<i64: 12, 1, 1, 8>}, {pipeline_mode = #tpu.pipeline_mode<synchronous>, transform_indices = @transform_3, window_bounds = array<i64: 4, 8, 32>}, {pipeline_mode = #tpu.pipeline_mode<synchronous>, transform_indices = @transform_4, window_bounds = array<i64: 1, 32>}, {pipeline_mode = #tpu.pipeline_mode<synchronous>, transform_indices = @transform_5, window_bounds = array<i64: 4, 16, 16>}, {transform_indices = @transform_6, window_bounds = array<i64: 2, 16, 32>}]} {
    %c0 = arith.constant 0 : index
    %c0_0 = arith.constant 0 : index
    %c0_1 = arith.constant 0 : index
    %0 = vector.load %arg1[%c0, %c0_0, %c0_1] : memref<2x16x32xf32, #tpu.memory_space<vmem>>, vector<2x16x32xf32>
    %1 = vector.shape_cast %0 : vector<2x16x32xf32> to vector<1x2x16x32xf32>
    %2 = vector.shape_cast %1 : vector<1x2x16x32xf32> to vector<1x2x16x32xf32>
    %3 = vector.broadcast %2 : vector<1x2x16x32xf32> to vector<12x2x16x32xf32>
    %4 = vector.shape_cast %3 : vector<12x2x16x32xf32> to vector<24x16x32xf32>
    %c0_2 = arith.constant 0 : index
    %c0_3 = arith.constant 0 : index
    %c0_4 = arith.constant 0 : index
    %5 = vector.load %arg2[%c0_2, %c0_3, %c0_4] : memref<12x8x32xf32, #tpu.memory_space<vmem>>, vector<12x8x32xf32>
    %6 = vector.shape_cast %5 : vector<12x8x32xf32> to vector<12x1x8x32xf32>
    %7 = vector.shape_cast %6 : vector<12x1x8x32xf32> to vector<12x1x8x32xf32>
    %8 = vector.broadcast %7 : vector<12x1x8x32xf32> to vector<12x2x8x32xf32>
    %9 = vector.shape_cast %8 : vector<12x2x8x32xf32> to vector<24x8x32xf32>
    "tpu.trace_start"() <{level = 10 : i32, message = "gnc,gdc->gnd"}> : () -> ()
    %cst = arith.constant dense<0.000000e+00> : vector<24x16x8xf32>
    %10 = tpu.matmul %4, %9, %cst {dimension_numbers = #tpu.dot_dimension_numbers<[2], [2], [1], [1], [0, 0, 0, 1, 1, 1], [0], [0]>} : vector<24x16x32xf32>, vector<24x8x32xf32>, vector<24x16x8xf32> -> vector<24x16x8xf32>
    "tpu.trace_stop"() : () -> ()
    %11 = vector.shape_cast %10 : vector<24x16x8xf32> to vector<12x2x16x8xf32>
    %c0_5 = arith.constant 0 : index
    %c0_6 = arith.constant 0 : index
    %c0_7 = arith.constant 0 : index
    %c0_8 = arith.constant 0 : index
    %12 = vector.load %arg3[%c0_5, %c0_6, %c0_7, %c0_8] : memref<12x1x1x8xf32, #tpu.memory_space<vmem>>, vector<12x1x1x8xf32>
    %13 = vector.broadcast %12 : vector<12x1x1x8xf32> to vector<12x2x16x8xf32>
    %14 = arith.addf %11, %13 : vector<12x2x16x8xf32>
    %15 = vector.extract_strided_slice %14 {offsets = [0, 0, 0, 0], sizes = [4, 2, 16, 8], strides = [1, 1, 1, 1]} : vector<12x2x16x8xf32> to vector<4x2x16x8xf32>
    %cst_9 = arith.constant 0.353553385 : f32
    %16 = vector.broadcast %cst_9 : f32 to vector<4x2x16x8xf32>
    %17 = arith.mulf %15, %16 : vector<4x2x16x8xf32>
    %18 = vector.shape_cast %17 : vector<4x2x16x8xf32> to vector<8x16x8xf32>
    %19 = vector.extract_strided_slice %14 {offsets = [4, 0, 0, 0], sizes = [4, 2, 16, 8], strides = [1, 1, 1, 1]} : vector<12x2x16x8xf32> to vector<4x2x16x8xf32>
    %20 = vector.shape_cast %19 : vector<4x2x16x8xf32> to vector<8x16x8xf32>
    %21 = vector.extract_strided_slice %14 {offsets = [8, 0, 0, 0], sizes = [4, 2, 16, 8], strides = [1, 1, 1, 1]} : vector<12x2x16x8xf32> to vector<4x2x16x8xf32>
    %22 = vector.shape_cast %21 : vector<4x2x16x8xf32> to vector<8x16x8xf32>
    "tpu.trace_start"() <{level = 10 : i32, message = "bqd,bkd->bqk"}> : () -> ()
    %cst_10 = arith.constant dense<0.000000e+00> : vector<8x16x16xf32>
    %23 = tpu.matmul %18, %20, %cst_10 {dimension_numbers = #tpu.dot_dimension_numbers<[2], [2], [1], [1], [0, 0, 0, 1, 1, 1], [0], [0]>} : vector<8x16x8xf32>, vector<8x16x8xf32>, vector<8x16x16xf32> -> vector<8x16x16xf32>
    "tpu.trace_stop"() : () -> ()
    %c0_11 = arith.constant 0 : index
    %c0_12 = arith.constant 0 : index
    %c0_13 = arith.constant 0 : index
    %24 = vector.load %arg6[%c0_11, %c0_12, %c0_13] : memref<4x16x16xf32, #tpu.memory_space<vmem>>, vector<4x16x16xf32>
    %25 = vector.shape_cast %24 : vector<4x16x16xf32> to vector<4x1x16x16xf32>
    %26 = vector.shape_cast %25 : vector<4x1x16x16xf32> to vector<4x1x16x16xf32>
    %27 = vector.broadcast %26 : vector<4x1x16x16xf32> to vector<4x2x16x16xf32>
    %28 = vector.shape_cast %27 : vector<4x2x16x16xf32> to vector<8x16x16xf32>
    %29 = arith.addf %23, %28 : vector<8x16x16xf32>
    %cst_14 = arith.constant dense<0xFF800000> : vector<8x16xf32>
    %30 = vector.multi_reduction <maximumf>, %29, %cst_14 [2] : vector<8x16x16xf32> to vector<8x16xf32>
    %31 = vector.shape_cast %30 : vector<8x16xf32> to vector<8x16x1xf32>
    %32 = vector.broadcast %31 : vector<8x16x1xf32> to vector<8x16x16xf32>
    %33 = arith.subf %29, %32 : vector<8x16x16xf32>
    %34 = math.exp %33 : vector<8x16x16xf32>
    %cst_15 = arith.constant dense<0.000000e+00> : vector<8x16xf32>
    %35 = vector.multi_reduction <add>, %34, %cst_15 [2] : vector<8x16x16xf32> to vector<8x16xf32>
    %36 = vector.shape_cast %35 : vector<8x16xf32> to vector<8x16x1xf32>
    %37 = tpu.reciprocal %36 {approx = true} : vector<8x16x1xf32> -> vector<8x16x1xf32>
    %38 = vector.broadcast %37 : vector<8x16x1xf32> to vector<8x16x16xf32>
    %39 = arith.mulf %34, %38 : vector<8x16x16xf32>
    "tpu.trace_start"() <{level = 10 : i32, message = "bqk,bkd->bqd"}> : () -> ()
    %cst_16 = arith.constant dense<0.000000e+00> : vector<8x16x8xf32>
    %40 = tpu.matmul %39, %22, %cst_16 {dimension_numbers = #tpu.dot_dimension_numbers<[2], [1], [1], [2], [0, 0, 0, 1, 1, 2], [0], [0]>} : vector<8x16x16xf32>, vector<8x16x8xf32>, vector<8x16x8xf32> -> vector<8x16x8xf32>
    "tpu.trace_stop"() : () -> ()
    %c0_17 = arith.constant 0 : index
    %c0_18 = arith.constant 0 : index
    %c0_19 = arith.constant 0 : index
    %41 = vector.load %arg4[%c0_17, %c0_18, %c0_19] : memref<4x8x32xf32, #tpu.memory_space<vmem>>, vector<4x8x32xf32>
    %42 = vector.shape_cast %41 : vector<4x8x32xf32> to vector<4x1x8x32xf32>
    %43 = vector.shape_cast %42 : vector<4x1x8x32xf32> to vector<4x1x8x32xf32>
    %44 = vector.broadcast %43 : vector<4x1x8x32xf32> to vector<4x2x8x32xf32>
    %45 = vector.shape_cast %44 : vector<4x2x8x32xf32> to vector<8x8x32xf32>
    "tpu.trace_start"() <{level = 10 : i32, message = "bqd,bdc->bqc"}> : () -> ()
    %cst_20 = arith.constant dense<0.000000e+00> : vector<8x16x32xf32>
    %46 = tpu.matmul %40, %45, %cst_20 {dimension_numbers = #tpu.dot_dimension_numbers<[2], [1], [1], [2], [0, 0, 0, 1, 1, 2], [0], [0]>} : vector<8x16x8xf32>, vector<8x8x32xf32>, vector<8x16x32xf32> -> vector<8x16x32xf32>
    "tpu.trace_stop"() : () -> ()
    %47 = vector.shape_cast %46 : vector<8x16x32xf32> to vector<4x2x16x32xf32>
    %cst_21 = arith.constant dense<0.000000e+00> : vector<2x16x32xf32>
    %48 = vector.multi_reduction <add>, %47, %cst_21 [0] : vector<4x2x16x32xf32> to vector<2x16x32xf32>
    %c0_22 = arith.constant 0 : index
    %c0_23 = arith.constant 0 : index
    %49 = vector.load %arg5[%c0_22, %c0_23] : memref<1x32xf32, #tpu.memory_space<vmem>>, vector<1x32xf32>
    %50 = vector.shape_cast %49 : vector<1x32xf32> to vector<1x1x32xf32>
    %51 = vector.broadcast %50 : vector<1x1x32xf32> to vector<2x16x32xf32>
    %52 = arith.addf %48, %51 : vector<2x16x32xf32>
    %c0_24 = arith.constant 0 : index
    %c0_25 = arith.constant 0 : index
    %c0_26 = arith.constant 0 : index
    %53 = vector.load %arg7[%c0_24, %c0_25, %c0_26] : memref<2x16x32xf32, #tpu.memory_space<vmem>>, vector<2x16x32xf32>
    tpu.vector_store %arg7[%c0_24, %c0_25, %c0_26], %52 {strides = array<i32>} : memref<2x16x32xf32, #tpu.memory_space<vmem>>, vector<2x16x32xf32>,
    return
  }
  func.func @transform_0(%arg0: i32) -> (i32, i32, i32) {
    %c0_i32 = arith.constant 0 : i32
    %c0_i32_0 = arith.constant 0 : i32
    %c0_i32_1 = arith.constant 0 : i32
    return %arg0, %c0_i32, %c0_i32_0 : i32, i32, i32
  }
  func.func @transform_1(%arg0: i32) -> (i32, i32, i32) {
    %c0_i32 = arith.constant 0 : i32
    %c0_i32_0 = arith.constant 0 : i32
    %c0_i32_1 = arith.constant 0 : i32
    %c0_i32_2 = arith.constant 0 : i32
    return %c0_i32, %c0_i32_0, %c0_i32_1 : i32, i32, i32
  }
  func.func @transform_2(%arg0: i32) -> (i32, i32, i32, i32) {
    %c0_i32 = arith.constant 0 : i32
    %c0_i32_0 = arith.constant 0 : i32
    %c0_i32_1 = arith.constant 0 : i32
    %c0_i32_2 = arith.constant 0 : i32
    %c0_i32_3 = arith.constant 0 : i32
    return %c0_i32, %c0_i32_0, %c0_i32_1, %c0_i32_2 : i32, i32, i32, i32
  }
  func.func @transform_3(%arg0: i32) -> (i32, i32, i32) {
    %c0_i32 = arith.constant 0 : i32
    %c0_i32_0 = arith.constant 0 : i32
    %c0_i32_1 = arith.constant 0 : i32
    %c0_i32_2 = arith.constant 0 : i32
    return %c0_i32, %c0_i32_0, %c0_i32_1 : i32, i32, i32
  }
  func.func @transform_4(%arg0: i32) -> (i32, i32) {
    %c0_i32 = arith.constant 0 : i32
    %c0_i32_0 = arith.constant 0 : i32
    %c0_i32_1 = arith.constant 0 : i32
    return %c0_i32, %c0_i32_0 : i32, i32
  }
  func.func @transform_5(%arg0: i32) -> (i32, i32, i32) {
    %c0_i32 = arith.constant 0 : i32
    %c0_i32_0 = arith.constant 0 : i32
    %c0_i32_1 = arith.constant 0 : i32
    %c0_i32_2 = arith.constant 0 : i32
    return %c0_i32, %c0_i32_0, %c0_i32_1 : i32, i32, i32
  }
  func.func @transform_6(%arg0: i32) -> (i32, i32, i32) {
    %c0_i32 = arith.constant 0 : i32
    %c0_i32_0 = arith.constant 0 : i32
    %c0_i32_1 = arith.constant 0 : i32
    return %arg0, %c0_i32, %c0_i32_0 : i32, i32, i32
  }
}

</mosaic_0001>

<llo_original>
// kernel: tpu_custom_call.1
$region0: #{tpu_custom_call.1}
  #allocation0 [shape = 'u32[]', space=smem, size = 0x4, offset = 0x4, fixed_abs, tag = 'smem constant byte address 0x4 - core index']
  #allocation1 [shape = 'u32[144,128]{1,0:T(1,128)}', space=vmem, size = 0x12000, scoped, tag = 'internal scratch']
  %s0 = inlined_call_operand.hbm [shape: f32[2,16,32], index: 0, kind: input, shape index: {}]
  %s1 = inlined_call_operand.hbm [shape: f32[12,8,32], index: 1, kind: input, shape index: {}]
  %s2 = inlined_call_operand.vmem [shape: f32[12,1,1,8], index: 2, kind: input, shape index: {}]
  %s3 = inlined_call_operand.hbm [shape: f32[4,8,32], index: 3, kind: input, shape index: {}]
  %s4 = inlined_call_operand.vmem [shape: f32[1,32], index: 4, kind: input, shape index: {}]
  %s5 = inlined_call_operand.hbm [shape: f32[4,16,16], index: 5, kind: input, shape index: {}]
  %s6 = inlined_call_operand.hbm [shape: f32[2,16,32], index: 6, kind: output, shape index: {}]
  %s7 = sld [smem:[#allocation0]]
  $region50: #{tpu_custom_call.1} parent=0
    _
  %s9 = ssub.s32 1, %s7
  %s10 = scalar_select 0, %s9, %s7
  $region1: #{tpu_custom_call.1} parent=0
    #allocation2 [shape = 'u8[16384]{0}', space=vmem, size = 0x4000, scoped, tag = 'input window, operand 0, single buffered']
    #allocation3 [shape = 's32[1]{0}', space=sflag, size = 0x4, scoped, tag = 'scoped memory for tpu_custom_call.1']
    #allocation4 [shape = 's32[1]{0}', space=sflag, size = 0x4, scoped, tag = 'scoped memory for tpu_custom_call.1']
    #allocation5 [shape = 'u8[49152]{0}', space=vmem, size = 0xc000, scoped, tag = 'input window, operand 1, single buffered']
    #allocation6 [shape = 's32[1]{0}', space=sflag, size = 0x4, scoped, tag = 'scoped memory for tpu_custom_call.1']
    #allocation7 [shape = 'u8[16384]{0}', space=vmem, size = 0x4000, scoped, tag = 'input window, operand 3, single buffered']
    #allocation8 [shape = 'u8[32768]{0}', space=vmem, size = 0x8000, scoped, tag = 'input window, operand 5, single buffered']
    #allocation9 [shape = 's32[1]{0}', space=sflag, size = 0x4, scoped, tag = 'scoped memory for tpu_custom_call.1']
    #allocation10 [shape = 'u8[16384]{0}', space=vmem, size = 0x4000, scoped, tag = 'output window, operand 0, single buffered']
    %11 = vsyncpa [#allocation3], 0
    %12 = vsyncpa [#allocation6], 0
    %13 = vsyncpa [#allocation9], 0
    %14 = vsyncpa [#allocation4], 0
    // Predicated region
    $region2: #{tpu_custom_call.1} parent=1 // pred_check
      _
    $region3: #{tpu_custom_call.1} parent=1 // pred_check_branch
      %16 = sbr.rel (0) target = $region5
    $region4: #{tpu_custom_call.1} parent=1 // pred_region
      %s18 = ssub.s32 512, 512
      %19 = vsyncadd [#allocation3], %s18
      %s20 = sshll.u32 [#allocation2], 4
      %s21 = int_to_ptr.vmem [resolvable:$true] %s20
      %26 = dma.hbm_to_vmem [thread:$0]  %s0, 512, %s21, [#allocation3], 128, 128, 8
    $region5: #{tpu_custom_call.1} parent=1 // pred_fallthru
      _
    // Predicated region
    $region6: #{tpu_custom_call.1} parent=1 // pred_check
      _
    $region7: #{tpu_custom_call.1} parent=1 // pred_check_branch
      %28 = sbr.rel (0) target = $region9
    $region8: #{tpu_custom_call.1} parent=1 // pred_region
      %s30 = ssub.s32 1536, 1536
      %31 = vsyncadd [#allocation6], %s30
      %s32 = sshll.u32 [#allocation5], 4
      %s33 = int_to_ptr.vmem [resolvable:$true] %s32
      %38 = dma.hbm_to_vmem [thread:$0]  %s1, 1536, %s33, [#allocation6], 128, 128, 8
    $region9: #{tpu_custom_call.1} parent=1 // pred_fallthru
      _
    // Predicated region
    $region10: #{tpu_custom_call.1} parent=1 // pred_check
      _
    $region11: #{tpu_custom_call.1} parent=1 // pred_check_branch
      %40 = sbr.rel (0) target = $region13
    $region12: #{tpu_custom_call.1} parent=1 // pred_region
      _
    $region13: #{tpu_custom_call.1} parent=1 // pred_fallthru
      _
    // Predicated region
    $region14: #{tpu_custom_call.1} parent=1 // pred_check
      _
    $region15: #{tpu_custom_call.1} parent=1 // pred_check_branch
      %42 = sbr.rel (0) target = $region17
    $region16: #{tpu_custom_call.1} parent=1 // pred_region
      %s44 = ssub.s32 512, 512
      %45 = vsyncadd [#allocation6], %s44
      %s46 = sshll.u32 [#allocation7], 4
      %s47 = int_to_ptr.vmem [resolvable:$true] %s46
      %52 = dma.hbm_to_vmem [thread:$0]  %s3, 512, %s47, [#allocation6], 128, 128, 8
    $region17: #{tpu_custom_call.1} parent=1 // pred_fallthru
      _
    // Predicated region
    $region18: #{tpu_custom_call.1} parent=1 // pred_check
      _
    $region19: #{tpu_custom_call.1} parent=1 // pred_check_branch
      %54 = sbr.rel (0) target = $region21
    $region20: #{tpu_custom_call.1} parent=1 // pred_region
      _
    $region21: #{tpu_custom_call.1} parent=1 // pred_fallthru
      _
    // Predicated region
    $region22: #{tpu_custom_call.1} parent=1 // pred_check
      _
    $region23: #{tpu_custom_call.1} parent=1 // pred_check_branch
      %56 = sbr.rel (0) target = $region25
    $region24: #{tpu_custom_call.1} parent=1 // pred_region
      %s58 = ssub.s32 1024, 1024
      %59 = vsyncadd [#allocation9], %s58
      %s60 = sshll.u32 [#allocation8], 4
      %s61 = int_to_ptr.vmem [resolvable:$true] %s60
      %66 = dma.hbm_to_vmem [thread:$0]  %s5, 1024, %s61, [#allocation9], 128, 128, 8
    $region25: #{tpu_custom_call.1} parent=1 // pred_fallthru
      _
    // Predicated region
    $region26: #{tpu_custom_call.1} parent=1 // pred_check
      _
    $region27: #{tpu_custom_call.1} parent=1 // pred_check_branch
      %68 = sbr.rel (0) target = $region29
    $region28: #{tpu_custom_call.1} parent=1 // pred_region
      %69 = dma.done [#allocation3], 512
    $region29: #{tpu_custom_call.1} parent=1 // pred_fallthru
      _
    // Predicated region
    $region30: #{tpu_custom_call.1} parent=1 // pred_check
      _
    $region31: #{tpu_custom_call.1} parent=1 // pred_check_branch
      %71 = sbr.rel (0) target = $region33
    $region32: #{tpu_custom_call.1} parent=1 // pred_region
      %72 = dma.done [#allocation6], 1536
    $region33: #{tpu_custom_call.1} parent=1 // pred_fallthru
      _
    // Predicated region
    $region34: #{tpu_custom_call.1} parent=1 // pred_check
      _
    $region35: #{tpu_custom_call.1} parent=1 // pred_check_branch
      %74 = sbr.rel (0) target = $region37
    $region36: #{tpu_custom_call.1} parent=1 // pred_region
      %75 = dma.done [#allocation6], 512
    $region37: #{tpu_custom_call.1} parent=1 // pred_fallthru
      _
    // Predicated region
    $region38: #{tpu_custom_call.1} parent=1 // pred_check
      _
    $region39: #{tpu_custom_call.1} parent=1 // pred_check_branch
      %77 = sbr.rel (0) target = $region41
    $region40: #{tpu_custom_call.1} parent=1 // pred_region
      %78 = dma.done [#allocation9], 1024
    $region41: #{tpu_custom_call.1} parent=1 // pred_fallthru
      _
    %v79 = vld [vmem:[#allocation2] sm:$0xff]
    %v80 = vld [vmem:[#allocation2 + $0x8] sm:$0xff]
    %v81 = vld [vmem:[#allocation2 + $0x10] sm:$0xff]
    %v82 = vld [vmem:[#allocation2 + $0x18] sm:$0xff]
    %v83 = vld [vmem:[#allocation5] sm:$0xff]
    %v84 = vld [vmem:[#allocation5 + $0x8] sm:$0xff]
    %v85 = vld [vmem:[#allocation5 + $0x10] sm:$0xff]
    %v86 = vld [vmem:[#allocation5 + $0x18] sm:$0xff]
    %v87 = vld [vmem:[#allocation5 + $0x20] sm:$0xff]
    %v88 = vld [vmem:[#allocation5 + $0x28] sm:$0xff]
    %v89 = vld [vmem:[#allocation5 + $0x30] sm:$0xff]
    %v90 = vld [vmem:[#allocation5 + $0x38] sm:$0xff]
    %v91 = vld [vmem:[#allocation5 + $0x40] sm:$0xff]
    %v92 = vld [vmem:[#allocation5 + $0x48] sm:$0xff]
    %v93 = vld [vmem:[#allocation5 + $0x50] sm:$0xff]
    %v94 = vld [vmem:[#allocation5 + $0x58] sm:$0xff]
    %vm95 = vcmask 261120
    %v97 = vsel %vm95, %v79, 0
    %v100 = vsel %vm95, %v80, 0
    %v103 = vsel %vm95, %v83, 0
    %105 = vmatprep.subr.mxu0 0.0
    %106 = vmatpush1.xpose.msra.mxu0 %v103
    %107 = vmatprep.subr.mxu0 0.0
    %108 = vmatpush1.xpose.msra.mxu0 0.0
    %109 = vmatprep.subr.mxu0 0.0
    %110 = vmatpush1.xpose.msra.mxu0 0.0
    %111 = vmatprep.subr.mxu0 0.0
    %112 = vmatpush1.xpose.msra.mxu0 0.0
    %113 = vmatprep.subr.mxu0 0.0
    %114 = vmatpush1.xpose.msra.mxu0 0.0
    %115 = vmatprep.subr.mxu0 0.0
    %116 = vmatpush1.xpose.msra.mxu0 0.0
    %117 = vmatprep.subr.mxu0 0.0
    %118 = vmatpush1.xpose.msra.mxu0 0.0
    %119 = vmatprep.subr.mxu0 0.0
    %120 = vmatpush1.xpose.msra.mxu0 0.0
    %121 = vmatprep.subr.mxu0 0.0
    %122 = vmatpush1.xpose.msra.mxu0 0.0
    %123 = vmatprep.subr.mxu0 0.0
    %124 = vmatpush1.xpose.msra.mxu0 0.0
    %125 = vmatprep.subr.mxu0 0.0
    %126 = vmatpush1.xpose.msra.mxu0 0.0
    %127 = vmatprep.subr.mxu0 0.0
    %128 = vmatpush1.xpose.msra.mxu0 0.0
    %129 = vmatprep.subr.mxu0 0.0
    %130 = vmatpush1.xpose.msra.mxu0 0.0
    %131 = vmatprep.subr.mxu0 0.0
    %132 = vmatpush1.xpose.msra.mxu0 0.0
    %133 = vmatprep.subr.mxu0 0.0
    %134 = vmatpush1.xpose.msra.mxu0 0.0
    %135 = vmatprep.subr.mxu0 0.0
    %136 = vmatpush1.xpose.msra.mxu0 0.0
    %137 = vmatprep.subr.mxu0 0.0
    %138 = vmatpush1.xpose.msra.mxu0 0.0
    %139 = vmatprep.subr.mxu0 0.0
    %140 = vmatpush1.xpose.msra.mxu0 0.0
    %141 = vmatprep.subr.mxu0 0.0
    %142 = vmatpush1.xpose.msra.mxu0 0.0
    %143 = vmatprep.subr.mxu0 0.0
    %144 = vmatpush1.xpose.msra.mxu0 0.0
    %145 = vmatprep.subr.mxu0 0.0
    %146 = vmatpush1.xpose.msra.mxu0 0.0
    %147 = vmatprep.subr.mxu0 0.0
    %148 = vmatpush1.xpose.msra.mxu0 0.0
    %149 = vmatprep.subr.mxu0 0.0
    %150 = vmatpush1.xpose.msra.mxu0 0.0
    %151 = vmatprep.subr.mxu0 0.0
    %152 = vmatpush1.xpose.msra.mxu0 0.0
    %153 = vmatprep.subr.mxu0 0.0
    %154 = vmatpush1.xpose.msra.mxu0 0.0
    %155 = vmatprep.subr.mxu0 0.0
    %156 = vmatpush1.xpose.msra.mxu0 0.0
    %157 = vmatprep.subr.mxu0 0.0
    %158 = vmatpush1.xpose.msra.mxu0 0.0
    %159 = vmatprep.subr.mxu0 0.0
    %160 = vmatpush1.xpose.msra.mxu0 0.0
    %161 = vmatprep.subr.mxu0 0.0
    %162 = vmatpush1.xpose.msra.mxu0 0.0
    %163 = vmatprep.subr.mxu0 0.0
    %164 = vmatpush1.xpose.msra.mxu0 0.0
    %165 = vmatprep.subr.mxu0 0.0
    %166 = vmatpush1.xpose.msra.mxu0 0.0
    %167 = vmatprep.subr.mxu0 0.0
    %168 = vmatpush1.xpose.msra.mxu0 0.0
    %169 = vmatprep.mubr.f32.mxu0 0.0
    %170 = vmatmul.mubr.f32.gmra.mrb[0].mxu0 %v97
    %v171 = vpop.f32.mrb[0].mxu0
    %v172 = vadd.f32 0.0, %v171
    %v173 = vpop.f32.mrb[0].mxu0
    %174 = vmatprep.mubr.f32.mxu0 0.0
    %175 = vmatmul.mubr.f32.gmra.mrb[0].mxu0 %v100
    %v176 = vpop.f32.mrb[0].mxu0
    %v177 = vadd.f32 0.0, %v176
    %v178 = vpop.f32.mrb[0].mxu0
    %179 = vdwg.mxu0
    %v181 = vsel %vm95, %v81, 0
    %v184 = vsel %vm95, %v82, 0
    %186 = vmatprep.subr.mxu0 0.0
    %187 = vmatpush1.xpose.msra.mxu0 %v103
    %188 = vmatprep.subr.mxu0 0.0
    %189 = vmatpush1.xpose.msra.mxu0 0.0
    %190 = vmatprep.subr.mxu0 0.0
    %191 = vmatpush1.xpose.msra.mxu0 0.0
    %192 = vmatprep.subr.mxu0 0.0
    %193 = vmatpush1.xpose.msra.mxu0 0.0
    %194 = vmatprep.subr.mxu0 0.0
    %195 = vmatpush1.xpose.msra.mxu0 0.0
    %196 = vmatprep.subr.mxu0 0.0
    %197 = vmatpush1.xpose.msra.mxu0 0.0
    %198 = vmatprep.subr.mxu0 0.0
    %199 = vmatpush1.xpose.msra.mxu0 0.0
    %200 = vmatprep.subr.mxu0 0.0
    %201 = vmatpush1.xpose.msra.mxu0 0.0
    %202 = vmatprep.subr.mxu0 0.0
    %203 = vmatpush1.xpose.msra.mxu0 0.0
    %204 = vmatprep.subr.mxu0 0.0
    %205 = vmatpush1.xpose.msra.mxu0 0.0
    %206 = vmatprep.subr.mxu0 0.0
    %207 = vmatpush1.xpose.msra.mxu0 0.0
    %208 = vmatprep.subr.mxu0 0.0
    %209 = vmatpush1.xpose.msra.mxu0 0.0
    %210 = vmatprep.subr.mxu0 0.0
    %211 = vmatpush1.xpose.msra.mxu0 0.0
    %212 = vmatprep.subr.mxu0 0.0
    %213 = vmatpush1.xpose.msra.mxu0 0.0
    %214 = vmatprep.subr.mxu0 0.0
    %215 = vmatpush1.xpose.msra.mxu0 0.0
    %216 = vmatprep.subr.mxu0 0.0
    %217 = vmatpush1.xpose.msra.mxu0 0.0
    %218 = vmatprep.subr.mxu0 0.0
    %219 = vmatpush1.xpose.msra.mxu0 0.0
    %220 = vmatprep.subr.mxu0 0.0
    %221 = vmatpush1.xpose.msra.mxu0 0.0
    %222 = vmatprep.subr.mxu0 0.0
    %223 = vmatpush1.xpose.msra.mxu0 0.0
    %224 = vmatprep.subr.mxu0 0.0
    %225 = vmatpush1.xpose.msra.mxu0 0.0
    %226 = vmatprep.subr.mxu0 0.0
    %227 = vmatpush1.xpose.msra.mxu0 0.0
    %228 = vmatprep.subr.mxu0 0.0
    %229 = vmatpush1.xpose.msra.mxu0 0.0
    %230 = vmatprep.subr.mxu0 0.0
    %231 = vmatpush1.xpose.msra.mxu0 0.0
    %232 = vmatprep.subr.mxu0 0.0
    %233 = vmatpush1.xpose.msra.mxu0 0.0
    %234 = vmatprep.subr.mxu0 0.0
    %235 = vmatpush1.xpose.msra.mxu0 0.0
    %236 = vmatprep.subr.mxu0 0.0
    %237 = vmatpush1.xpose.msra.mxu0 0.0
    %238 = vmatprep.subr.mxu0 0.0
    %239 = vmatpush1.xpose.msra.mxu0 0.0
    %240 = vmatprep.subr.mxu0 0.0
    %241 = vmatpush1.xpose.msra.mxu0 0.0
    %242 = vmatprep.subr.mxu0 0.0
    %243 = vmatpush1.xpose.msra.mxu0 0.0
    %244 = vmatprep.subr.mxu0 0.0
    %245 = vmatpush1.xpose.msra.mxu0 0.0
    %246 = vmatprep.subr.mxu0 0.0
    %247 = vmatpush1.xpose.msra.mxu0 0.0
    %248 = vmatprep.subr.mxu0 0.0
    %249 = vmatpush1.xpose.msra.mxu0 0.0
    %250 = vmatprep.mubr.f32.mxu0 0.0
    %251 = vmatmul.mubr.f32.gmra.mrb[0].mxu0 %v181
    %v252 = vpop.f32.mrb[0].mxu0
    %v253 = vadd.f32 0.0, %v252
    %v254 = vpop.f32.mrb[0].mxu0
    %255 = vmatprep.mubr.f32.mxu0 0.0
    %256 = vmatmul.mubr.f32.gmra.mrb[0].mxu0 %v184
    %v257 = vpop.f32.mrb[0].mxu0
    %v258 = vadd.f32 0.0, %v257
    %v259 = vpop.f32.mrb[0].mxu0
    %260 = vdwg.mxu0
    %v262 = vsel %vm95, %v84, 0
    %264 = vmatprep.subr.mxu0 0.0
    %265 = vmatpush1.xpose.msra.mxu0 %v262
    %266 = vmatprep.subr.mxu0 0.0
    %267 = vmatpush1.xpose.msra.mxu0 0.0
    %268 = vmatprep.subr.mxu0 0.0
    %269 = vmatpush1.xpose.msra.mxu0 0.0
    %270 = vmatprep.subr.mxu0 0.0
    %271 = vmatpush1.xpose.msra.mxu0 0.0
    %272 = vmatprep.subr.mxu0 0.0
    %273 = vmatpush1.xpose.msra.mxu0 0.0
    %274 = vmatprep.subr.mxu0 0.0
    %275 = vmatpush1.xpose.msra.mxu0 0.0
    %276 = vmatprep.subr.mxu0 0.0
    %277 = vmatpush1.xpose.msra.mxu0 0.0
    %278 = vmatprep.subr.mxu0 0.0
    %279 = vmatpush1.xpose.msra.mxu0 0.0
    %280 = vmatprep.subr.mxu0 0.0
    %281 = vmatpush1.xpose.msra.mxu0 0.0
    %282 = vmatprep.subr.mxu0 0.0
    %283 = vmatpush1.xpose.msra.mxu0 0.0
    %284 = vmatprep.subr.mxu0 0.0
    %285 = vmatpush1.xpose.msra.mxu0 0.0
    %286 = vmatprep.subr.mxu0 0.0
    %287 = vmatpush1.xpose.msra.mxu0 0.0
    %288 = vmatprep.subr.mxu0 0.0
    %289 = vmatpush1.xpose.msra.mxu0 0.0
    %290 = vmatprep.subr.mxu0 0.0
    %291 = vmatpush1.xpose.msra.mxu0 0.0
    %292 = vmatprep.subr.mxu0 0.0
    %293 = vmatpush1.xpose.msra.mxu0 0.0
    %294 = vmatprep.subr.mxu0 0.0
    %295 = vmatpush1.xpose.msra.mxu0 0.0
    %296 = vmatprep.subr.mxu0 0.0
    %297 = vmatpush1.xpose.msra.mxu0 0.0
    %298 = vmatprep.subr.mxu0 0.0
    %299 = vmatpush1.xpose.msra.mxu0 0.0
    %300 = vmatprep.subr.mxu0 0.0
    %301 = vmatpush1.xpose.msra.mxu0 0.0
    %302 = vmatprep.subr.mxu0 0.0
    %303 = vmatpush1.xpose.msra.mxu0 0.0
    %304 = vmatprep.subr.mxu0 0.0
    %305 = vmatpush1.xpose.msra.mxu0 0.0
    %306 = vmatprep.subr.mxu0 0.0
    %307 = vmatpush1.xpose.msra.mxu0 0.0
    %308 = vmatprep.subr.mxu0 0.0
    %309 = vmatpush1.xpose.msra.mxu0 0.0
    %310 = vmatprep.subr.mxu0 0.0
    %311 = vmatpush1.xpose.msra.mxu0 0.0
    %312 = vmatprep.subr.mxu0 0.0
    %313 = vmatpush1.xpose.msra.mxu0 0.0
    %314 = vmatprep.subr.mxu0 0.0
    %315 = vmatpush1.xpose.msra.mxu0 0.0
    %316 = vmatprep.subr.mxu0 0.0
    %317 = vmatpush1.xpose.msra.mxu0 0.0
    %318 = vmatprep.subr.mxu0 0.0
    %319 = vmatpush1.xpose.msra.mxu0 0.0
    %320 = vmatprep.subr.mxu0 0.0
    %321 = vmatpush1.xpose.msra.mxu0 0.0
    %322 = vmatprep.subr.mxu0 0.0
    %323 = vmatpush1.xpose.msra.mxu0 0.0
    %324 = vmatprep.subr.mxu0 0.0
    %325 = vmatpush1.xpose.msra.mxu0 0.0
    %326 = vmatprep.subr.mxu0 0.0
    %327 = vmatpush1.xpose.msra.mxu0 0.0
    %328 = vmatprep.mubr.f32.mxu0 0.0
    %329 = vmatmul.mubr.f32.gmra.mrb[0].mxu0 %v97
    %v330 = vpop.f32.mrb[0].mxu0
    %v331 = vadd.f32 0.0, %v330
    %v332 = vpop.f32.mrb[0].mxu0
    %333 = vmatprep.mubr.f32.mxu0 0.0
    %334 = vmatmul.mubr.f32.gmra.mrb[0].mxu0 %v100
    %v335 = vpop.f32.mrb[0].mxu0
    %v336 = vadd.f32 0.0, %v335
    %v337 = vpop.f32.mrb[0].mxu0
    %338 = vdwg.mxu0
    %339 = vmatprep.subr.mxu0 0.0
    %340 = vmatpush1.xpose.msra.mxu0 %v262
    %341 = vmatprep.subr.mxu0 0.0
    %342 = vmatpush1.xpose.msra.mxu0 0.0
    %343 = vmatprep.subr.mxu0 0.0
    %344 = vmatpush1.xpose.msra.mxu0 0.0
    %345 = vmatprep.subr.mxu0 0.0
    %346 = vmatpush1.xpose.msra.mxu0 0.0
    %347 = vmatprep.subr.mxu0 0.0
    %348 = vmatpush1.xpose.msra.mxu0 0.0
    %349 = vmatprep.subr.mxu0 0.0
    %350 = vmatpush1.xpose.msra.mxu0 0.0
    %351 = vmatprep.subr.mxu0 0.0
    %352 = vmatpush1.xpose.msra.mxu0 0.0
    %353 = vmatprep.subr.mxu0 0.0
    %354 = vmatpush1.xpose.msra.mxu0 0.0
    %355 = vmatprep.subr.mxu0 0.0
    %356 = vmatpush1.xpose.msra.mxu0 0.0
    %357 = vmatprep.subr.mxu0 0.0
    %358 = vmatpush1.xpose.msra.mxu0 0.0
    %359 = vmatprep.subr.mxu0 0.0
    %360 = vmatpush1.xpose.msra.mxu0 0.0
    %361 = vmatprep.subr.mxu0 0.0
    %362 = vmatpush1.xpose.msra.mxu0 0.0
    %363 = vmatprep.subr.mxu0 0.0
    %364 = vmatpush1.xpose.msra.mxu0 0.0
    %365 = vmatprep.subr.mxu0 0.0
    %366 = vmatpush1.xpose.msra.mxu0 0.0
    %367 = vmatprep.subr.mxu0 0.0
    %368 = vmatpush1.xpose.msra.mxu0 0.0
    %369 = vmatprep.subr.mxu0 0.0
    %370 = vmatpush1.xpose.msra.mxu0 0.0
    %371 = vmatprep.subr.mxu0 0.0
    %372 = vmatpush1.xpose.msra.mxu0 0.0
    %373 = vmatprep.subr.mxu0 0.0
    %374 = vmatpush1.xpose.msra.mxu0 0.0
    %375 = vmatprep.subr.mxu0 0.0
    %376 = vmatpush1.xpose.msra.mxu0 0.0
    %377 = vmatprep.subr.mxu0 0.0
    %378 = vmatpush1.xpose.msra.mxu0 0.0
    %379 = vmatprep.subr.mxu0 0.0
    %380 = vmatpush1.xpose.msra.mxu0 0.0
    %381 = vmatprep.subr.mxu0 0.0
    %382 = vmatpush1.xpose.msra.mxu0 0.0
    %383 = vmatprep.subr.mxu0 0.0
    %384 = vmatpush1.xpose.msra.mxu0 0.0
    %385 = vmatprep.subr.mxu0 0.0
    %386 = vmatpush1.xpose.msra.mxu0 0.0
    %387 = vmatprep.subr.mxu0 0.0
    %388 = vmatpush1.xpose.msra.mxu0 0.0
    %389 = vmatprep.subr.mxu0 0.0
    %390 = vmatpush1.xpose.msra.mxu0 0.0
    %391 = vmatprep.subr.mxu0 0.0
    %392 = vmatpush1.xpose.msra.mxu0 0.0
    %393 = vmatprep.subr.mxu0 0.0
    %394 = vmatpush1.xpose.msra.mxu0 0.0
    %395 = vmatprep.subr.mxu0 0.0
    %396 = vmatpush1.xpose.msra.mxu0 0.0
    %397 = vmatprep.subr.mxu0 0.0
    %398 = vmatpush1.xpose.msra.mxu0 0.0
    %399 = vmatprep.subr.mxu0 0.0
    %400 = vmatpush1.xpose.msra.mxu0 0.0
    %401 = vmatprep.subr.mxu0 0.0
    %402 = vmatpush1.xpose.msra.mxu0 0.0
    %403 = vmatprep.mubr.f32.mxu0 0.0
    %404 = vmatmul.mubr.f32.gmra.mrb[0].mxu0 %v181
    %v405 = vpop.f32.mrb[0].mxu0
    %v406 = vadd.f32 0.0, %v405
    %v407 = vpop.f32.mrb[0].mxu0
    %408 = vmatprep.mubr.f32.mxu0 0.0
    %409 = vmatmul.mubr.f32.gmra.mrb[0].mxu0 %v184
    %v410 = vpop.f32.mrb[0].mxu0
    %v411 = vadd.f32 0.0, %v410
    %v412 = vpop.f32.mrb[0].mxu0
    %413 = vdwg.mxu0
    %v415 = vsel %vm95, %v85, 0
    %417 = vmatprep.subr.mxu0 0.0
    %418 = vmatpush1.xpose.msra.mxu0 %v415
    %419 = vmatprep.subr.mxu0 0.0
    %420 = vmatpush1.xpose.msra.mxu0 0.0
    %421 = vmatprep.subr.mxu0 0.0
    %422 = vmatpush1.xpose.msra.mxu0 0.0
    %423 = vmatprep.subr.mxu0 0.0
    %424 = vmatpush1.xpose.msra.mxu0 0.0
    %425 = vmatprep.subr.mxu0 0.0
    %426 = vmatpush1.xpose.msra.mxu0 0.0
    %427 = vmatprep.subr.mxu0 0.0
    %428 = vmatpush1.xpose.msra.mxu0 0.0
    %429 = vmatprep.subr.mxu0 0.0
    %430 = vmatpush1.xpose.msra.mxu0 0.0
    %431 = vmatprep.subr.mxu0 0.0
    %432 = vmatpush1.xpose.msra.mxu0 0.0
    %433 = vmatprep.subr.mxu0 0.0
    %434 = vmatpush1.xpose.msra.mxu0 0.0
    %435 = vmatprep.subr.mxu0 0.0
    %436 = vmatpush1.xpose.msra.mxu0 0.0
    %437 = vmatprep.subr.mxu0 0.0
    %438 = vmatpush1.xpose.msra.mxu0 0.0
    %439 = vmatprep.subr.mxu0 0.0
    %440 = vmatpush1.xpose.msra.mxu0 0.0
    %441 = vmatprep.subr.mxu0 0.0
    %442 = vmatpush1.xpose.msra.mxu0 0.0
    %443 = vmatprep.subr.mxu0 0.0
    %444 = vmatpush1.xpose.msra.mxu0 0.0
    %445 = vmatprep.subr.mxu0 0.0
    %446 = vmatpush1.xpose.msra.mxu0 0.0
    %447 = vmatprep.subr.mxu0 0.0
    %448 = vmatpush1.xpose.msra.mxu0 0.0
    %449 = vmatprep.subr.mxu0 0.0
    %450 = vmatpush1.xpose.msra.mxu0 0.0
    %451 = vmatprep.subr.mxu0 0.0
    %452 = vmatpush1.xpose.msra.mxu0 0.0
    %453 = vmatprep.subr.mxu0 0.0
    %454 = vmatpush1.xpose.msra.mxu0 0.0
    %455 = vmatprep.subr.mxu0 0.0
    %456 = vmatpush1.xpose.msra.mxu0 0.0
    %457 = vmatprep.subr.mxu0 0.0
    %458 = vmatpush1.xpose.msra.mxu0 0.0
    %459 = vmatprep.subr.mxu0 0.0
    %460 = vmatpush1.xpose.msra.mxu0 0.0
    %461 = vmatprep.subr.mxu0 0.0
    %462 = vmatpush1.xpose.msra.mxu0 0.0
    %463 = vmatprep.subr.mxu0 0.0
    %464 = vmatpush1.xpose.msra.mxu0 0.0
    %465 = vmatprep.subr.mxu0 0.0
    %466 = vmatpush1.xpose.msra.mxu0 0.0
    %467 = vmatprep.subr.mxu0 0.0
    %468 = vmatpush1.xpose.msra.mxu0 0.0
    %469 = vmatprep.subr.mxu0 0.0
    %470 = vmatpush1.xpose.msra.mxu0 0.0
    %471 = vmatprep.subr.mxu0 0.0
    %472 = vmatpush1.xpose.msra.mxu0 0.0
    %473 = vmatprep.subr.mxu0 0.0
    %474 = vmatpush1.xpose.msra.mxu0 0.0
    %475 = vmatprep.subr.mxu0 0.0
    %476 = vmatpush1.xpose.msra.mxu0 0.0
    %477 = vmatprep.subr.mxu0 0.0
    %478 = vmatpush1.xpose.msra.mxu0 0.0
    %479 = vmatprep.subr.mxu0 0.0
    %480 = vmatpush1.xpose.msra.mxu0 0.0
    %481 = vmatprep.mubr.f32.mxu0 0.0
    %482 = vmatmul.mubr.f32.gmra.mrb[0].mxu0 %v97
    %v483 = vpop.f32.mrb[0].mxu0
    %v484 = vadd.f32 0.0, %v483
    %v485 = vpop.f32.mrb[0].mxu0
    %486 = vmatprep.mubr.f32.mxu0 0.0
    %487 = vmatmul.mubr.f32.gmra.mrb[0].mxu0 %v100
    %v488 = vpop.f32.mrb[0].mxu0
    %v489 = vadd.f32 0.0, %v488
    %v490 = vpop.f32.mrb[0].mxu0
    %491 = vdwg.mxu0
    %492 = vmatprep.subr.mxu0 0.0
    %493 = vmatpush1.xpose.msra.mxu0 %v415
    %494 = vmatprep.subr.mxu0 0.0
    %495 = vmatpush1.xpose.msra.mxu0 0.0
    %496 = vmatprep.subr.mxu0 0.0
    %497 = vmatpush1.xpose.msra.mxu0 0.0
    %498 = vmatprep.subr.mxu0 0.0
    %499 = vmatpush1.xpose.msra.mxu0 0.0
    %500 = vmatprep.subr.mxu0 0.0
    %501 = vmatpush1.xpose.msra.mxu0 0.0
    %502 = vmatprep.subr.mxu0 0.0
    %503 = vmatpush1.xpose.msra.mxu0 0.0
    %504 = vmatprep.subr.mxu0 0.0
    %505 = vmatpush1.xpose.msra.mxu0 0.0
    %506 = vmatprep.subr.mxu0 0.0
    %507 = vmatpush1.xpose.msra.mxu0 0.0
    %508 = vmatprep.subr.mxu0 0.0
    %509 = vmatpush1.xpose.msra.mxu0 0.0
    %510 = vmatprep.subr.mxu0 0.0
    %511 = vmatpush1.xpose.msra.mxu0 0.0
    %512 = vmatprep.subr.mxu0 0.0
    %513 = vmatpush1.xpose.msra.mxu0 0.0
    %514 = vmatprep.subr.mxu0 0.0
    %515 = vmatpush1.xpose.msra.mxu0 0.0
    %516 = vmatprep.subr.mxu0 0.0
    %517 = vmatpush1.xpose.msra.mxu0 0.0
    %518 = vmatprep.subr.mxu0 0.0
    %519 = vmatpush1.xpose.msra.mxu0 0.0
    %520 = vmatprep.subr.mxu0 0.0
    %521 = vmatpush1.xpose.msra.mxu0 0.0
    %522 = vmatprep.subr.mxu0 0.0
    %523 = vmatpush1.xpose.msra.mxu0 0.0
    %524 = vmatprep.subr.mxu0 0.0
    %525 = vmatpush1.xpose.msra.mxu0 0.0
    %526 = vmatprep.subr.mxu0 0.0
    %527 = vmatpush1.xpose.msra.mxu0 0.0
    %528 = vmatprep.subr.mxu0 0.0
    %529 = vmatpush1.xpose.msra.mxu0 0.0
    %530 = vmatprep.subr.mxu0 0.0
    %531 = vmatpush1.xpose.msra.mxu0 0.0
    %532 = vmatprep.subr.mxu0 0.0
    %533 = vmatpush1.xpose.msra.mxu0 0.0
    %534 = vmatprep.subr.mxu0 0.0
    %535 = vmatpush1.xpose.msra.mxu0 0.0
    %536 = vmatprep.subr.mxu0 0.0
    %537 = vmatpush1.xpose.msra.mxu0 0.0
    %538 = vmatprep.subr.mxu0 0.0
    %539 = vmatpush1.xpose.msra.mxu0 0.0
    %540 = vmatprep.subr.mxu0 0.0
    %541 = vmatpush1.xpose.msra.mxu0 0.0
    %542 = vmatprep.subr.mxu0 0.0
    %543 = vmatpush1.xpose.msra.mxu0 0.0
    %544 = vmatprep.subr.mxu0 0.0
    %545 = vmatpush1.xpose.msra.mxu0 0.0
    %546 = vmatprep.subr.mxu0 0.0
    %547 = vmatpush1.xpose.msra.mxu0 0.0
    %548 = vmatprep.subr.mxu0 0.0
    %549 = vmatpush1.xpose.msra.mxu0 0.0
    %550 = vmatprep.subr.mxu0 0.0
    %551 = vmatpush1.xpose.msra.mxu0 0.0
    %552 = vmatprep.subr.mxu0 0.0
    %553 = vmatpush1.xpose.msra.mxu0 0.0
    %554 = vmatprep.subr.mxu0 0.0
    %555 = vmatpush1.xpose.msra.mxu0 0.0
    %556 = vmatprep.mubr.f32.mxu0 0.0
    %557 = vmatmul.mubr.f32.gmra.mrb[0].mxu0 %v181
    %v558 = vpop.f32.mrb[0].mxu0
    %v559 = vadd.f32 0.0, %v558
    %v560 = vpop.f32.mrb[0].mxu0
    %561 = vmatprep.mubr.f32.mxu0 0.0
    %562 = vmatmul.mubr.f32.gmra.mrb[0].mxu0 %v184
    %v563 = vpop.f32.mrb[0].mxu0
    %v564 = vadd.f32 0.0, %v563
    %v565 = vpop.f32.mrb[0].mxu0
    %566 = vdwg.mxu0
    %v568 = vsel %vm95, %v86, 0
    %570 = vmatprep.subr.mxu0 0.0
    %571 = vmatpush1.xpose.msra.mxu0 %v568
    %572 = vmatprep.subr.mxu0 0.0
    %573 = vmatpush1.xpose.msra.mxu0 0.0
    %574 = vmatprep.subr.mxu0 0.0
    %575 = vmatpush1.xpose.msra.mxu0 0.0
    %576 = vmatprep.subr.mxu0 0.0
    %577 = vmatpush1.xpose.msra.mxu0 0.0
    %578 = vmatprep.subr.mxu0 0.0
    %579 = vmatpush1.xpose.msra.mxu0 0.0
    %580 = vmatprep.subr.mxu0 0.0
    %581 = vmatpush1.xpose.msra.mxu0 0.0
    %582 = vmatprep.subr.mxu0 0.0
    %583 = vmatpush1.xpose.msra.mxu0 0.0
    %584 = vmatprep.subr.mxu0 0.0
    %585 = vmatpush1.xpose.msra.mxu0 0.0
    %586 = vmatprep.subr.mxu0 0.0
    %587 = vmatpush1.xpose.msra.mxu0 0.0
    %588 = vmatprep.subr.mxu0 0.0
    %589 = vmatpush1.xpose.msra.mxu0 0.0
    %590 = vmatprep.subr.mxu0 0.0
    %591 = vmatpush1.xpose.msra.mxu0 0.0
    %592 = vmatprep.subr.mxu0 0.0
    %593 = vmatpush1.xpose.msra.mxu0 0.0
    %594 = vmatprep.subr.mxu0 0.0
    %595 = vmatpush1.xpose.msra.mxu0 0.0
    %596 = vmatprep.subr.mxu0 0.0
    %597 = vmatpush1.xpose.msra.mxu0 0.0
    %598 = vmatprep.subr.mxu0 0.0
    %599 = vmatpush1.xpose.msra.mxu0 0.0
    %600 = vmatprep.subr.mxu0 0.0
    %601 = vmatpush1.xpose.msra.mxu0 0.0
    %602 = vmatprep.subr.mxu0 0.0
    %603 = vmatpush1.xpose.msra.mxu0 0.0
    %604 = vmatprep.subr.mxu0 0.0
    %605 = vmatpush1.xpose.msra.mxu0 0.0
    %606 = vmatprep.subr.mxu0 0.0
    %607 = vmatpush1.xpose.msra.mxu0 0.0
    %608 = vmatprep.subr.mxu0 0.0
    %609 = vmatpush1.xpose.msra.mxu0 0.0
    %610 = vmatprep.subr.mxu0 0.0
    %611 = vmatpush1.xpose.msra.mxu0 0.0
    %612 = vmatprep.subr.mxu0 0.0
    %613 = vmatpush1.xpose.msra.mxu0 0.0
    %614 = vmatprep.subr.mxu0 0.0
    %615 = vmatpush1.xpose.msra.mxu0 0.0
    %616 = vmatprep.subr.mxu0 0.0
    %617 = vmatpush1.xpose.msra.mxu0 0.0
    %618 = vmatprep.subr.mxu0 0.0
    %619 = vmatpush1.xpose.msra.mxu0 0.0
    %620 = vmatprep.subr.mxu0 0.0
    %621 = vmatpush1.xpose.msra.mxu0 0.0
    %622 = vmatprep.subr.mxu0 0.0
    %623 = vmatpush1.xpose.msra.mxu0 0.0
    %624 = vmatprep.subr.mxu0 0.0
    %625 = vmatpush1.xpose.msra.mxu0 0.0
    %626 = vmatprep.subr.mxu0 0.0
    %627 = vmatpush1.xpose.msra.mxu0 0.0
    %628 = vmatprep.subr.mxu0 0.0
    %629 = vmatpush1.xpose.msra.mxu0 0.0
    %630 = vmatprep.subr.mxu0 0.0
    %631 = vmatpush1.xpose.msra.mxu0 0.0
    %632 = vmatprep.subr.mxu0 0.0
    %633 = vmatpush1.xpose.msra.mxu0 0.0
    %634 = vmatprep.mubr.f32.mxu0 0.0
    %635 = vmatmul.mubr.f32.gmra.mrb[0].mxu0 %v97
    %v636 = vpop.f32.mrb[0].mxu0
    %v637 = vadd.f32 0.0, %v636
    %v638 = vpop.f32.mrb[0].mxu0
    %639 = vmatprep.mubr.f32.mxu0 0.0
    %640 = vmatmul.mubr.f32.gmra.mrb[0].mxu0 %v100
    %v641 = vpop.f32.mrb[0].mxu0
    %v642 = vadd.f32 0.0, %v641
    %v643 = vpop.f32.mrb[0].mxu0
    %644 = vdwg.mxu0
    %645 = vmatprep.subr.mxu0 0.0
    %646 = vmatpush1.xpose.msra.mxu0 %v568
    %647 = vmatprep.subr.mxu0 0.0
    %648 = vmatpush1.xpose.msra.mxu0 0.0
    %649 = vmatprep.subr.mxu0 0.0
    %650 = vmatpush1.xpose.msra.mxu0 0.0
    %651 = vmatprep.subr.mxu0 0.0
    %652 = vmatpush1.xpose.msra.mxu0 0.0
    %653 = vmatprep.subr.mxu0 0.0
    %654 = vmatpush1.xpose.msra.mxu0 0.0
    %655 = vmatprep.subr.mxu0 0.0
    %656 = vmatpush1.xpose.msra.mxu0 0.0
    %657 = vmatprep.subr.mxu0 0.0
    %658 = vmatpush1.xpose.msra.mxu0 0.0
    %659 = vmatprep.subr.mxu0 0.0
    %660 = vmatpush1.xpose.msra.mxu0 0.0
    %661 = vmatprep.subr.mxu0 0.0
    %662 = vmatpush1.xpose.msra.mxu0 0.0
    %663 = vmatprep.subr.mxu0 0.0
    %664 = vmatpush1.xpose.msra.mxu0 0.0
    %665 = vmatprep.subr.mxu0 0.0
    %666 = vmatpush1.xpose.msra.mxu0 0.0
    %667 = vmatprep.subr.mxu0 0.0
    %668 = vmatpush1.xpose.msra.mxu0 0.0
    %669 = vmatprep.subr.mxu0 0.0
    %670 = vmatpush1.xpose.msra.mxu0 0.0
    %671 = vmatprep.subr.mxu0 0.0
    %672 = vmatpush1.xpose.msra.mxu0 0.0
    %673 = vmatprep.subr.mxu0 0.0
    %674 = vmatpush1.xpose.msra.mxu0 0.0
    %675 = vmatprep.subr.mxu0 0.0
    %676 = vmatpush1.xpose.msra.mxu0 0.0
    %677 = vmatprep.subr.mxu0 0.0
    %678 = vmatpush1.xpose.msra.mxu0 0.0
    %679 = vmatprep.subr.mxu0 0.0
    %680 = vmatpush1.xpose.msra.mxu0 0.0
    %681 = vmatprep.subr.mxu0 0.0
    %682 = vmatpush1.xpose.msra.mxu0 0.0
    %683 = vmatprep.subr.mxu0 0.0
    %684 = vmatpush1.xpose.msra.mxu0 0.0
    %685 = vmatprep.subr.mxu0 0.0
    %686 = vmatpush1.xpose.msra.mxu0 0.0
    %687 = vmatprep.subr.mxu0 0.0
    %688 = vmatpush1.xpose.msra.mxu0 0.0
    %689 = vmatprep.subr.mxu0 0.0
    %690 = vmatpush1.xpose.msra.mxu0 0.0
    %691 = vmatprep.subr.mxu0 0.0
    %692 = vmatpush1.xpose.msra.mxu0 0.0
    %693 = vmatprep.subr.mxu0 0.0
    %694 = vmatpush1.xpose.msra.mxu0 0.0
    %695 = vmatprep.subr.mxu0 0.0
    %696 = vmatpush1.xpose.msra.mxu0 0.0
    %697 = vmatprep.subr.mxu0 0.0
    %698 = vmatpush1.xpose.msra.mxu0 0.0
    %699 = vmatprep.subr.mxu0 0.0
    %700 = vmatpush1.xpose.msra.mxu0 0.0
    %701 = vmatprep.subr.mxu0 0.0
    %702 = vmatpush1.xpose.msra.mxu0 0.0
    %703 = vmatprep.subr.mxu0 0.0
    %704 = vmatpush1.xpose.msra.mxu0 0.0
    %705 = vmatprep.subr.mxu0 0.0
    %706 = vmatpush1.xpose.msra.mxu0 0.0
    %707 = vmatprep.subr.mxu0 0.0
    %708 = vmatpush1.xpose.msra.mxu0 0.0
    %709 = vmatprep.mubr.f32.mxu0 0.0
    %710 = vmatmul.mubr.f32.gmra.mrb[0].mxu0 %v181
    %v711 = vpop.f32.mrb[0].mxu0
    %v712 = vadd.f32 0.0, %v711
    %v713 = vpop.f32.mrb[0].mxu0
    %714 = vmatprep.mubr.f32.mxu0 0.0
    %715 = vmatmul.mubr.f32.gmra.mrb[0].mxu0 %v184
    %v716 = vpop.f32.mrb[0].mxu0
    %v717 = vadd.f32 0.0, %v716
    %v718 = vpop.f32.mrb[0].mxu0
    %719 = vdwg.mxu0
    %v721 = vsel %vm95, %v87, 0
    %723 = vmatprep.subr.mxu0 0.0
    %724 = vmatpush1.xpose.msra.mxu0 %v721
    %725 = vmatprep.subr.mxu0 0.0
    %726 = vmatpush1.xpose.msra.mxu0 0.0
    %727 = vmatprep.subr.mxu0 0.0
    %728 = vmatpush1.xpose.msra.mxu0 0.0
    %729 = vmatprep.subr.mxu0 0.0
    %730 = vmatpush1.xpose.msra.mxu0 0.0
    %731 = vmatprep.subr.mxu0 0.0
    %732 = vmatpush1.xpose.msra.mxu0 0.0
    %733 = vmatprep.subr.mxu0 0.0
    %734 = vmatpush1.xpose.msra.mxu0 0.0
    %735 = vmatprep.subr.mxu0 0.0
    %736 = vmatpush1.xpose.msra.mxu0 0.0
    %737 = vmatprep.subr.mxu0 0.0
    %738 = vmatpush1.xpose.msra.mxu0 0.0
    %739 = vmatprep.subr.mxu0 0.0
    %740 = vmatpush1.xpose.msra.mxu0 0.0
    %741 = vmatprep.subr.mxu0 0.0
    %742 = vmatpush1.xpose.msra.mxu0 0.0
    %743 = vmatprep.subr.mxu0 0.0
    %744 = vmatpush1.xpose.msra.mxu0 0.0
    %745 = vmatprep.subr.mxu0 0.0
    %746 = vmatpush1.xpose.msra.mxu0 0.0
    %747 = vmatprep.subr.mxu0 0.0
    %748 = vmatpush1.xpose.msra.mxu0 0.0
    %749 = vmatprep.subr.mxu0 0.0
    %750 = vmatpush1.xpose.msra.mxu0 0.0
    %751 = vmatprep.subr.mxu0 0.0
    %752 = vmatpush1.xpose.msra.mxu0 0.0
    %753 = vmatprep.subr.mxu0 0.0
    %754 = vmatpush1.xpose.msra.mxu0 0.0
    %755 = vmatprep.subr.mxu0 0.0
    %756 = vmatpush1.xpose.msra.mxu0 0.0
    %757 = vmatprep.subr.mxu0 0.0
    %758 = vmatpush1.xpose.msra.mxu0 0.0
    %759 = vmatprep.subr.mxu0 0.0
    %760 = vmatpush1.xpose.msra.mxu0 0.0
    %761 = vmatprep.subr.mxu0 0.0
    %762 = vmatpush1.xpose.msra.mxu0 0.0
    %763 = vmatprep.subr.mxu0 0.0
    %764 = vmatpush1.xpose.msra.mxu0 0.0
    %765 = vmatprep.subr.mxu0 0.0
    %766 = vmatpush1.xpose.msra.mxu0 0.0
    %767 = vmatprep.subr.mxu0 0.0
    %768 = vmatpush1.xpose.msra.mxu0 0.0
    %769 = vmatprep.subr.mxu0 0.0
    %770 = vmatpush1.xpose.msra.mxu0 0.0
    %771 = vmatprep.subr.mxu0 0.0
    %772 = vmatpush1.xpose.msra.mxu0 0.0
    %773 = vmatprep.subr.mxu0 0.0
    %774 = vmatpush1.xpose.msra.mxu0 0.0
    %775 = vmatprep.subr.mxu0 0.0
    %776 = vmatpush1.xpose.msra.mxu0 0.0
    %777 = vmatprep.subr.mxu0 0.0
    %778 = vmatpush1.xpose.msra.mxu0 0.0
    %779 = vmatprep.subr.mxu0 0.0
    %780 = vmatpush1.xpose.msra.mxu0 0.0
    %781 = vmatprep.subr.mxu0 0.0
    %782 = vmatpush1.xpose.msra.mxu0 0.0
    %783 = vmatprep.subr.mxu0 0.0
    %784 = vmatpush1.xpose.msra.mxu0 0.0
    %785 = vmatprep.subr.mxu0 0.0
    %786 = vmatpush1.xpose.msra.mxu0 0.0
    %787 = vmatprep.mubr.f32.mxu0 0.0
    %788 = vmatmul.mubr.f32.gmra.mrb[0].mxu0 %v97
    %v789 = vpop.f32.mrb[0].mxu0
    %v790 = vadd.f32 0.0, %v789
    %v791 = vpop.f32.mrb[0].mxu0
    %792 = vmatprep.mubr.f32.mxu0 0.0
    %793 = vmatmul.mubr.f32.gmra.mrb[0].mxu0 %v100
    %v794 = vpop.f32.mrb[0].mxu0
    %v795 = vadd.f32 0.0, %v794
    %v796 = vpop.f32.mrb[0].mxu0
    %797 = vdwg.mxu0
    %798 = vmatprep.subr.mxu0 0.0
    %799 = vmatpush1.xpose.msra.mxu0 %v721
    %800 = vmatprep.subr.mxu0 0.0
    %801 = vmatpush1.xpose.msra.mxu0 0.0
    %802 = vmatprep.subr.mxu0 0.0
    %803 = vmatpush1.xpose.msra.mxu0 0.0
    %804 = vmatprep.subr.mxu0 0.0
    %805 = vmatpush1.xpose.msra.mxu0 0.0
    %806 = vmatprep.subr.mxu0 0.0
    %807 = vmatpush1.xpose.msra.mxu0 0.0
    %808 = vmatprep.subr.mxu0 0.0
    %809 = vmatpush1.xpose.msra.mxu0 0.0
    %810 = vmatprep.subr.mxu0 0.0
    %811 = vmatpush1.xpose.msra.mxu0 0.0
    %812 = vmatprep.subr.mxu0 0.0
    %813 = vmatpush1.xpose.msra.mxu0 0.0
    %814 = vmatprep.subr.mxu0 0.0
    %815 = vmatpush1.xpose.msra.mxu0 0.0
    %816 = vmatprep.subr.mxu0 0.0
    %817 = vmatpush1.xpose.msra.mxu0 0.0
    %818 = vmatprep.subr.mxu0 0.0
    %819 = vmatpush1.xpose.msra.mxu0 0.0
    %820 = vmatprep.subr.mxu0 0.0
    %821 = vmatpush1.xpose.msra.mxu0 0.0
    %822 = vmatprep.subr.mxu0 0.0
    %823 = vmatpush1.xpose.msra.mxu0 0.0
    %824 = vmatprep.subr.mxu0 0.0
    %825 = vmatpush1.xpose.msra.mxu0 0.0
    %826 = vmatprep.subr.mxu0 0.0
    %827 = vmatpush1.xpose.msra.mxu0 0.0
    %828 = vmatprep.subr.mxu0 0.0
    %829 = vmatpush1.xpose.msra.mxu0 0.0
    %830 = vmatprep.subr.mxu0 0.0
    %831 = vmatpush1.xpose.msra.mxu0 0.0
    %832 = vmatprep.subr.mxu0 0.0
    %833 = vmatpush1.xpose.msra.mxu0 0.0
    %834 = vmatprep.subr.mxu0 0.0
    %835 = vmatpush1.xpose.msra.mxu0 0.0
    %836 = vmatprep.subr.mxu0 0.0
    %837 = vmatpush1.xpose.msra.mxu0 0.0
    %838 = vmatprep.subr.mxu0 0.0
    %839 = vmatpush1.xpose.msra.mxu0 0.0
    %840 = vmatprep.subr.mxu0 0.0
    %841 = vmatpush1.xpose.msra.mxu0 0.0
    %842 = vmatprep.subr.mxu0 0.0
    %843 = vmatpush1.xpose.msra.mxu0 0.0
    %844 = vmatprep.subr.mxu0 0.0
    %845 = vmatpush1.xpose.msra.mxu0 0.0
    %846 = vmatprep.subr.mxu0 0.0
    %847 = vmatpush1.xpose.msra.mxu0 0.0
    %848 = vmatprep.subr.mxu0 0.0
    %849 = vmatpush1.xpose.msra.mxu0 0.0
    %850 = vmatprep.subr.mxu0 0.0
    %851 = vmatpush1.xpose.msra.mxu0 0.0
    %852 = vmatprep.subr.mxu0 0.0
    %853 = vmatpush1.xpose.msra.mxu0 0.0
    %854 = vmatprep.subr.mxu0 0.0
    %855 = vmatpush1.xpose.msra.mxu0 0.0
    %856 = vmatprep.subr.mxu0 0.0
    %857 = vmatpush1.xpose.msra.mxu0 0.0
    %858 = vmatprep.subr.mxu0 0.0
    %859 = vmatpush1.xpose.msra.mxu0 0.0
    %860 = vmatprep.subr.mxu0 0.0
    %861 = vmatpush1.xpose.msra.mxu0 0.0
    %862 = vmatprep.mubr.f32.mxu0 0.0
    %863 = vmatmul.mubr.f32.gmra.mrb[0].mxu0 %v181
    %v864 = vpop.f32.mrb[0].mxu0
    %v865 = vadd.f32 0.0, %v864
    %v866 = vpop.f32.mrb[0].mxu0
    %867 = vmatprep.mubr.f32.mxu0 0.0
    %868 = vmatmul.mubr.f32.gmra.mrb[0].mxu0 %v184
    %v869 = vpop.f32.mrb[0].mxu0
    %v870 = vadd.f32 0.0, %v869
    %v871 = vpop.f32.mrb[0].mxu0
    %872 = vdwg.mxu0
    %v874 = vsel %vm95, %v88, 0
    %876 = vmatprep.subr.mxu0 0.0
    %877 = vmatpush1.xpose.msra.mxu0 %v874
    %878 = vmatprep.subr.mxu0 0.0
    %879 = vmatpush1.xpose.msra.mxu0 0.0
    %880 = vmatprep.subr.mxu0 0.0
    %881 = vmatpush1.xpose.msra.mxu0 0.0
    %882 = vmatprep.subr.mxu0 0.0
    %883 = vmatpush1.xpose.msra.mxu0 0.0
    %884 = vmatprep.subr.mxu0 0.0
    %885 = vmatpush1.xpose.msra.mxu0 0.0
    %886 = vmatprep.subr.mxu0 0.0
    %887 = vmatpush1.xpose.msra.mxu0 0.0
    %888 = vmatprep.subr.mxu0 0.0
    %889 = vmatpush1.xpose.msra.mxu0 0.0
    %890 = vmatprep.subr.mxu0 0.0
    %891 = vmatpush1.xpose.msra.mxu0 0.0
    %892 = vmatprep.subr.mxu0 0.0
    %893 = vmatpush1.xpose.msra.mxu0 0.0
    %894 = vmatprep.subr.mxu0 0.0
    %895 = vmatpush1.xpose.msra.mxu0 0.0
    %896 = vmatprep.subr.mxu0 0.0
    %897 = vmatpush1.xpose.msra.mxu0 0.0
    %898 = vmatprep.subr.mxu0 0.0
    %899 = vmatpush1.xpose.msra.mxu0 0.0
    %900 = vmatprep.subr.mxu0 0.0
    %901 = vmatpush1.xpose.msra.mxu0 0.0
    %902 = vmatprep.subr.mxu0 0.0
    %903 = vmatpush1.xpose.msra.mxu0 0.0
    %904 = vmatprep.subr.mxu0 0.0
    %905 = vmatpush1.xpose.msra.mxu0 0.0
    %906 = vmatprep.subr.mxu0 0.0
    %907 = vmatpush1.xpose.msra.mxu0 0.0
    %908 = vmatprep.subr.mxu0 0.0
    %909 = vmatpush1.xpose.msra.mxu0 0.0
    %910 = vmatprep.subr.mxu0 0.0
    %911 = vmatpush1.xpose.msra.mxu0 0.0
    %912 = vmatprep.subr.mxu0 0.0
    %913 = vmatpush1.xpose.msra.mxu0 0.0
    %914 = vmatprep.subr.mxu0 0.0
    %915 = vmatpush1.xpose.msra.mxu0 0.0
    %916 = vmatprep.subr.mxu0 0.0
    %917 = vmatpush1.xpose.msra.mxu0 0.0
    %918 = vmatprep.subr.mxu0 0.0
    %919 = vmatpush1.xpose.msra.mxu0 0.0
    %920 = vmatprep.subr.mxu0 0.0
    %921 = vmatpush1.xpose.msra.mxu0 0.0
    %922 = vmatprep.subr.mxu0 0.0
    %923 = vmatpush1.xpose.msra.mxu0 0.0
    %924 = vmatprep.subr.mxu0 0.0
    %925 = vmatpush1.xpose.msra.mxu0 0.0
    %926 = vmatprep.subr.mxu0 0.0
    %927 = vmatpush1.xpose.msra.mxu0 0.0
    %928 = vmatprep.subr.mxu0 0.0
    %929 = vmatpush1.xpose.msra.mxu0 0.0
    %930 = vmatprep.subr.mxu0 0.0
    %931 = vmatpush1.xpose.msra.mxu0 0.0
    %932 = vmatprep.subr.mxu0 0.0
    %933 = vmatpush1.xpose.msra.mxu0 0.0
    %934 = vmatprep.subr.mxu0 0.0
    %935 = vmatpush1.xpose.msra.mxu0 0.0
    %936 = vmatprep.subr.mxu0 0.0
    %937 = vmatpush1.xpose.msra.mxu0 0.0
    %938 = vmatprep.subr.mxu0 0.0
    %939 = vmatpush1.xpose.msra.mxu0 0.0
    %940 = vmatprep.mubr.f32.mxu0 0.0
    %941 = vmatmul.mubr.f32.gmra.mrb[0].mxu0 %v97
    %v942 = vpop.f32.mrb[0].mxu0
    %v943 = vadd.f32 0.0, %v942
    %v944 = vpop.f32.mrb[0].mxu0
    %945 = vmatprep.mubr.f32.mxu0 0.0
    %946 = vmatmul.mubr.f32.gmra.mrb[0].mxu0 %v100
    %v947 = vpop.f32.mrb[0].mxu0
    %v948 = vadd.f32 0.0, %v947
    %v949 = vpop.f32.mrb[0].mxu0
    %950 = vdwg.mxu0
    %951 = vmatprep.subr.mxu0 0.0
    %952 = vmatpush1.xpose.msra.mxu0 %v874
    %953 = vmatprep.subr.mxu0 0.0
    %954 = vmatpush1.xpose.msra.mxu0 0.0
    %955 = vmatprep.subr.mxu0 0.0
    %956 = vmatpush1.xpose.msra.mxu0 0.0
    %957 = vmatprep.subr.mxu0 0.0
    %958 = vmatpush1.xpose.msra.mxu0 0.0
    %959 = vmatprep.subr.mxu0 0.0
    %960 = vmatpush1.xpose.msra.mxu0 0.0
    %961 = vmatprep.subr.mxu0 0.0
    %962 = vmatpush1.xpose.msra.mxu0 0.0
    %963 = vmatprep.subr.mxu0 0.0
    %964 = vmatpush1.xpose.msra.mxu0 0.0
    %965 = vmatprep.subr.mxu0 0.0
    %966 = vmatpush1.xpose.msra.mxu0 0.0
    %967 = vmatprep.subr.mxu0 0.0
    %968 = vmatpush1.xpose.msra.mxu0 0.0
    %969 = vmatprep.subr.mxu0 0.0
    %970 = vmatpush1.xpose.msra.mxu0 0.0
    %971 = vmatprep.subr.mxu0 0.0
    %972 = vmatpush1.xpose.msra.mxu0 0.0
    %973 = vmatprep.subr.mxu0 0.0
    %974 = vmatpush1.xpose.msra.mxu0 0.0
    %975 = vmatprep.subr.mxu0 0.0
    %976 = vmatpush1.xpose.msra.mxu0 0.0
    %977 = vmatprep.subr.mxu0 0.0
    %978 = vmatpush1.xpose.msra.mxu0 0.0
    %979 = vmatprep.subr.mxu0 0.0
    %980 = vmatpush1.xpose.msra.mxu0 0.0
    %981 = vmatprep.subr.mxu0 0.0
    %982 = vmatpush1.xpose.msra.mxu0 0.0
    %983 = vmatprep.subr.mxu0 0.0
    %984 = vmatpush1.xpose.msra.mxu0 0.0
    %985 = vmatprep.subr.mxu0 0.0
    %986 = vmatpush1.xpose.msra.mxu0 0.0
    %987 = vmatprep.subr.mxu0 0.0
    %988 = vmatpush1.xpose.msra.mxu0 0.0
    %989 = vmatprep.subr.mxu0 0.0
    %990 = vmatpush1.xpose.msra.mxu0 0.0
    %991 = vmatprep.subr.mxu0 0.0
    %992 = vmatpush1.xpose.msra.mxu0 0.0
    %993 = vmatprep.subr.mxu0 0.0
    %994 = vmatpush1.xpose.msra.mxu0 0.0
    %995 = vmatprep.subr.mxu0 0.0
    %996 = vmatpush1.xpose.msra.mxu0 0.0
    %997 = vmatprep.subr.mxu0 0.0
    %998 = vmatpush1.xpose.msra.mxu0 0.0
    %999 = vmatprep.subr.mxu0 0.0
    %1000 = vmatpush1.xpose.msra.mxu0 0.0
    %1001 = vmatprep.subr.mxu0 0.0
    %1002 = vmatpush1.xpose.msra.mxu0 0.0
    %1003 = vmatprep.subr.mxu0 0.0
    %1004 = vmatpush1.xpose.msra.mxu0 0.0
    %1005 = vmatprep.subr.mxu0 0.0
    %1006 = vmatpush1.xpose.msra.mxu0 0.0
    %1007 = vmatprep.subr.mxu0 0.0
    %1008 = vmatpush1.xpose.msra.mxu0 0.0
    %1009 = vmatprep.subr.mxu0 0.0
    %1010 = vmatpush1.xpose.msra.mxu0 0.0
    %1011 = vmatprep.subr.mxu0 0.0
    %1012 = vmatpush1.xpose.msra.mxu0 0.0
    %1013 = vmatprep.subr.mxu0 0.0
    %1014 = vmatpush1.xpose.msra.mxu0 0.0
    %1015 = vmatprep.mubr.f32.mxu0 0.0
    %1016 = vmatmul.mubr.f32.gmra.mrb[0].mxu0 %v181
    %v1017 = vpop.f32.mrb[0].mxu0
    %v1018 = vadd.f32 0.0, %v1017
    %v1019 = vpop.f32.mrb[0].mxu0
    %1020 = vmatprep.mubr.f32.mxu0 0.0
    %1021 = vmatmul.mubr.f32.gmra.mrb[0].mxu0 %v184
    %v1022 = vpop.f32.mrb[0].mxu0
    %v1023 = vadd.f32 0.0, %v1022
    %v1024 = vpop.f32.mrb[0].mxu0
    %1025 = vdwg.mxu0
    %v1027 = vsel %vm95, %v89, 0
    %1029 = vmatprep.subr.mxu0 0.0
    %1030 = vmatpush1.xpose.msra.mxu0 %v1027
    %1031 = vmatprep.subr.mxu0 0.0
    %1032 = vmatpush1.xpose.msra.mxu0 0.0
    %1033 = vmatprep.subr.mxu0 0.0
    %1034 = vmatpush1.xpose.msra.mxu0 0.0
    %1035 = vmatprep.subr.mxu0 0.0
    %1036 = vmatpush1.xpose.msra.mxu0 0.0
    %1037 = vmatprep.subr.mxu0 0.0
    %1038 = vmatpush1.xpose.msra.mxu0 0.0
    %1039 = vmatprep.subr.mxu0 0.0
    %1040 = vmatpush1.xpose.msra.mxu0 0.0
    %1041 = vmatprep.subr.mxu0 0.0
    %1042 = vmatpush1.xpose.msra.mxu0 0.0
    %1043 = vmatprep.subr.mxu0 0.0
    %1044 = vmatpush1.xpose.msra.mxu0 0.0
    %1045 = vmatprep.subr.mxu0 0.0
    %1046 = vmatpush1.xpose.msra.mxu0 0.0
    %1047 = vmatprep.subr.mxu0 0.0
    %1048 = vmatpush1.xpose.msra.mxu0 0.0
    %1049 = vmatprep.subr.mxu0 0.0
    %1050 = vmatpush1.xpose.msra.mxu0 0.0
    %1051 = vmatprep.subr.mxu0 0.0
    %1052 = vmatpush1.xpose.msra.mxu0 0.0
    %1053 = vmatprep.subr.mxu0 0.0
    %1054 = vmatpush1.xpose.msra.mxu0 0.0
    %1055 = vmatprep.subr.mxu0 0.0
    %1056 = vmatpush1.xpose.msra.mxu0 0.0
    %1057 = vmatprep.subr.mxu0 0.0
    %1058 = vmatpush1.xpose.msra.mxu0 0.0
    %1059 = vmatprep.subr.mxu0 0.0
    %1060 = vmatpush1.xpose.msra.mxu0 0.0
    %1061 = vmatprep.subr.mxu0 0.0
    %1062 = vmatpush1.xpose.msra.mxu0 0.0
    %1063 = vmatprep.subr.mxu0 0.0
    %1064 = vmatpush1.xpose.msra.mxu0 0.0
    %1065 = vmatprep.subr.mxu0 0.0
    %1066 = vmatpush1.xpose.msra.mxu0 0.0
    %1067 = vmatprep.subr.mxu0 0.0
    %1068 = vmatpush1.xpose.msra.mxu0 0.0
    %1069 = vmatprep.subr.mxu0 0.0
    %1070 = vmatpush1.xpose.msra.mxu0 0.0
    %1071 = vmatprep.subr.mxu0 0.0
    %1072 = vmatpush1.xpose.msra.mxu0 0.0
    %1073 = vmatprep.subr.mxu0 0.0
    %1074 = vmatpush1.xpose.msra.mxu0 0.0
    %1075 = vmatprep.subr.mxu0 0.0
    %1076 = vmatpush1.xpose.msra.mxu0 0.0
    %1077 = vmatprep.subr.mxu0 0.0
    %1078 = vmatpush1.xpose.msra.mxu0 0.0
    %1079 = vmatprep.subr.mxu0 0.0
    %1080 = vmatpush1.xpose.msra.mxu0 0.0
    %1081 = vmatprep.subr.mxu0 0.0
    %1082 = vmatpush1.xpose.msra.mxu0 0.0
    %1083 = vmatprep.subr.mxu0 0.0
    %1084 = vmatpush1.xpose.msra.mxu0 0.0
    %1085 = vmatprep.subr.mxu0 0.0
    %1086 = vmatpush1.xpose.msra.mxu0 0.0
    %1087 = vmatprep.subr.mxu0 0.0
    %1088 = vmatpush1.xpose.msra.mxu0 0.0
    %1089 = vmatprep.subr.mxu0 0.0
    %1090 = vmatpush1.xpose.msra.mxu0 0.0
    %1091 = vmatprep.subr.mxu0 0.0
    %1092 = vmatpush1.xpose.msra.mxu0 0.0
    %1093 = vmatprep.mubr.f32.mxu0 0.0
    %1094 = vmatmul.mubr.f32.gmra.mrb[0].mxu0 %v97
    %v1095 = vpop.f32.mrb[0].mxu0
    %v1096 = vadd.f32 0.0, %v1095
    %v1097 = vpop.f32.mrb[0].mxu0
    %1098 = vmatprep.mubr.f32.mxu0 0.0
    %1099 = vmatmul.mubr.f32.gmra.mrb[0].mxu0 %v100
    %v1100 = vpop.f32.mrb[0].mxu0
    %v1101 = vadd.f32 0.0, %v1100
    %v1102 = vpop.f32.mrb[0].mxu0
    %1103 = vdwg.mxu0
    %1104 = vmatprep.subr.mxu0 0.0
    %1105 = vmatpush1.xpose.msra.mxu0 %v1027
    %1106 = vmatprep.subr.mxu0 0.0
    %1107 = vmatpush1.xpose.msra.mxu0 0.0
    %1108 = vmatprep.subr.mxu0 0.0
    %1109 = vmatpush1.xpose.msra.mxu0 0.0
    %1110 = vmatprep.subr.mxu0 0.0
    %1111 = vmatpush1.xpose.msra.mxu0 0.0
    %1112 = vmatprep.subr.mxu0 0.0
    %1113 = vmatpush1.xpose.msra.mxu0 0.0
    %1114 = vmatprep.subr.mxu0 0.0
    %1115 = vmatpush1.xpose.msra.mxu0 0.0
    %1116 = vmatprep.subr.mxu0 0.0
    %1117 = vmatpush1.xpose.msra.mxu0 0.0
    %1118 = vmatprep.subr.mxu0 0.0
    %1119 = vmatpush1.xpose.msra.mxu0 0.0
    %1120 = vmatprep.subr.mxu0 0.0
    %1121 = vmatpush1.xpose.msra.mxu0 0.0
    %1122 = vmatprep.subr.mxu0 0.0
    %1123 = vmatpush1.xpose.msra.mxu0 0.0
    %1124 = vmatprep.subr.mxu0 0.0
    %1125 = vmatpush1.xpose.msra.mxu0 0.0
    %1126 = vmatprep.subr.mxu0 0.0
    %1127 = vmatpush1.xpose.msra.mxu0 0.0
    %1128 = vmatprep.subr.mxu0 0.0
    %1129 = vmatpush1.xpose.msra.mxu0 0.0
    %1130 = vmatprep.subr.mxu0 0.0
    %1131 = vmatpush1.xpose.msra.mxu0 0.0
    %1132 = vmatprep.subr.mxu0 0.0
    %1133 = vmatpush1.xpose.msra.mxu0 0.0
    %1134 = vmatprep.subr.mxu0 0.0
    %1135 = vmatpush1.xpose.msra.mxu0 0.0
    %1136 = vmatprep.subr.mxu0 0.0
    %1137 = vmatpush1.xpose.msra.mxu0 0.0
    %1138 = vmatprep.subr.mxu0 0.0
    %1139 = vmatpush1.xpose.msra.mxu0 0.0
    %1140 = vmatprep.subr.mxu0 0.0
    %1141 = vmatpush1.xpose.msra.mxu0 0.0
    %1142 = vmatprep.subr.mxu0 0.0
    %1143 = vmatpush1.xpose.msra.mxu0 0.0
    %1144 = vmatprep.subr.mxu0 0.0
    %1145 = vmatpush1.xpose.msra.mxu0 0.0
    %1146 = vmatprep.subr.mxu0 0.0
    %1147 = vmatpush1.xpose.msra.mxu0 0.0
    %1148 = vmatprep.subr.mxu0 0.0
    %1149 = vmatpush1.xpose.msra.mxu0 0.0
    %1150 = vmatprep.subr.mxu0 0.0
    %1151 = vmatpush1.xpose.msra.mxu0 0.0
    %1152 = vmatprep.subr.mxu0 0.0
    %1153 = vmatpush1.xpose.msra.mxu0 0.0
    %1154 = vmatprep.subr.mxu0 0.0
    %1155 = vmatpush1.xpose.msra.mxu0 0.0
    %1156 = vmatprep.subr.mxu0 0.0
    %1157 = vmatpush1.xpose.msra.mxu0 0.0
    %1158 = vmatprep.subr.mxu0 0.0
    %1159 = vmatpush1.xpose.msra.mxu0 0.0
    %1160 = vmatprep.subr.mxu0 0.0
    %1161 = vmatpush1.xpose.msra.mxu0 0.0
    %1162 = vmatprep.subr.mxu0 0.0
    %1163 = vmatpush1.xpose.msra.mxu0 0.0
    %1164 = vmatprep.subr.mxu0 0.0
    %1165 = vmatpush1.xpose.msra.mxu0 0.0
    %1166 = vmatprep.subr.mxu0 0.0
    %1167 = vmatpush1.xpose.msra.mxu0 0.0
    %1168 = vmatprep.mubr.f32.mxu0 0.0
    %1169 = vmatmul.mubr.f32.gmra.mrb[0].mxu0 %v181
    %v1170 = vpop.f32.mrb[0].mxu0
    %v1171 = vadd.f32 0.0, %v1170
    %v1172 = vpop.f32.mrb[0].mxu0
    %1173 = vmatprep.mubr.f32.mxu0 0.0
    %1174 = vmatmul.mubr.f32.gmra.mrb[0].mxu0 %v184
    %v1175 = vpop.f32.mrb[0].mxu0
    %v1176 = vadd.f32 0.0, %v1175
    %v1177 = vpop.f32.mrb[0].mxu0
    %1178 = vdwg.mxu0
    %v1180 = vsel %vm95, %v90, 0
    %1182 = vmatprep.subr.mxu0 0.0
    %1183 = vmatpush1.xpose.msra.mxu0 %v1180
    %1184 = vmatprep.subr.mxu0 0.0
    %1185 = vmatpush1.xpose.msra.mxu0 0.0
    %1186 = vmatprep.subr.mxu0 0.0
    %1187 = vmatpush1.xpose.msra.mxu0 0.0
    %1188 = vmatprep.subr.mxu0 0.0
    %1189 = vmatpush1.xpose.msra.mxu0 0.0
    %1190 = vmatprep.subr.mxu0 0.0
    %1191 = vmatpush1.xpose.msra.mxu0 0.0
    %1192 = vmatprep.subr.mxu0 0.0
    %1193 = vmatpush1.xpose.msra.mxu0 0.0
    %1194 = vmatprep.subr.mxu0 0.0
    %1195 = vmatpush1.xpose.msra.mxu0 0.0
    %1196 = vmatprep.subr.mxu0 0.0
    %1197 = vmatpush1.xpose.msra.mxu0 0.0
    %1198 = vmatprep.subr.mxu0 0.0
    %1199 = vmatpush1.xpose.msra.mxu0 0.0
    %1200 = vmatprep.subr.mxu0 0.0
    %1201 = vmatpush1.xpose.msra.mxu0 0.0
    %1202 = vmatprep.subr.mxu0 0.0
    %1203 = vmatpush1.xpose.msra.mxu0 0.0
    %1204 = vmatprep.subr.mxu0 0.0
    %1205 = vmatpush1.xpose.msra.mxu0 0.0
    %1206 = vmatprep.subr.mxu0 0.0
    %1207 = vmatpush1.xpose.msra.mxu0 0.0
    %1208 = vmatprep.subr.mxu0 0.0
    %1209 = vmatpush1.xpose.msra.mxu0 0.0
    %1210 = vmatprep.subr.mxu0 0.0
    %1211 = vmatpush1.xpose.msra.mxu0 0.0
    %1212 = vmatprep.subr.mxu0 0.0
    %1213 = vmatpush1.xpose.msra.mxu0 0.0
    %1214 = vmatprep.subr.mxu0 0.0
    %1215 = vmatpush1.xpose.msra.mxu0 0.0
    %1216 = vmatprep.subr.mxu0 0.0
    %1217 = vmatpush1.xpose.msra.mxu0 0.0
    %1218 = vmatprep.subr.mxu0 0.0
    %1219 = vmatpush1.xpose.msra.mxu0 0.0
    %1220 = vmatprep.subr.mxu0 0.0
    %1221 = vmatpush1.xpose.msra.mxu0 0.0
    %1222 = vmatprep.subr.mxu0 0.0
    %1223 = vmatpush1.xpose.msra.mxu0 0.0
    %1224 = vmatprep.subr.mxu0 0.0
    %1225 = vmatpush1.xpose.msra.mxu0 0.0
    %1226 = vmatprep.subr.mxu0 0.0
    %1227 = vmatpush1.xpose.msra.mxu0 0.0
    %1228 = vmatprep.subr.mxu0 0.0
    %1229 = vmatpush1.xpose.msra.mxu0 0.0
    %1230 = vmatprep.subr.mxu0 0.0
    %1231 = vmatpush1.xpose.msra.mxu0 0.0
    %1232 = vmatprep.subr.mxu0 0.0
    %1233 = vmatpush1.xpose.msra.mxu0 0.0
    %1234 = vmatprep.subr.mxu0 0.0
    %1235 = vmatpush1.xpose.msra.mxu0 0.0
    %1236 = vmatprep.subr.mxu0 0.0
    %1237 = vmatpush1.xpose.msra.mxu0 0.0
    %1238 = vmatprep.subr.mxu0 0.0
    %1239 = vmatpush1.xpose.msra.mxu0 0.0
    %1240 = vmatprep.subr.mxu0 0.0
    %1241 = vmatpush1.xpose.msra.mxu0 0.0
    %1242 = vmatprep.subr.mxu0 0.0
    %1243 = vmatpush1.xpose.msra.mxu0 0.0
    %1244 = vmatprep.subr.mxu0 0.0
    %1245 = vmatpush1.xpose.msra.mxu0 0.0
    %1246 = vmatprep.mubr.f32.mxu0 0.0
    %1247 = vmatmul.mubr.f32.gmra.mrb[0].mxu0 %v97
    %v1248 = vpop.f32.mrb[0].mxu0
    %v1249 = vadd.f32 0.0, %v1248
    %v1250 = vpop.f32.mrb[0].mxu0
    %1251 = vmatprep.mubr.f32.mxu0 0.0
    %1252 = vmatmul.mubr.f32.gmra.mrb[0].mxu0 %v100
    %v1253 = vpop.f32.mrb[0].mxu0
    %v1254 = vadd.f32 0.0, %v1253
    %v1255 = vpop.f32.mrb[0].mxu0
    %1256 = vdwg.mxu0
    %1257 = vmatprep.subr.mxu0 0.0
    %1258 = vmatpush1.xpose.msra.mxu0 %v1180
    %1259 = vmatprep.subr.mxu0 0.0
    %1260 = vmatpush1.xpose.msra.mxu0 0.0
    %1261 = vmatprep.subr.mxu0 0.0
    %1262 = vmatpush1.xpose.msra.mxu0 0.0
    %1263 = vmatprep.subr.mxu0 0.0
    %1264 = vmatpush1.xpose.msra.mxu0 0.0
    %1265 = vmatprep.subr.mxu0 0.0
    %1266 = vmatpush1.xpose.msra.mxu0 0.0
    %1267 = vmatprep.subr.mxu0 0.0
    %1268 = vmatpush1.xpose.msra.mxu0 0.0
    %1269 = vmatprep.subr.mxu0 0.0
    %1270 = vmatpush1.xpose.msra.mxu0 0.0
    %1271 = vmatprep.subr.mxu0 0.0
    %1272 = vmatpush1.xpose.msra.mxu0 0.0
    %1273 = vmatprep.subr.mxu0 0.0
    %1274 = vmatpush1.xpose.msra.mxu0 0.0
    %1275 = vmatprep.subr.mxu0 0.0
    %1276 = vmatpush1.xpose.msra.mxu0 0.0
    %1277 = vmatprep.subr.mxu0 0.0
    %1278 = vmatpush1.xpose.msra.mxu0 0.0
    %1279 = vmatprep.subr.mxu0 0.0
    %1280 = vmatpush1.xpose.msra.mxu0 0.0
    %1281 = vmatprep.subr.mxu0 0.0
    %1282 = vmatpush1.xpose.msra.mxu0 0.0
    %1283 = vmatprep.subr.mxu0 0.0
    %1284 = vmatpush1.xpose.msra.mxu0 0.0
    %1285 = vmatprep.subr.mxu0 0.0
    %1286 = vmatpush1.xpose.msra.mxu0 0.0
    %1287 = vmatprep.subr.mxu0 0.0
    %1288 = vmatpush1.xpose.msra.mxu0 0.0
    %1289 = vmatprep.subr.mxu0 0.0
    %1290 = vmatpush1.xpose.msra.mxu0 0.0
    %1291 = vmatprep.subr.mxu0 0.0
    %1292 = vmatpush1.xpose.msra.mxu0 0.0
    %1293 = vmatprep.subr.mxu0 0.0
    %1294 = vmatpush1.xpose.msra.mxu0 0.0
    %1295 = vmatprep.subr.mxu0 0.0
    %1296 = vmatpush1.xpose.msra.mxu0 0.0
    %1297 = vmatprep.subr.mxu0 0.0
    %1298 = vmatpush1.xpose.msra.mxu0 0.0
    %1299 = vmatprep.subr.mxu0 0.0
    %1300 = vmatpush1.xpose.msra.mxu0 0.0
    %1301 = vmatprep.subr.mxu0 0.0
    %1302 = vmatpush1.xpose.msra.mxu0 0.0
    %1303 = vmatprep.subr.mxu0 0.0
    %1304 = vmatpush1.xpose.msra.mxu0 0.0
    %1305 = vmatprep.subr.mxu0 0.0
    %1306 = vmatpush1.xpose.msra.mxu0 0.0
    %1307 = vmatprep.subr.mxu0 0.0
    %1308 = vmatpush1.xpose.msra.mxu0 0.0
    %1309 = vmatprep.subr.mxu0 0.0
    %1310 = vmatpush1.xpose.msra.mxu0 0.0
    %1311 = vmatprep.subr.mxu0 0.0
    %1312 = vmatpush1.xpose.msra.mxu0 0.0
    %1313 = vmatprep.subr.mxu0 0.0
    %1314 = vmatpush1.xpose.msra.mxu0 0.0
    %1315 = vmatprep.subr.mxu0 0.0
    %1316 = vmatpush1.xpose.msra.mxu0 0.0
    %1317 = vmatprep.subr.mxu0 0.0
    %1318 = vmatpush1.xpose.msra.mxu0 0.0
    %1319 = vmatprep.subr.mxu0 0.0
    %1320 = vmatpush1.xpose.msra.mxu0 0.0
    %1321 = vmatprep.mubr.f32.mxu0 0.0
    %1322 = vmatmul.mubr.f32.gmra.mrb[0].mxu0 %v181
    %v1323 = vpop.f32.mrb[0].mxu0
    %v1324 = vadd.f32 0.0, %v1323
    %v1325 = vpop.f32.mrb[0].mxu0
    %1326 = vmatprep.mubr.f32.mxu0 0.0
    %1327 = vmatmul.mubr.f32.gmra.mrb[0].mxu0 %v184
    %v1328 = vpop.f32.mrb[0].mxu0
    %v1329 = vadd.f32 0.0, %v1328
    %v1330 = vpop.f32.mrb[0].mxu0
    %1331 = vdwg.mxu0
    %v1333 = vsel %vm95, %v91, 0
    %1335 = vmatprep.subr.mxu0 0.0
    %1336 = vmatpush1.xpose.msra.mxu0 %v1333
    %1337 = vmatprep.subr.mxu0 0.0
    %1338 = vmatpush1.xpose.msra.mxu0 0.0
    %1339 = vmatprep.subr.mxu0 0.0
    %1340 = vmatpush1.xpose.msra.mxu0 0.0
    %1341 = vmatprep.subr.mxu0 0.0
    %1342 = vmatpush1.xpose.msra.mxu0 0.0
    %1343 = vmatprep.subr.mxu0 0.0
    %1344 = vmatpush1.xpose.msra.mxu0 0.0
    %1345 = vmatprep.subr.mxu0 0.0
    %1346 = vmatpush1.xpose.msra.mxu0 0.0
    %1347 = vmatprep.subr.mxu0 0.0
    %1348 = vmatpush1.xpose.msra.mxu0 0.0
    %1349 = vmatprep.subr.mxu0 0.0
    %1350 = vmatpush1.xpose.msra.mxu0 0.0
    %1351 = vmatprep.subr.mxu0 0.0
    %1352 = vmatpush1.xpose.msra.mxu0 0.0
    %1353 = vmatprep.subr.mxu0 0.0
    %1354 = vmatpush1.xpose.msra.mxu0 0.0
    %1355 = vmatprep.subr.mxu0 0.0
    %1356 = vmatpush1.xpose.msra.mxu0 0.0
    %1357 = vmatprep.subr.mxu0 0.0
    %1358 = vmatpush1.xpose.msra.mxu0 0.0
    %1359 = vmatprep.subr.mxu0 0.0
    %1360 = vmatpush1.xpose.msra.mxu0 0.0
    %1361 = vmatprep.subr.mxu0 0.0
    %1362 = vmatpush1.xpose.msra.mxu0 0.0
    %1363 = vmatprep.subr.mxu0 0.0
    %1364 = vmatpush1.xpose.msra.mxu0 0.0
    %1365 = vmatprep.subr.mxu0 0.0
    %1366 = vmatpush1.xpose.msra.mxu0 0.0
    %1367 = vmatprep.subr.mxu0 0.0
    %1368 = vmatpush1.xpose.msra.mxu0 0.0
    %1369 = vmatprep.subr.mxu0 0.0
    %1370 = vmatpush1.xpose.msra.mxu0 0.0
    %1371 = vmatprep.subr.mxu0 0.0
    %1372 = vmatpush1.xpose.msra.mxu0 0.0
    %1373 = vmatprep.subr.mxu0 0.0
    %1374 = vmatpush1.xpose.msra.mxu0 0.0
    %1375 = vmatprep.subr.mxu0 0.0
    %1376 = vmatpush1.xpose.msra.mxu0 0.0
    %1377 = vmatprep.subr.mxu0 0.0
    %1378 = vmatpush1.xpose.msra.mxu0 0.0
    %1379 = vmatprep.subr.mxu0 0.0
    %1380 = vmatpush1.xpose.msra.mxu0 0.0
    %1381 = vmatprep.subr.mxu0 0.0
    %1382 = vmatpush1.xpose.msra.mxu0 0.0
    %1383 = vmatprep.subr.mxu0 0.0
    %1384 = vmatpush1.xpose.msra.mxu0 0.0
    %1385 = vmatprep.subr.mxu0 0.0
    %1386 = vmatpush1.xpose.msra.mxu0 0.0
    %1387 = vmatprep.subr.mxu0 0.0
    %1388 = vmatpush1.xpose.msra.mxu0 0.0
    %1389 = vmatprep.subr.mxu0 0.0
    %1390 = vmatpush1.xpose.msra.mxu0 0.0
    %1391 = vmatprep.subr.mxu0 0.0
    %1392 = vmatpush1.xpose.msra.mxu0 0.0
    %1393 = vmatprep.subr.mxu0 0.0
    %1394 = vmatpush1.xpose.msra.mxu0 0.0
    %1395 = vmatprep.subr.mxu0 0.0
    %1396 = vmatpush1.xpose.msra.mxu0 0.0
    %1397 = vmatprep.subr.mxu0 0.0
    %1398 = vmatpush1.xpose.msra.mxu0 0.0
    %1399 = vmatprep.mubr.f32.mxu0 0.0
    %1400 = vmatmul.mubr.f32.gmra.mrb[0].mxu0 %v97
    %v1401 = vpop.f32.mrb[0].mxu0
    %v1402 = vadd.f32 0.0, %v1401
    %v1403 = vpop.f32.mrb[0].mxu0
    %1404 = vmatprep.mubr.f32.mxu0 0.0
    %1405 = vmatmul.mubr.f32.gmra.mrb[0].mxu0 %v100
    %v1406 = vpop.f32.mrb[0].mxu0
    %v1407 = vadd.f32 0.0, %v1406
    %v1408 = vpop.f32.mrb[0].mxu0
    %1409 = vdwg.mxu0
    %1410 = vmatprep.subr.mxu0 0.0
    %1411 = vmatpush1.xpose.msra.mxu0 %v1333
    %1412 = vmatprep.subr.mxu0 0.0
    %1413 = vmatpush1.xpose.msra.mxu0 0.0
    %1414 = vmatprep.subr.mxu0 0.0
    %1415 = vmatpush1.xpose.msra.mxu0 0.0
    %1416 = vmatprep.subr.mxu0 0.0
    %1417 = vmatpush1.xpose.msra.mxu0 0.0
    %1418 = vmatprep.subr.mxu0 0.0
    %1419 = vmatpush1.xpose.msra.mxu0 0.0
    %1420 = vmatprep.subr.mxu0 0.0
    %1421 = vmatpush1.xpose.msra.mxu0 0.0
    %1422 = vmatprep.subr.mxu0 0.0
    %1423 = vmatpush1.xpose.msra.mxu0 0.0
    %1424 = vmatprep.subr.mxu0 0.0
    %1425 = vmatpush1.xpose.msra.mxu0 0.0
    %1426 = vmatprep.subr.mxu0 0.0
    %1427 = vmatpush1.xpose.msra.mxu0 0.0
    %1428 = vmatprep.subr.mxu0 0.0
    %1429 = vmatpush1.xpose.msra.mxu0 0.0
    %1430 = vmatprep.subr.mxu0 0.0
    %1431 = vmatpush1.xpose.msra.mxu0 0.0
    %1432 = vmatprep.subr.mxu0 0.0
    %1433 = vmatpush1.xpose.msra.mxu0 0.0
    %1434 = vmatprep.subr.mxu0 0.0
    %1435 = vmatpush1.xpose.msra.mxu0 0.0
    %1436 = vmatprep.subr.mxu0 0.0
    %1437 = vmatpush1.xpose.msra.mxu0 0.0
    %1438 = vmatprep.subr.mxu0 0.0
    %1439 = vmatpush1.xpose.msra.mxu0 0.0
    %1440 = vmatprep.subr.mxu0 0.0
    %1441 = vmatpush1.xpose.msra.mxu0 0.0
    %1442 = vmatprep.subr.mxu0 0.0
    %1443 = vmatpush1.xpose.msra.mxu0 0.0
    %1444 = vmatprep.subr.mxu0 0.0
    %1445 = vmatpush1.xpose.msra.mxu0 0.0
    %1446 = vmatprep.subr.mxu0 0.0
    %1447 = vmatpush1.xpose.msra.mxu0 0.0
    %1448 = vmatprep.subr.mxu0 0.0
    %1449 = vmatpush1.xpose.msra.mxu0 0.0
    %1450 = vmatprep.subr.mxu0 0.0
    %1451 = vmatpush1.xpose.msra.mxu0 0.0
    %1452 = vmatprep.subr.mxu0 0.0
    %1453 = vmatpush1.xpose.msra.mxu0 0.0
    %1454 = vmatprep.subr.mxu0 0.0
    %1455 = vmatpush1.xpose.msra.mxu0 0.0
    %1456 = vmatprep.subr.mxu0 0.0
    %1457 = vmatpush1.xpose.msra.mxu0 0.0
    %1458 = vmatprep.subr.mxu0 0.0
    %1459 = vmatpush1.xpose.msra.mxu0 0.0
    %1460 = vmatprep.subr.mxu0 0.0
    %1461 = vmatpush1.xpose.msra.mxu0 0.0
    %1462 = vmatprep.subr.mxu0 0.0
    %1463 = vmatpush1.xpose.msra.mxu0 0.0
    %1464 = vmatprep.subr.mxu0 0.0
    %1465 = vmatpush1.xpose.msra.mxu0 0.0
    %1466 = vmatprep.subr.mxu0 0.0
    %1467 = vmatpush1.xpose.msra.mxu0 0.0
    %1468 = vmatprep.subr.mxu0 0.0
    %1469 = vmatpush1.xpose.msra.mxu0 0.0
    %1470 = vmatprep.subr.mxu0 0.0
    %1471 = vmatpush1.xpose.msra.mxu0 0.0
    %1472 = vmatprep.subr.mxu0 0.0
    %1473 = vmatpush1.xpose.msra.mxu0 0.0
    %1474 = vmatprep.mubr.f32.mxu0 0.0
    %1475 = vmatmul.mubr.f32.gmra.mrb[0].mxu0 %v181
    %v1476 = vpop.f32.mrb[0].mxu0
    %v1477 = vadd.f32 0.0, %v1476
    %v1478 = vpop.f32.mrb[0].mxu0
    %1479 = vmatprep.mubr.f32.mxu0 0.0
    %1480 = vmatmul.mubr.f32.gmra.mrb[0].mxu0 %v184
    %v1481 = vpop.f32.mrb[0].mxu0
    %v1482 = vadd.f32 0.0, %v1481
    %v1483 = vpop.f32.mrb[0].mxu0
    %1484 = vdwg.mxu0
    %v1486 = vsel %vm95, %v92, 0
    %1488 = vmatprep.subr.mxu0 0.0
    %1489 = vmatpush1.xpose.msra.mxu0 %v1486
    %1490 = vmatprep.subr.mxu0 0.0
    %1491 = vmatpush1.xpose.msra.mxu0 0.0
    %1492 = vmatprep.subr.mxu0 0.0
    %1493 = vmatpush1.xpose.msra.mxu0 0.0
    %1494 = vmatprep.subr.mxu0 0.0
    %1495 = vmatpush1.xpose.msra.mxu0 0.0
    %1496 = vmatprep.subr.mxu0 0.0
    %1497 = vmatpush1.xpose.msra.mxu0 0.0
    %1498 = vmatprep.subr.mxu0 0.0
    %1499 = vmatpush1.xpose.msra.mxu0 0.0
    %1500 = vmatprep.subr.mxu0 0.0
    %1501 = vmatpush1.xpose.msra.mxu0 0.0
    %1502 = vmatprep.subr.mxu0 0.0
    %1503 = vmatpush1.xpose.msra.mxu0 0.0
    %1504 = vmatprep.subr.mxu0 0.0
    %1505 = vmatpush1.xpose.msra.mxu0 0.0
    %1506 = vmatprep.subr.mxu0 0.0
    %1507 = vmatpush1.xpose.msra.mxu0 0.0
    %1508 = vmatprep.subr.mxu0 0.0
    %1509 = vmatpush1.xpose.msra.mxu0 0.0
    %1510 = vmatprep.subr.mxu0 0.0
    %1511 = vmatpush1.xpose.msra.mxu0 0.0
    %1512 = vmatprep.subr.mxu0 0.0
    %1513 = vmatpush1.xpose.msra.mxu0 0.0
    %1514 = vmatprep.subr.mxu0 0.0
    %1515 = vmatpush1.xpose.msra.mxu0 0.0
    %1516 = vmatprep.subr.mxu0 0.0
    %1517 = vmatpush1.xpose.msra.mxu0 0.0
    %1518 = vmatprep.subr.mxu0 0.0
    %1519 = vmatpush1.xpose.msra.mxu0 0.0
    %1520 = vmatprep.subr.mxu0 0.0
    %1521 = vmatpush1.xpose.msra.mxu0 0.0
    %1522 = vmatprep.subr.mxu0 0.0
    %1523 = vmatpush1.xpose.msra.mxu0 0.0
    %1524 = vmatprep.subr.mxu0 0.0
    %1525 = vmatpush1.xpose.msra.mxu0 0.0
    %1526 = vmatprep.subr.mxu0 0.0
    %1527 = vmatpush1.xpose.msra.mxu0 0.0
    %1528 = vmatprep.subr.mxu0 0.0
    %1529 = vmatpush1.xpose.msra.mxu0 0.0
    %1530 = vmatprep.subr.mxu0 0.0
    %1531 = vmatpush1.xpose.msra.mxu0 0.0
    %1532 = vmatprep.subr.mxu0 0.0
    %1533 = vmatpush1.xpose.msra.mxu0 0.0
    %1534 = vmatprep.subr.mxu0 0.0
    %1535 = vmatpush1.xpose.msra.mxu0 0.0
    %1536 = vmatprep.subr.mxu0 0.0
    %1537 = vmatpush1.xpose.msra.mxu0 0.0
    %1538 = vmatprep.subr.mxu0 0.0
    %1539 = vmatpush1.xpose.msra.mxu0 0.0
    %1540 = vmatprep.subr.mxu0 0.0
    %1541 = vmatpush1.xpose.msra.mxu0 0.0
    %1542 = vmatprep.subr.mxu0 0.0
    %1543 = vmatpush1.xpose.msra.mxu0 0.0
    %1544 = vmatprep.subr.mxu0 0.0
    %1545 = vmatpush1.xpose.msra.mxu0 0.0
    %1546 = vmatprep.subr.mxu0 0.0
    %1547 = vmatpush1.xpose.msra.mxu0 0.0
    %1548 = vmatprep.subr.mxu0 0.0
    %1549 = vmatpush1.xpose.msra.mxu0 0.0
    %1550 = vmatprep.subr.mxu0 0.0
    %1551 = vmatpush1.xpose.msra.mxu0 0.0
    %1552 = vmatprep.mubr.f32.mxu0 0.0
    %1553 = vmatmul.mubr.f32.gmra.mrb[0].mxu0 %v97
    %v1554 = vpop.f32.mrb[0].mxu0
    %v1555 = vadd.f32 0.0, %v1554
    %v1556 = vpop.f32.mrb[0].mxu0
    %1557 = vmatprep.mubr.f32.mxu0 0.0
    %1558 = vmatmul.mubr.f32.gmra.mrb[0].mxu0 %v100
    %v1559 = vpop.f32.mrb[0].mxu0
    %v1560 = vadd.f32 0.0, %v1559
    %v1561 = vpop.f32.mrb[0].mxu0
    %1562 = vdwg.mxu0
    %1563 = vmatprep.subr.mxu0 0.0
    %1564 = vmatpush1.xpose.msra.mxu0 %v1486
    %1565 = vmatprep.subr.mxu0 0.0
    %1566 = vmatpush1.xpose.msra.mxu0 0.0
    %1567 = vmatprep.subr.mxu0 0.0
    %1568 = vmatpush1.xpose.msra.mxu0 0.0
    %1569 = vmatprep.subr.mxu0 0.0
    %1570 = vmatpush1.xpose.msra.mxu0 0.0
    %1571 = vmatprep.subr.mxu0 0.0
    %1572 = vmatpush1.xpose.msra.mxu0 0.0
    %1573 = vmatprep.subr.mxu0 0.0
    %1574 = vmatpush1.xpose.msra.mxu0 0.0
    %1575 = vmatprep.subr.mxu0 0.0
    %1576 = vmatpush1.xpose.msra.mxu0 0.0
    %1577 = vmatprep.subr.mxu0 0.0
    %1578 = vmatpush1.xpose.msra.mxu0 0.0
    %1579 = vmatprep.subr.mxu0 0.0
    %1580 = vmatpush1.xpose.msra.mxu0 0.0
    %1581 = vmatprep.subr.mxu0 0.0
    %1582 = vmatpush1.xpose.msra.mxu0 0.0
    %1583 = vmatprep.subr.mxu0 0.0
    %1584 = vmatpush1.xpose.msra.mxu0 0.0
    %1585 = vmatprep.subr.mxu0 0.0
    %1586 = vmatpush1.xpose.msra.mxu0 0.0
    %1587 = vmatprep.subr.mxu0 0.0
    %1588 = vmatpush1.xpose.msra.mxu0 0.0
    %1589 = vmatprep.subr.mxu0 0.0
    %1590 = vmatpush1.xpose.msra.mxu0 0.0
    %1591 = vmatprep.subr.mxu0 0.0
    %1592 = vmatpush1.xpose.msra.mxu0 0.0
    %1593 = vmatprep.subr.mxu0 0.0
    %1594 = vmatpush1.xpose.msra.mxu0 0.0
    %1595 = vmatprep.subr.mxu0 0.0
    %1596 = vmatpush1.xpose.msra.mxu0 0.0
    %1597 = vmatprep.subr.mxu0 0.0
    %1598 = vmatpush1.xpose.msra.mxu0 0.0
    %1599 = vmatprep.subr.mxu0 0.0
    %1600 = vmatpush1.xpose.msra.mxu0 0.0
    %1601 = vmatprep.subr.mxu0 0.0
    %1602 = vmatpush1.xpose.msra.mxu0 0.0
    %1603 = vmatprep.subr.mxu0 0.0
    %1604 = vmatpush1.xpose.msra.mxu0 0.0
    %1605 = vmatprep.subr.mxu0 0.0
    %1606 = vmatpush1.xpose.msra.mxu0 0.0
    %1607 = vmatprep.subr.mxu0 0.0
    %1608 = vmatpush1.xpose.msra.mxu0 0.0
    %1609 = vmatprep.subr.mxu0 0.0
    %1610 = vmatpush1.xpose.msra.mxu0 0.0
    %1611 = vmatprep.subr.mxu0 0.0
    %1612 = vmatpush1.xpose.msra.mxu0 0.0
    %1613 = vmatprep.subr.mxu0 0.0
    %1614 = vmatpush1.xpose.msra.mxu0 0.0
    %1615 = vmatprep.subr.mxu0 0.0
    %1616 = vmatpush1.xpose.msra.mxu0 0.0
    %1617 = vmatprep.subr.mxu0 0.0
    %1618 = vmatpush1.xpose.msra.mxu0 0.0
    %1619 = vmatprep.subr.mxu0 0.0
    %1620 = vmatpush1.xpose.msra.mxu0 0.0
    %1621 = vmatprep.subr.mxu0 0.0
    %1622 = vmatpush1.xpose.msra.mxu0 0.0
    %1623 = vmatprep.subr.mxu0 0.0
    %1624 = vmatpush1.xpose.msra.mxu0 0.0
    %1625 = vmatprep.subr.mxu0 0.0
    %1626 = vmatpush1.xpose.msra.mxu0 0.0
    %1627 = vmatprep.mubr.f32.mxu0 0.0
    %1628 = vmatmul.mubr.f32.gmra.mrb[0].mxu0 %v181
    %v1629 = vpop.f32.mrb[0].mxu0
    %v1630 = vadd.f32 0.0, %v1629
    %v1631 = vpop.f32.mrb[0].mxu0
    %1632 = vmatprep.mubr.f32.mxu0 0.0
    %1633 = vmatmul.mubr.f32.gmra.mrb[0].mxu0 %v184
    %v1634 = vpop.f32.mrb[0].mxu0
    %v1635 = vadd.f32 0.0, %v1634
    %v1636 = vpop.f32.mrb[0].mxu0
    %1637 = vdwg.mxu0
    %v1639 = vsel %vm95, %v93, 0
    %1641 = vmatprep.subr.mxu0 0.0
    %1642 = vmatpush1.xpose.msra.mxu0 %v1639
    %1643 = vmatprep.subr.mxu0 0.0
    %1644 = vmatpush1.xpose.msra.mxu0 0.0
    %1645 = vmatprep.subr.mxu0 0.0
    %1646 = vmatpush1.xpose.msra.mxu0 0.0
    %1647 = vmatprep.subr.mxu0 0.0
    %1648 = vmatpush1.xpose.msra.mxu0 0.0
    %1649 = vmatprep.subr.mxu0 0.0
    %1650 = vmatpush1.xpose.msra.mxu0 0.0
    %1651 = vmatprep.subr.mxu0 0.0
    %1652 = vmatpush1.xpose.msra.mxu0 0.0
    %1653 = vmatprep.subr.mxu0 0.0
    %1654 = vmatpush1.xpose.msra.mxu0 0.0
    %1655 = vmatprep.subr.mxu0 0.0
    %1656 = vmatpush1.xpose.msra.mxu0 0.0
    %1657 = vmatprep.subr.mxu0 0.0
    %1658 = vmatpush1.xpose.msra.mxu0 0.0
    %1659 = vmatprep.subr.mxu0 0.0
    %1660 = vmatpush1.xpose.msra.mxu0 0.0
    %1661 = vmatprep.subr.mxu0 0.0
    %1662 = vmatpush1.xpose.msra.mxu0 0.0
    %1663 = vmatprep.subr.mxu0 0.0
    %1664 = vmatpush1.xpose.msra.mxu0 0.0
    %1665 = vmatprep.subr.mxu0 0.0
    %1666 = vmatpush1.xpose.msra.mxu0 0.0
    %1667 = vmatprep.subr.mxu0 0.0
    %1668 = vmatpush1.xpose.msra.mxu0 0.0
    %1669 = vmatprep.subr.mxu0 0.0
    %1670 = vmatpush1.xpose.msra.mxu0 0.0
    %1671 = vmatprep.subr.mxu0 0.0
    %1672 = vmatpush1.xpose.msra.mxu0 0.0
    %1673 = vmatprep.subr.mxu0 0.0
    %1674 = vmatpush1.xpose.msra.mxu0 0.0
    %1675 = vmatprep.subr.mxu0 0.0
    %1676 = vmatpush1.xpose.msra.mxu0 0.0
    %1677 = vmatprep.subr.mxu0 0.0
    %1678 = vmatpush1.xpose.msra.mxu0 0.0
    %1679 = vmatprep.subr.mxu0 0.0
    %1680 = vmatpush1.xpose.msra.mxu0 0.0
    %1681 = vmatprep.subr.mxu0 0.0
    %1682 = vmatpush1.xpose.msra.mxu0 0.0
    %1683 = vmatprep.subr.mxu0 0.0
    %1684 = vmatpush1.xpose.msra.mxu0 0.0
    %1685 = vmatprep.subr.mxu0 0.0
    %1686 = vmatpush1.xpose.msra.mxu0 0.0
    %1687 = vmatprep.subr.mxu0 0.0
    %1688 = vmatpush1.xpose.msra.mxu0 0.0
    %1689 = vmatprep.subr.mxu0 0.0
    %1690 = vmatpush1.xpose.msra.mxu0 0.0
    %1691 = vmatprep.subr.mxu0 0.0
    %1692 = vmatpush1.xpose.msra.mxu0 0.0
    %1693 = vmatprep.subr.mxu0 0.0
    %1694 = vmatpush1.xpose.msra.mxu0 0.0
    %1695 = vmatprep.subr.mxu0 0.0
    %1696 = vmatpush1.xpose.msra.mxu0 0.0
    %1697 = vmatprep.subr.mxu0 0.0
    %1698 = vmatpush1.xpose.msra.mxu0 0.0
    %1699 = vmatprep.subr.mxu0 0.0
    %1700 = vmatpush1.xpose.msra.mxu0 0.0
    %1701 = vmatprep.subr.mxu0 0.0
    %1702 = vmatpush1.xpose.msra.mxu0 0.0
    %1703 = vmatprep.subr.mxu0 0.0
    %1704 = vmatpush1.xpose.msra.mxu0 0.0
    %1705 = vmatprep.mubr.f32.mxu0 0.0
    %1706 = vmatmul.mubr.f32.gmra.mrb[0].mxu0 %v97
    %v1707 = vpop.f32.mrb[0].mxu0
    %v1708 = vadd.f32 0.0, %v1707
    %v1709 = vpop.f32.mrb[0].mxu0
    %1710 = vmatprep.mubr.f32.mxu0 0.0
    %1711 = vmatmul.mubr.f32.gmra.mrb[0].mxu0 %v100
    %v1712 = vpop.f32.mrb[0].mxu0
    %v1713 = vadd.f32 0.0, %v1712
    %v1714 = vpop.f32.mrb[0].mxu0
    %1715 = vdwg.mxu0
    %1716 = vmatprep.subr.mxu0 0.0
    %1717 = vmatpush1.xpose.msra.mxu0 %v1639
    %1718 = vmatprep.subr.mxu0 0.0
    %1719 = vmatpush1.xpose.msra.mxu0 0.0
    %1720 = vmatprep.subr.mxu0 0.0
    %1721 = vmatpush1.xpose.msra.mxu0 0.0
    %1722 = vmatprep.subr.mxu0 0.0
    %1723 = vmatpush1.xpose.msra.mxu0 0.0
    %1724 = vmatprep.subr.mxu0 0.0
    %1725 = vmatpush1.xpose.msra.mxu0 0.0
    %1726 = vmatprep.subr.mxu0 0.0
    %1727 = vmatpush1.xpose.msra.mxu0 0.0
    %1728 = vmatprep.subr.mxu0 0.0
    %1729 = vmatpush1.xpose.msra.mxu0 0.0
    %1730 = vmatprep.subr.mxu0 0.0
    %1731 = vmatpush1.xpose.msra.mxu0 0.0
    %1732 = vmatprep.subr.mxu0 0.0
    %1733 = vmatpush1.xpose.msra.mxu0 0.0
    %1734 = vmatprep.subr.mxu0 0.0
    %1735 = vmatpush1.xpose.msra.mxu0 0.0
    %1736 = vmatprep.subr.mxu0 0.0
    %1737 = vmatpush1.xpose.msra.mxu0 0.0
    %1738 = vmatprep.subr.mxu0 0.0
    %1739 = vmatpush1.xpose.msra.mxu0 0.0
    %1740 = vmatprep.subr.mxu0 0.0
    %1741 = vmatpush1.xpose.msra.mxu0 0.0
    %1742 = vmatprep.subr.mxu0 0.0
    %1743 = vmatpush1.xpose.msra.mxu0 0.0
    %1744 = vmatprep.subr.mxu0 0.0
    %1745 = vmatpush1.xpose.msra.mxu0 0.0
    %1746 = vmatprep.subr.mxu0 0.0
    %1747 = vmatpush1.xpose.msra.mxu0 0.0
    %1748 = vmatprep.subr.mxu0 0.0
    %1749 = vmatpush1.xpose.msra.mxu0 0.0
    %1750 = vmatprep.subr.mxu0 0.0
    %1751 = vmatpush1.xpose.msra.mxu0 0.0
    %1752 = vmatprep.subr.mxu0 0.0
    %1753 = vmatpush1.xpose.msra.mxu0 0.0
    %1754 = vmatprep.subr.mxu0 0.0
    %1755 = vmatpush1.xpose.msra.mxu0 0.0
    %1756 = vmatprep.subr.mxu0 0.0
    %1757 = vmatpush1.xpose.msra.mxu0 0.0
    %1758 = vmatprep.subr.mxu0 0.0
    %1759 = vmatpush1.xpose.msra.mxu0 0.0
    %1760 = vmatprep.subr.mxu0 0.0
    %1761 = vmatpush1.xpose.msra.mxu0 0.0
    %1762 = vmatprep.subr.mxu0 0.0
    %1763 = vmatpush1.xpose.msra.mxu0 0.0
    %1764 = vmatprep.subr.mxu0 0.0
    %1765 = vmatpush1.xpose.msra.mxu0 0.0
    %1766 = vmatprep.subr.mxu0 0.0
    %1767 = vmatpush1.xpose.msra.mxu0 0.0
    %1768 = vmatprep.subr.mxu0 0.0
    %1769 = vmatpush1.xpose.msra.mxu0 0.0
    %1770 = vmatprep.subr.mxu0 0.0
    %1771 = vmatpush1.xpose.msra.mxu0 0.0
    %1772 = vmatprep.subr.mxu0 0.0
    %1773 = vmatpush1.xpose.msra.mxu0 0.0
    %1774 = vmatprep.subr.mxu0 0.0
    %1775 = vmatpush1.xpose.msra.mxu0 0.0
    %1776 = vmatprep.subr.mxu0 0.0
    %1777 = vmatpush1.xpose.msra.mxu0 0.0
    %1778 = vmatprep.subr.mxu0 0.0
    %1779 = vmatpush1.xpose.msra.mxu0 0.0
    %1780 = vmatprep.mubr.f32.mxu0 0.0
    %1781 = vmatmul.mubr.f32.gmra.mrb[0].mxu0 %v181
    %v1782 = vpop.f32.mrb[0].mxu0
    %v1783 = vadd.f32 0.0, %v1782
    %v1784 = vpop.f32.mrb[0].mxu0
    %1785 = vmatprep.mubr.f32.mxu0 0.0
    %1786 = vmatmul.mubr.f32.gmra.mrb[0].mxu0 %v184
    %v1787 = vpop.f32.mrb[0].mxu0
    %v1788 = vadd.f32 0.0, %v1787
    %v1789 = vpop.f32.mrb[0].mxu0
    %1790 = vdwg.mxu0
    %v1792 = vsel %vm95, %v94, 0
    %1794 = vmatprep.subr.mxu0 0.0
    %1795 = vmatpush1.xpose.msra.mxu0 %v1792
    %1796 = vmatprep.subr.mxu0 0.0
    %1797 = vmatpush1.xpose.msra.mxu0 0.0
    %1798 = vmatprep.subr.mxu0 0.0
    %1799 = vmatpush1.xpose.msra.mxu0 0.0
    %1800 = vmatprep.subr.mxu0 0.0
    %1801 = vmatpush1.xpose.msra.mxu0 0.0
    %1802 = vmatprep.subr.mxu0 0.0
    %1803 = vmatpush1.xpose.msra.mxu0 0.0
    %1804 = vmatprep.subr.mxu0 0.0
    %1805 = vmatpush1.xpose.msra.mxu0 0.0
    %1806 = vmatprep.subr.mxu0 0.0
    %1807 = vmatpush1.xpose.msra.mxu0 0.0
    %1808 = vmatprep.subr.mxu0 0.0
    %1809 = vmatpush1.xpose.msra.mxu0 0.0
    %1810 = vmatprep.subr.mxu0 0.0
    %1811 = vmatpush1.xpose.msra.mxu0 0.0
    %1812 = vmatprep.subr.mxu0 0.0
    %1813 = vmatpush1.xpose.msra.mxu0 0.0
    %1814 = vmatprep.subr.mxu0 0.0
    %1815 = vmatpush1.xpose.msra.mxu0 0.0
    %1816 = vmatprep.subr.mxu0 0.0
    %1817 = vmatpush1.xpose.msra.mxu0 0.0
    %1818 = vmatprep.subr.mxu0 0.0
    %1819 = vmatpush1.xpose.msra.mxu0 0.0
    %1820 = vmatprep.subr.mxu0 0.0
    %1821 = vmatpush1.xpose.msra.mxu0 0.0
    %1822 = vmatprep.subr.mxu0 0.0
    %1823 = vmatpush1.xpose.msra.mxu0 0.0
    %1824 = vmatprep.subr.mxu0 0.0
    %1825 = vmatpush1.xpose.msra.mxu0 0.0
    %1826 = vmatprep.subr.mxu0 0.0
    %1827 = vmatpush1.xpose.msra.mxu0 0.0
    %1828 = vmatprep.subr.mxu0 0.0
    %1829 = vmatpush1.xpose.msra.mxu0 0.0
    %1830 = vmatprep.subr.mxu0 0.0
    %1831 = vmatpush1.xpose.msra.mxu0 0.0
    %1832 = vmatprep.subr.mxu0 0.0
    %1833 = vmatpush1.xpose.msra.mxu0 0.0
    %1834 = vmatprep.subr.mxu0 0.0
    %1835 = vmatpush1.xpose.msra.mxu0 0.0
    %1836 = vmatprep.subr.mxu0 0.0
    %1837 = vmatpush1.xpose.msra.mxu0 0.0
    %1838 = vmatprep.subr.mxu0 0.0
    %1839 = vmatpush1.xpose.msra.mxu0 0.0
    %1840 = vmatprep.subr.mxu0 0.0
    %1841 = vmatpush1.xpose.msra.mxu0 0.0
    %1842 = vmatprep.subr.mxu0 0.0
    %1843 = vmatpush1.xpose.msra.mxu0 0.0
    %1844 = vmatprep.subr.mxu0 0.0
    %1845 = vmatpush1.xpose.msra.mxu0 0.0
    %1846 = vmatprep.subr.mxu0 0.0
    %1847 = vmatpush1.xpose.msra.mxu0 0.0
    %1848 = vmatprep.subr.mxu0 0.0
    %1849 = vmatpush1.xpose.msra.mxu0 0.0
    %1850 = vmatprep.subr.mxu0 0.0
    %1851 = vmatpush1.xpose.msra.mxu0 0.0
    %1852 = vmatprep.subr.mxu0 0.0
    %1853 = vmatpush1.xpose.msra.mxu0 0.0
    %1854 = vmatprep.subr.mxu0 0.0
    %1855 = vmatpush1.xpose.msra.mxu0 0.0
    %1856 = vmatprep.subr.mxu0 0.0
    %1857 = vmatpush1.xpose.msra.mxu0 0.0
    %1858 = vmatprep.mubr.f32.mxu0 0.0
    %1859 = vmatmul.mubr.f32.gmra.mrb[0].mxu0 %v97
    %v1860 = vpop.f32.mrb[0].mxu0
    %v1861 = vadd.f32 0.0, %v1860
    %v1862 = vpop.f32.mrb[0].mxu0
    %1863 = vmatprep.mubr.f32.mxu0 0.0
    %1864 = vmatmul.mubr.f32.gmra.mrb[0].mxu0 %v100
    %v1865 = vpop.f32.mrb[0].mxu0
    %v1866 = vadd.f32 0.0, %v1865
    %v1867 = vpop.f32.mrb[0].mxu0
    %1868 = vdwg.mxu0
    %1869 = vmatprep.subr.mxu0 0.0
    %1870 = vmatpush1.xpose.msra.mxu0 %v1792
    %1871 = vmatprep.subr.mxu0 0.0
    %1872 = vmatpush1.xpose.msra.mxu0 0.0
    %1873 = vmatprep.subr.mxu0 0.0
    %1874 = vmatpush1.xpose.msra.mxu0 0.0
    %1875 = vmatprep.subr.mxu0 0.0
    %1876 = vmatpush1.xpose.msra.mxu0 0.0
    %1877 = vmatprep.subr.mxu0 0.0
    %1878 = vmatpush1.xpose.msra.mxu0 0.0
    %1879 = vmatprep.subr.mxu0 0.0
    %1880 = vmatpush1.xpose.msra.mxu0 0.0
    %1881 = vmatprep.subr.mxu0 0.0
    %1882 = vmatpush1.xpose.msra.mxu0 0.0
    %1883 = vmatprep.subr.mxu0 0.0
    %1884 = vmatpush1.xpose.msra.mxu0 0.0
    %1885 = vmatprep.subr.mxu0 0.0
    %1886 = vmatpush1.xpose.msra.mxu0 0.0
    %1887 = vmatprep.subr.mxu0 0.0
    %1888 = vmatpush1.xpose.msra.mxu0 0.0
    %1889 = vmatprep.subr.mxu0 0.0
    %1890 = vmatpush1.xpose.msra.mxu0 0.0
    %1891 = vmatprep.subr.mxu0 0.0
    %1892 = vmatpush1.xpose.msra.mxu0 0.0
    %1893 = vmatprep.subr.mxu0 0.0
    %1894 = vmatpush1.xpose.msra.mxu0 0.0
    %1895 = vmatprep.subr.mxu0 0.0
    %1896 = vmatpush1.xpose.msra.mxu0 0.0
    %1897 = vmatprep.subr.mxu0 0.0
    %1898 = vmatpush1.xpose.msra.mxu0 0.0
    %1899 = vmatprep.subr.mxu0 0.0
    %1900 = vmatpush1.xpose.msra.mxu0 0.0
    %1901 = vmatprep.subr.mxu0 0.0
    %1902 = vmatpush1.xpose.msra.mxu0 0.0
    %1903 = vmatprep.subr.mxu0 0.0
    %1904 = vmatpush1.xpose.msra.mxu0 0.0
    %1905 = vmatprep.subr.mxu0 0.0
    %1906 = vmatpush1.xpose.msra.mxu0 0.0
    %1907 = vmatprep.subr.mxu0 0.0
    %1908 = vmatpush1.xpose.msra.mxu0 0.0
    %1909 = vmatprep.subr.mxu0 0.0
    %1910 = vmatpush1.xpose.msra.mxu0 0.0
    %1911 = vmatprep.subr.mxu0 0.0
    %1912 = vmatpush1.xpose.msra.mxu0 0.0
    %1913 = vmatprep.subr.mxu0 0.0
    %1914 = vmatpush1.xpose.msra.mxu0 0.0
    %1915 = vmatprep.subr.mxu0 0.0
    %1916 = vmatpush1.xpose.msra.mxu0 0.0
    %1917 = vmatprep.subr.mxu0 0.0
    %1918 = vmatpush1.xpose.msra.mxu0 0.0
    %1919 = vmatprep.subr.mxu0 0.0
    %1920 = vmatpush1.xpose.msra.mxu0 0.0
    %1921 = vmatprep.subr.mxu0 0.0
    %1922 = vmatpush1.xpose.msra.mxu0 0.0
    %1923 = vmatprep.subr.mxu0 0.0
    %1924 = vmatpush1.xpose.msra.mxu0 0.0
    %1925 = vmatprep.subr.mxu0 0.0
    %1926 = vmatpush1.xpose.msra.mxu0 0.0
    %1927 = vmatprep.subr.mxu0 0.0
    %1928 = vmatpush1.xpose.msra.mxu0 0.0
    %1929 = vmatprep.subr.mxu0 0.0
    %1930 = vmatpush1.xpose.msra.mxu0 0.0
    %1931 = vmatprep.subr.mxu0 0.0
    %1932 = vmatpush1.xpose.msra.mxu0 0.0
    %1933 = vmatprep.mubr.f32.mxu0 0.0
    %1934 = vmatmul.mubr.f32.gmra.mrb[0].mxu0 %v181
    %v1935 = vpop.f32.mrb[0].mxu0
    %v1936 = vadd.f32 0.0, %v1935
    %v1937 = vpop.f32.mrb[0].mxu0
    %1938 = vmatprep.mubr.f32.mxu0 0.0
    %1939 = vmatmul.mubr.f32.gmra.mrb[0].mxu0 %v184
    %v1940 = vpop.f32.mrb[0].mxu0
    %v1941 = vadd.f32 0.0, %v1940
    %v1942 = vpop.f32.mrb[0].mxu0
    %1943 = vdwg.mxu0
    %v1944 = vld [vmem:[%s2] sm:$0x1]
    %v1945 = vld [vmem:[%s2 + $0x1] sm:$0x1]
    %v1946 = vld [vmem:[%s2 + $0x2] sm:$0x1]
    %v1947 = vld [vmem:[%s2 + $0x3] sm:$0x1]
    %v1948 = vld [vmem:[%s2 + $0x4] sm:$0x1]
    %v1949 = vld [vmem:[%s2 + $0x5] sm:$0x1]
    %v1950 = vld [vmem:[%s2 + $0x6] sm:$0x1]
    %v1951 = vld [vmem:[%s2 + $0x7] sm:$0x1]
    %v1952 = vld [vmem:[%s2 + $0x8] sm:$0x1]
    %v1953 = vld [vmem:[%s2 + $0x9] sm:$0x1]
    %v1954 = vld [vmem:[%s2 + $0xa] sm:$0x1]
    %v1955 = vld [vmem:[%s2 + $0xb] sm:$0x1]
    %v1968 = vlaneseq
    %v1969 = vshrl.u32 %v1968, 7
    %v1970 = vsub.s32 0, %v1969
    %v1971 = vrot.slane %v1944, %v1970
    %v1972 = vlaneseq
    %v1973 = vshrl.u32 %v1972, 7
    %v1974 = vsub.s32 0, %v1973
    %v1975 = vrot.slane %v1945, %v1974
    %v1976 = vlaneseq
    %v1977 = vshrl.u32 %v1976, 7
    %v1978 = vsub.s32 0, %v1977
    %v1979 = vrot.slane %v1946, %v1978
    %v1980 = vlaneseq
    %v1981 = vshrl.u32 %v1980, 7
    %v1982 = vsub.s32 0, %v1981
    %v1983 = vrot.slane %v1947, %v1982
    %v1984 = vlaneseq
    %v1985 = vshrl.u32 %v1984, 7
    %v1986 = vsub.s32 0, %v1985
    %v1987 = vrot.slane %v1948, %v1986
    %v1988 = vlaneseq
    %v1989 = vshrl.u32 %v1988, 7
    %v1990 = vsub.s32 0, %v1989
    %v1991 = vrot.slane %v1949, %v1990
    %v1992 = vlaneseq
    %v1993 = vshrl.u32 %v1992, 7
    %v1994 = vsub.s32 0, %v1993
    %v1995 = vrot.slane %v1950, %v1994
    %v1996 = vlaneseq
    %v1997 = vshrl.u32 %v1996, 7
    %v1998 = vsub.s32 0, %v1997
    %v1999 = vrot.slane %v1951, %v1998
    %v2000 = vlaneseq
    %v2001 = vshrl.u32 %v2000, 7
    %v2002 = vsub.s32 0, %v2001
    %v2003 = vrot.slane %v1952, %v2002
    %v2004 = vlaneseq
    %v2005 = vshrl.u32 %v2004, 7
    %v2006 = vsub.s32 0, %v2005
    %v2007 = vrot.slane %v1953, %v2006
    %v2008 = vlaneseq
    %v2009 = vshrl.u32 %v2008, 7
    %v2010 = vsub.s32 0, %v2009
    %v2011 = vrot.slane %v1954, %v2010
    %v2012 = vlaneseq
    %v2013 = vshrl.u32 %v2012, 7
    %v2014 = vsub.s32 0, %v2013
    %v2015 = vrot.slane %v1955, %v2014
    %v2028 = vadd.f32 %v172, %v1971
    %v2029 = vadd.f32 %v177, %v1971
    %v2030 = vadd.f32 %v253, %v1971
    %v2031 = vadd.f32 %v258, %v1971
    %v2032 = vadd.f32 %v331, %v1975
    %v2033 = vadd.f32 %v336, %v1975
    %v2034 = vadd.f32 %v406, %v1975
    %v2035 = vadd.f32 %v411, %v1975
    %v2036 = vadd.f32 %v484, %v1979
    %v2037 = vadd.f32 %v489, %v1979
    %v2038 = vadd.f32 %v559, %v1979
    %v2039 = vadd.f32 %v564, %v1979
    %v2040 = vadd.f32 %v637, %v1983
    %v2041 = vadd.f32 %v642, %v1983
    %v2042 = vadd.f32 %v712, %v1983
    %v2043 = vadd.f32 %v717, %v1983
    %v2044 = vadd.f32 %v790, %v1987
    %v2045 = vadd.f32 %v795, %v1987
    %v2046 = vadd.f32 %v865, %v1987
    %v2047 = vadd.f32 %v870, %v1987
    %v2048 = vadd.f32 %v943, %v1991
    %v2049 = vadd.f32 %v948, %v1991
    %v2050 = vadd.f32 %v1018, %v1991
    %v2051 = vadd.f32 %v1023, %v1991
    %v2052 = vadd.f32 %v1096, %v1995
    %v2053 = vadd.f32 %v1101, %v1995
    %v2054 = vadd.f32 %v1171, %v1995
    %v2055 = vadd.f32 %v1176, %v1995
    %v2056 = vadd.f32 %v1249, %v1999
    %v2057 = vadd.f32 %v1254, %v1999
    %v2058 = vadd.f32 %v1324, %v1999
    %v2059 = vadd.f32 %v1329, %v1999
    %v2060 = vadd.f32 %v1402, %v2003
    %v2061 = vadd.f32 %v1407, %v2003
    %v2062 = vadd.f32 %v1477, %v2003
    %v2063 = vadd.f32 %v1482, %v2003
    %v2064 = vadd.f32 %v1555, %v2007
    %v2065 = vadd.f32 %v1560, %v2007
    %v2066 = vadd.f32 %v1630, %v2007
    %v2067 = vadd.f32 %v1635, %v2007
    %v2068 = vadd.f32 %v1708, %v2011
    %v2069 = vadd.f32 %v1713, %v2011
    %v2070 = vadd.f32 %v1783, %v2011
    %v2071 = vadd.f32 %v1788, %v2011
    %v2072 = vadd.f32 %v1861, %v2015
    %v2073 = vadd.f32 %v1866, %v2015
    %v2074 = vadd.f32 %v1936, %v2015
    %v2075 = vadd.f32 %v1941, %v2015
    %v2076 = vmul.f32 %v2028, 0.35355338
    %v2077 = vmul.f32 %v2029, 0.35355338
    %v2078 = vmul.f32 %v2030, 0.35355338
    %v2079 = vmul.f32 %v2031, 0.35355338
    %v2080 = vmul.f32 %v2032, 0.35355338
    %v2081 = vmul.f32 %v2033, 0.35355338
    %v2082 = vmul.f32 %v2034, 0.35355338
    %v2083 = vmul.f32 %v2035, 0.35355338
    %v2084 = vmul.f32 %v2036, 0.35355338
    %v2085 = vmul.f32 %v2037, 0.35355338
    %v2086 = vmul.f32 %v2038, 0.35355338
    %v2087 = vmul.f32 %v2039, 0.35355338
    %v2088 = vmul.f32 %v2040, 0.35355338
    %v2089 = vmul.f32 %v2041, 0.35355338
    %v2090 = vmul.f32 %v2042, 0.35355338
    %v2091 = vmul.f32 %v2043, 0.35355338
    %v2092 = vld [vmem:[#allocation8] sm:$0xff]
    %v2093 = vld [vmem:[#allocation8 + $0x8] sm:$0xff]
    %v2094 = vld [vmem:[#allocation8 + $0x10] sm:$0xff]
    %v2095 = vld [vmem:[#allocation8 + $0x18] sm:$0xff]
    %v2096 = vld [vmem:[#allocation8 + $0x20] sm:$0xff]
    %v2097 = vld [vmem:[#allocation8 + $0x28] sm:$0xff]
    %v2098 = vld [vmem:[#allocation8 + $0x30] sm:$0xff]
    %v2099 = vld [vmem:[#allocation8 + $0x38] sm:$0xff]
    %vm2100 = vcmask 64512
    %v2102 = vsel %vm2100, %v2076, 0
    %v2105 = vsel %vm2100, %v2077, 0
    %v2108 = vsel %vm2100, %v2044, 0
    %v2111 = vsel %vm2100, %v2045, 0
    %2113 = vmatprep.subr.mxu0 0.0
    %2114 = vmatpush1.xpose.msra.mxu0 %v2108
    %2115 = vmatprep.subr.mxu0 0.0
    %2116 = vmatpush1.xpose.msra.mxu0 %v2111
    %2117 = vmatprep.subr.mxu0 0.0
    %2118 = vmatpush1.xpose.msra.mxu0 0.0
    %2119 = vmatprep.subr.mxu0 0.0
    %2120 = vmatpush1.xpose.msra.mxu0 0.0
    %2121 = vmatprep.subr.mxu0 0.0
    %2122 = vmatpush1.xpose.msra.mxu0 0.0
    %2123 = vmatprep.subr.mxu0 0.0
    %2124 = vmatpush1.xpose.msra.mxu0 0.0
    %2125 = vmatprep.subr.mxu0 0.0
    %2126 = vmatpush1.xpose.msra.mxu0 0.0
    %2127 = vmatprep.subr.mxu0 0.0
    %2128 = vmatpush1.xpose.msra.mxu0 0.0
    %2129 = vmatprep.subr.mxu0 0.0
    %2130 = vmatpush1.xpose.msra.mxu0 0.0
    %2131 = vmatprep.subr.mxu0 0.0
    %2132 = vmatpush1.xpose.msra.mxu0 0.0
    %2133 = vmatprep.subr.mxu0 0.0
    %2134 = vmatpush1.xpose.msra.mxu0 0.0
    %2135 = vmatprep.subr.mxu0 0.0
    %2136 = vmatpush1.xpose.msra.mxu0 0.0
    %2137 = vmatprep.subr.mxu0 0.0
    %2138 = vmatpush1.xpose.msra.mxu0 0.0
    %2139 = vmatprep.subr.mxu0 0.0
    %2140 = vmatpush1.xpose.msra.mxu0 0.0
    %2141 = vmatprep.subr.mxu0 0.0
    %2142 = vmatpush1.xpose.msra.mxu0 0.0
    %2143 = vmatprep.subr.mxu0 0.0
    %2144 = vmatpush1.xpose.msra.mxu0 0.0
    %2145 = vmatprep.subr.mxu0 0.0
    %2146 = vmatpush1.xpose.msra.mxu0 0.0
    %2147 = vmatprep.subr.mxu0 0.0
    %2148 = vmatpush1.xpose.msra.mxu0 0.0
    %2149 = vmatprep.subr.mxu0 0.0
    %2150 = vmatpush1.xpose.msra.mxu0 0.0
    %2151 = vmatprep.subr.mxu0 0.0
    %2152 = vmatpush1.xpose.msra.mxu0 0.0
    %2153 = vmatprep.subr.mxu0 0.0
    %2154 = vmatpush1.xpose.msra.mxu0 0.0
    %2155 = vmatprep.subr.mxu0 0.0
    %2156 = vmatpush1.xpose.msra.mxu0 0.0
    %2157 = vmatprep.subr.mxu0 0.0
    %2158 = vmatpush1.xpose.msra.mxu0 0.0
    %2159 = vmatprep.subr.mxu0 0.0
    %2160 = vmatpush1.xpose.msra.mxu0 0.0
    %2161 = vmatprep.subr.mxu0 0.0
    %2162 = vmatpush1.xpose.msra.mxu0 0.0
    %2163 = vmatprep.subr.mxu0 0.0
    %2164 = vmatpush1.xpose.msra.mxu0 0.0
    %2165 = vmatprep.subr.mxu0 0.0
    %2166 = vmatpush1.xpose.msra.mxu0 0.0
    %2167 = vmatprep.subr.mxu0 0.0
    %2168 = vmatpush1.xpose.msra.mxu0 0.0
    %2169 = vmatprep.subr.mxu0 0.0
    %2170 = vmatpush1.xpose.msra.mxu0 0.0
    %2171 = vmatprep.subr.mxu0 0.0
    %2172 = vmatpush1.xpose.msra.mxu0 0.0
    %2173 = vmatprep.subr.mxu0 0.0
    %2174 = vmatpush1.xpose.msra.mxu0 0.0
    %2175 = vmatprep.subr.mxu0 0.0
    %2176 = vmatpush1.xpose.msra.mxu0 0.0
    %2177 = vmatprep.mubr.f32.mxu0 0.0
    %2178 = vmatmul.mubr.f32.gmra.mrb[0].mxu0 %v2102
    %v2179 = vpop.f32.mrb[0].mxu0
    %v2180 = vadd.f32 %v2092, %v2179
    %v2181 = vpop.f32.mrb[0].mxu0
    %2182 = vmatprep.mubr.f32.mxu0 0.0
    %2183 = vmatmul.mubr.f32.gmra.mrb[0].mxu0 %v2105
    %v2184 = vpop.f32.mrb[0].mxu0
    %v2185 = vadd.f32 %v2093, %v2184
    %v2186 = vpop.f32.mrb[0].mxu0
    %2187 = vdwg.mxu0
    %v2189 = vsel %vm2100, %v2078, 0
    %v2192 = vsel %vm2100, %v2079, 0
    %v2195 = vsel %vm2100, %v2046, 0
    %v2198 = vsel %vm2100, %v2047, 0
    %2200 = vmatprep.subr.mxu0 0.0
    %2201 = vmatpush1.xpose.msra.mxu0 %v2195
    %2202 = vmatprep.subr.mxu0 0.0
    %2203 = vmatpush1.xpose.msra.mxu0 %v2198
    %2204 = vmatprep.subr.mxu0 0.0
    %2205 = vmatpush1.xpose.msra.mxu0 0.0
    %2206 = vmatprep.subr.mxu0 0.0
    %2207 = vmatpush1.xpose.msra.mxu0 0.0
    %2208 = vmatprep.subr.mxu0 0.0
    %2209 = vmatpush1.xpose.msra.mxu0 0.0
    %2210 = vmatprep.subr.mxu0 0.0
    %2211 = vmatpush1.xpose.msra.mxu0 0.0
    %2212 = vmatprep.subr.mxu0 0.0
    %2213 = vmatpush1.xpose.msra.mxu0 0.0
    %2214 = vmatprep.subr.mxu0 0.0
    %2215 = vmatpush1.xpose.msra.mxu0 0.0
    %2216 = vmatprep.subr.mxu0 0.0
    %2217 = vmatpush1.xpose.msra.mxu0 0.0
    %2218 = vmatprep.subr.mxu0 0.0
    %2219 = vmatpush1.xpose.msra.mxu0 0.0
    %2220 = vmatprep.subr.mxu0 0.0
    %2221 = vmatpush1.xpose.msra.mxu0 0.0
    %2222 = vmatprep.subr.mxu0 0.0
    %2223 = vmatpush1.xpose.msra.mxu0 0.0
    %2224 = vmatprep.subr.mxu0 0.0
    %2225 = vmatpush1.xpose.msra.mxu0 0.0
    %2226 = vmatprep.subr.mxu0 0.0
    %2227 = vmatpush1.xpose.msra.mxu0 0.0
    %2228 = vmatprep.subr.mxu0 0.0
    %2229 = vmatpush1.xpose.msra.mxu0 0.0
    %2230 = vmatprep.subr.mxu0 0.0
    %2231 = vmatpush1.xpose.msra.mxu0 0.0
    %2232 = vmatprep.subr.mxu0 0.0
    %2233 = vmatpush1.xpose.msra.mxu0 0.0
    %2234 = vmatprep.subr.mxu0 0.0
    %2235 = vmatpush1.xpose.msra.mxu0 0.0
    %2236 = vmatprep.subr.mxu0 0.0
    %2237 = vmatpush1.xpose.msra.mxu0 0.0
    %2238 = vmatprep.subr.mxu0 0.0
    %2239 = vmatpush1.xpose.msra.mxu0 0.0
    %2240 = vmatprep.subr.mxu0 0.0
    %2241 = vmatpush1.xpose.msra.mxu0 0.0
    %2242 = vmatprep.subr.mxu0 0.0
    %2243 = vmatpush1.xpose.msra.mxu0 0.0
    %2244 = vmatprep.subr.mxu0 0.0
    %2245 = vmatpush1.xpose.msra.mxu0 0.0
    %2246 = vmatprep.subr.mxu0 0.0
    %2247 = vmatpush1.xpose.msra.mxu0 0.0
    %2248 = vmatprep.subr.mxu0 0.0
    %2249 = vmatpush1.xpose.msra.mxu0 0.0
    %2250 = vmatprep.subr.mxu0 0.0
    %2251 = vmatpush1.xpose.msra.mxu0 0.0
    %2252 = vmatprep.subr.mxu0 0.0
    %2253 = vmatpush1.xpose.msra.mxu0 0.0
    %2254 = vmatprep.subr.mxu0 0.0
    %2255 = vmatpush1.xpose.msra.mxu0 0.0
    %2256 = vmatprep.subr.mxu0 0.0
    %2257 = vmatpush1.xpose.msra.mxu0 0.0
    %2258 = vmatprep.subr.mxu0 0.0
    %2259 = vmatpush1.xpose.msra.mxu0 0.0
    %2260 = vmatprep.subr.mxu0 0.0
    %2261 = vmatpush1.xpose.msra.mxu0 0.0
    %2262 = vmatprep.subr.mxu0 0.0
    %2263 = vmatpush1.xpose.msra.mxu0 0.0
    %2264 = vmatprep.mubr.f32.mxu0 0.0
    %2265 = vmatmul.mubr.f32.gmra.mrb[0].mxu0 %v2189
    %v2266 = vpop.f32.mrb[0].mxu0
    %v2267 = vadd.f32 %v2092, %v2266
    %v2268 = vpop.f32.mrb[0].mxu0
    %2269 = vmatprep.mubr.f32.mxu0 0.0
    %2270 = vmatmul.mubr.f32.gmra.mrb[0].mxu0 %v2192
    %v2271 = vpop.f32.mrb[0].mxu0
    %v2272 = vadd.f32 %v2093, %v2271
    %v2273 = vpop.f32.mrb[0].mxu0
    %2274 = vdwg.mxu0
    %v2276 = vsel %vm2100, %v2080, 0
    %v2279 = vsel %vm2100, %v2081, 0
    %v2282 = vsel %vm2100, %v2048, 0
    %v2285 = vsel %vm2100, %v2049, 0
    %2287 = vmatprep.subr.mxu0 0.0
    %2288 = vmatpush1.xpose.msra.mxu0 %v2282
    %2289 = vmatprep.subr.mxu0 0.0
    %2290 = vmatpush1.xpose.msra.mxu0 %v2285
    %2291 = vmatprep.subr.mxu0 0.0
    %2292 = vmatpush1.xpose.msra.mxu0 0.0
    %2293 = vmatprep.subr.mxu0 0.0
    %2294 = vmatpush1.xpose.msra.mxu0 0.0
    %2295 = vmatprep.subr.mxu0 0.0
    %2296 = vmatpush1.xpose.msra.mxu0 0.0
    %2297 = vmatprep.subr.mxu0 0.0
    %2298 = vmatpush1.xpose.msra.mxu0 0.0
    %2299 = vmatprep.subr.mxu0 0.0
    %2300 = vmatpush1.xpose.msra.mxu0 0.0
    %2301 = vmatprep.subr.mxu0 0.0
    %2302 = vmatpush1.xpose.msra.mxu0 0.0
    %2303 = vmatprep.subr.mxu0 0.0
    %2304 = vmatpush1.xpose.msra.mxu0 0.0
    %2305 = vmatprep.subr.mxu0 0.0
    %2306 = vmatpush1.xpose.msra.mxu0 0.0
    %2307 = vmatprep.subr.mxu0 0.0
    %2308 = vmatpush1.xpose.msra.mxu0 0.0
    %2309 = vmatprep.subr.mxu0 0.0
    %2310 = vmatpush1.xpose.msra.mxu0 0.0
    %2311 = vmatprep.subr.mxu0 0.0
    %2312 = vmatpush1.xpose.msra.mxu0 0.0
    %2313 = vmatprep.subr.mxu0 0.0
    %2314 = vmatpush1.xpose.msra.mxu0 0.0
    %2315 = vmatprep.subr.mxu0 0.0
    %2316 = vmatpush1.xpose.msra.mxu0 0.0
    %2317 = vmatprep.subr.mxu0 0.0
    %2318 = vmatpush1.xpose.msra.mxu0 0.0
    %2319 = vmatprep.subr.mxu0 0.0
    %2320 = vmatpush1.xpose.msra.mxu0 0.0
    %2321 = vmatprep.subr.mxu0 0.0
    %2322 = vmatpush1.xpose.msra.mxu0 0.0
    %2323 = vmatprep.subr.mxu0 0.0
    %2324 = vmatpush1.xpose.msra.mxu0 0.0
    %2325 = vmatprep.subr.mxu0 0.0
    %2326 = vmatpush1.xpose.msra.mxu0 0.0
    %2327 = vmatprep.subr.mxu0 0.0
    %2328 = vmatpush1.xpose.msra.mxu0 0.0
    %2329 = vmatprep.subr.mxu0 0.0
    %2330 = vmatpush1.xpose.msra.mxu0 0.0
    %2331 = vmatprep.subr.mxu0 0.0
    %2332 = vmatpush1.xpose.msra.mxu0 0.0
    %2333 = vmatprep.subr.mxu0 0.0
    %2334 = vmatpush1.xpose.msra.mxu0 0.0
    %2335 = vmatprep.subr.mxu0 0.0
    %2336 = vmatpush1.xpose.msra.mxu0 0.0
    %2337 = vmatprep.subr.mxu0 0.0
    %2338 = vmatpush1.xpose.msra.mxu0 0.0
    %2339 = vmatprep.subr.mxu0 0.0
    %2340 = vmatpush1.xpose.msra.mxu0 0.0
    %2341 = vmatprep.subr.mxu0 0.0
    %2342 = vmatpush1.xpose.msra.mxu0 0.0
    %2343 = vmatprep.subr.mxu0 0.0
    %2344 = vmatpush1.xpose.msra.mxu0 0.0
    %2345 = vmatprep.subr.mxu0 0.0
    %2346 = vmatpush1.xpose.msra.mxu0 0.0
    %2347 = vmatprep.subr.mxu0 0.0
    %2348 = vmatpush1.xpose.msra.mxu0 0.0
    %2349 = vmatprep.subr.mxu0 0.0
    %2350 = vmatpush1.xpose.msra.mxu0 0.0
    %2351 = vmatprep.mubr.f32.mxu0 0.0
    %2352 = vmatmul.mubr.f32.gmra.mrb[0].mxu0 %v2276
    %v2353 = vpop.f32.mrb[0].mxu0
    %v2354 = vadd.f32 %v2094, %v2353
    %v2355 = vpop.f32.mrb[0].mxu0
    %2356 = vmatprep.mubr.f32.mxu0 0.0
    %2357 = vmatmul.mubr.f32.gmra.mrb[0].mxu0 %v2279
    %v2358 = vpop.f32.mrb[0].mxu0
    %v2359 = vadd.f32 %v2095, %v2358
    %v2360 = vpop.f32.mrb[0].mxu0
    %2361 = vdwg.mxu0
    %v2363 = vsel %vm2100, %v2082, 0
    %v2366 = vsel %vm2100, %v2083, 0
    %v2369 = vsel %vm2100, %v2050, 0
    %v2372 = vsel %vm2100, %v2051, 0
    %2374 = vmatprep.subr.mxu0 0.0
    %2375 = vmatpush1.xpose.msra.mxu0 %v2369
    %2376 = vmatprep.subr.mxu0 0.0
    %2377 = vmatpush1.xpose.msra.mxu0 %v2372
    %2378 = vmatprep.subr.mxu0 0.0
    %2379 = vmatpush1.xpose.msra.mxu0 0.0
    %2380 = vmatprep.subr.mxu0 0.0
    %2381 = vmatpush1.xpose.msra.mxu0 0.0
    %2382 = vmatprep.subr.mxu0 0.0
    %2383 = vmatpush1.xpose.msra.mxu0 0.0
    %2384 = vmatprep.subr.mxu0 0.0
    %2385 = vmatpush1.xpose.msra.mxu0 0.0
    %2386 = vmatprep.subr.mxu0 0.0
    %2387 = vmatpush1.xpose.msra.mxu0 0.0
    %2388 = vmatprep.subr.mxu0 0.0
    %2389 = vmatpush1.xpose.msra.mxu0 0.0
    %2390 = vmatprep.subr.mxu0 0.0
    %2391 = vmatpush1.xpose.msra.mxu0 0.0
    %2392 = vmatprep.subr.mxu0 0.0
    %2393 = vmatpush1.xpose.msra.mxu0 0.0
    %2394 = vmatprep.subr.mxu0 0.0
    %2395 = vmatpush1.xpose.msra.mxu0 0.0
    %2396 = vmatprep.subr.mxu0 0.0
    %2397 = vmatpush1.xpose.msra.mxu0 0.0
    %2398 = vmatprep.subr.mxu0 0.0
    %2399 = vmatpush1.xpose.msra.mxu0 0.0
    %2400 = vmatprep.subr.mxu0 0.0
    %2401 = vmatpush1.xpose.msra.mxu0 0.0
    %2402 = vmatprep.subr.mxu0 0.0
    %2403 = vmatpush1.xpose.msra.mxu0 0.0
    %2404 = vmatprep.subr.mxu0 0.0
    %2405 = vmatpush1.xpose.msra.mxu0 0.0
    %2406 = vmatprep.subr.mxu0 0.0
    %2407 = vmatpush1.xpose.msra.mxu0 0.0
    %2408 = vmatprep.subr.mxu0 0.0
    %2409 = vmatpush1.xpose.msra.mxu0 0.0
    %2410 = vmatprep.subr.mxu0 0.0
    %2411 = vmatpush1.xpose.msra.mxu0 0.0
    %2412 = vmatprep.subr.mxu0 0.0
    %2413 = vmatpush1.xpose.msra.mxu0 0.0
    %2414 = vmatprep.subr.mxu0 0.0
    %2415 = vmatpush1.xpose.msra.mxu0 0.0
    %2416 = vmatprep.subr.mxu0 0.0
    %2417 = vmatpush1.xpose.msra.mxu0 0.0
    %2418 = vmatprep.subr.mxu0 0.0
    %2419 = vmatpush1.xpose.msra.mxu0 0.0
    %2420 = vmatprep.subr.mxu0 0.0
    %2421 = vmatpush1.xpose.msra.mxu0 0.0
    %2422 = vmatprep.subr.mxu0 0.0
    %2423 = vmatpush1.xpose.msra.mxu0 0.0
    %2424 = vmatprep.subr.mxu0 0.0
    %2425 = vmatpush1.xpose.msra.mxu0 0.0
    %2426 = vmatprep.subr.mxu0 0.0
    %2427 = vmatpush1.xpose.msra.mxu0 0.0
    %2428 = vmatprep.subr.mxu0 0.0
    %2429 = vmatpush1.xpose.msra.mxu0 0.0
    %2430 = vmatprep.subr.mxu0 0.0
    %2431 = vmatpush1.xpose.msra.mxu0 0.0
    %2432 = vmatprep.subr.mxu0 0.0
    %2433 = vmatpush1.xpose.msra.mxu0 0.0
    %2434 = vmatprep.subr.mxu0 0.0
    %2435 = vmatpush1.xpose.msra.mxu0 0.0
    %2436 = vmatprep.subr.mxu0 0.0
    %2437 = vmatpush1.xpose.msra.mxu0 0.0
    %2438 = vmatprep.mubr.f32.mxu0 0.0
    %2439 = vmatmul.mubr.f32.gmra.mrb[0].mxu0 %v2363
    %v2440 = vpop.f32.mrb[0].mxu0
    %v2441 = vadd.f32 %v2094, %v2440
    %v2442 = vpop.f32.mrb[0].mxu0
    %2443 = vmatprep.mubr.f32.mxu0 0.0
    %2444 = vmatmul.mubr.f32.gmra.mrb[0].mxu0 %v2366
    %v2445 = vpop.f32.mrb[0].mxu0
    %v2446 = vadd.f32 %v2095, %v2445
    %v2447 = vpop.f32.mrb[0].mxu0
    %2448 = vdwg.mxu0
    %v2450 = vsel %vm2100, %v2084, 0
    %v2453 = vsel %vm2100, %v2085, 0
    %v2456 = vsel %vm2100, %v2052, 0
    %v2459 = vsel %vm2100, %v2053, 0
    %2461 = vmatprep.subr.mxu0 0.0
    %2462 = vmatpush1.xpose.msra.mxu0 %v2456
    %2463 = vmatprep.subr.mxu0 0.0
    %2464 = vmatpush1.xpose.msra.mxu0 %v2459
    %2465 = vmatprep.subr.mxu0 0.0
    %2466 = vmatpush1.xpose.msra.mxu0 0.0
    %2467 = vmatprep.subr.mxu0 0.0
    %2468 = vmatpush1.xpose.msra.mxu0 0.0
    %2469 = vmatprep.subr.mxu0 0.0
    %2470 = vmatpush1.xpose.msra.mxu0 0.0
    %2471 = vmatprep.subr.mxu0 0.0
    %2472 = vmatpush1.xpose.msra.mxu0 0.0
    %2473 = vmatprep.subr.mxu0 0.0
    %2474 = vmatpush1.xpose.msra.mxu0 0.0
    %2475 = vmatprep.subr.mxu0 0.0
    %2476 = vmatpush1.xpose.msra.mxu0 0.0
    %2477 = vmatprep.subr.mxu0 0.0
    %2478 = vmatpush1.xpose.msra.mxu0 0.0
    %2479 = vmatprep.subr.mxu0 0.0
    %2480 = vmatpush1.xpose.msra.mxu0 0.0
    %2481 = vmatprep.subr.mxu0 0.0
    %2482 = vmatpush1.xpose.msra.mxu0 0.0
    %2483 = vmatprep.subr.mxu0 0.0
    %2484 = vmatpush1.xpose.msra.mxu0 0.0
    %2485 = vmatprep.subr.mxu0 0.0
    %2486 = vmatpush1.xpose.msra.mxu0 0.0
    %2487 = vmatprep.subr.mxu0 0.0
    %2488 = vmatpush1.xpose.msra.mxu0 0.0
    %2489 = vmatprep.subr.mxu0 0.0
    %2490 = vmatpush1.xpose.msra.mxu0 0.0
    %2491 = vmatprep.subr.mxu0 0.0
    %2492 = vmatpush1.xpose.msra.mxu0 0.0
    %2493 = vmatprep.subr.mxu0 0.0
    %2494 = vmatpush1.xpose.msra.mxu0 0.0
    %2495 = vmatprep.subr.mxu0 0.0
    %2496 = vmatpush1.xpose.msra.mxu0 0.0
    %2497 = vmatprep.subr.mxu0 0.0
    %2498 = vmatpush1.xpose.msra.mxu0 0.0
    %2499 = vmatprep.subr.mxu0 0.0
    %2500 = vmatpush1.xpose.msra.mxu0 0.0
    %2501 = vmatprep.subr.mxu0 0.0
    %2502 = vmatpush1.xpose.msra.mxu0 0.0
    %2503 = vmatprep.subr.mxu0 0.0
    %2504 = vmatpush1.xpose.msra.mxu0 0.0
    %2505 = vmatprep.subr.mxu0 0.0
    %2506 = vmatpush1.xpose.msra.mxu0 0.0
    %2507 = vmatprep.subr.mxu0 0.0
    %2508 = vmatpush1.xpose.msra.mxu0 0.0
    %2509 = vmatprep.subr.mxu0 0.0
    %2510 = vmatpush1.xpose.msra.mxu0 0.0
    %2511 = vmatprep.subr.mxu0 0.0
    %2512 = vmatpush1.xpose.msra.mxu0 0.0
    %2513 = vmatprep.subr.mxu0 0.0
    %2514 = vmatpush1.xpose.msra.mxu0 0.0
    %2515 = vmatprep.subr.mxu0 0.0
    %2516 = vmatpush1.xpose.msra.mxu0 0.0
    %2517 = vmatprep.subr.mxu0 0.0
    %2518 = vmatpush1.xpose.msra.mxu0 0.0
    %2519 = vmatprep.subr.mxu0 0.0
    %2520 = vmatpush1.xpose.msra.mxu0 0.0
    %2521 = vmatprep.subr.mxu0 0.0
    %2522 = vmatpush1.xpose.msra.mxu0 0.0
    %2523 = vmatprep.subr.mxu0 0.0
    %2524 = vmatpush1.xpose.msra.mxu0 0.0
    %2525 = vmatprep.mubr.f32.mxu0 0.0
    %2526 = vmatmul.mubr.f32.gmra.mrb[0].mxu0 %v2450
    %v2527 = vpop.f32.mrb[0].mxu0
    %v2528 = vadd.f32 %v2096, %v2527
    %v2529 = vpop.f32.mrb[0].mxu0
    %2530 = vmatprep.mubr.f32.mxu0 0.0
    %2531 = vmatmul.mubr.f32.gmra.mrb[0].mxu0 %v2453
    %v2532 = vpop.f32.mrb[0].mxu0
    %v2533 = vadd.f32 %v2097, %v2532
    %v2534 = vpop.f32.mrb[0].mxu0
    %2535 = vdwg.mxu0
    %v2537 = vsel %vm2100, %v2086, 0
    %v2540 = vsel %vm2100, %v2087, 0
    %v2543 = vsel %vm2100, %v2054, 0
    %v2546 = vsel %vm2100, %v2055, 0
    %2548 = vmatprep.subr.mxu0 0.0
    %2549 = vmatpush1.xpose.msra.mxu0 %v2543
    %2550 = vmatprep.subr.mxu0 0.0
    %2551 = vmatpush1.xpose.msra.mxu0 %v2546
    %2552 = vmatprep.subr.mxu0 0.0
    %2553 = vmatpush1.xpose.msra.mxu0 0.0
    %2554 = vmatprep.subr.mxu0 0.0
    %2555 = vmatpush1.xpose.msra.mxu0 0.0
    %2556 = vmatprep.subr.mxu0 0.0
    %2557 = vmatpush1.xpose.msra.mxu0 0.0
    %2558 = vmatprep.subr.mxu0 0.0
    %2559 = vmatpush1.xpose.msra.mxu0 0.0
    %2560 = vmatprep.subr.mxu0 0.0
    %2561 = vmatpush1.xpose.msra.mxu0 0.0
    %2562 = vmatprep.subr.mxu0 0.0
    %2563 = vmatpush1.xpose.msra.mxu0 0.0
    %2564 = vmatprep.subr.mxu0 0.0
    %2565 = vmatpush1.xpose.msra.mxu0 0.0
    %2566 = vmatprep.subr.mxu0 0.0
    %2567 = vmatpush1.xpose.msra.mxu0 0.0
    %2568 = vmatprep.subr.mxu0 0.0
    %2569 = vmatpush1.xpose.msra.mxu0 0.0
    %2570 = vmatprep.subr.mxu0 0.0
    %2571 = vmatpush1.xpose.msra.mxu0 0.0
    %2572 = vmatprep.subr.mxu0 0.0
    %2573 = vmatpush1.xpose.msra.mxu0 0.0
    %2574 = vmatprep.subr.mxu0 0.0
    %2575 = vmatpush1.xpose.msra.mxu0 0.0
    %2576 = vmatprep.subr.mxu0 0.0
    %2577 = vmatpush1.xpose.msra.mxu0 0.0
    %2578 = vmatprep.subr.mxu0 0.0
    %2579 = vmatpush1.xpose.msra.mxu0 0.0
    %2580 = vmatprep.subr.mxu0 0.0
    %2581 = vmatpush1.xpose.msra.mxu0 0.0
    %2582 = vmatprep.subr.mxu0 0.0
    %2583 = vmatpush1.xpose.msra.mxu0 0.0
    %2584 = vmatprep.subr.mxu0 0.0
    %2585 = vmatpush1.xpose.msra.mxu0 0.0
    %2586 = vmatprep.subr.mxu0 0.0
    %2587 = vmatpush1.xpose.msra.mxu0 0.0
    %2588 = vmatprep.subr.mxu0 0.0
    %2589 = vmatpush1.xpose.msra.mxu0 0.0
    %2590 = vmatprep.subr.mxu0 0.0
    %2591 = vmatpush1.xpose.msra.mxu0 0.0
    %2592 = vmatprep.subr.mxu0 0.0
    %2593 = vmatpush1.xpose.msra.mxu0 0.0
    %2594 = vmatprep.subr.mxu0 0.0
    %2595 = vmatpush1.xpose.msra.mxu0 0.0
    %2596 = vmatprep.subr.mxu0 0.0
    %2597 = vmatpush1.xpose.msra.mxu0 0.0
    %2598 = vmatprep.subr.mxu0 0.0
    %2599 = vmatpush1.xpose.msra.mxu0 0.0
    %2600 = vmatprep.subr.mxu0 0.0
    %2601 = vmatpush1.xpose.msra.mxu0 0.0
    %2602 = vmatprep.subr.mxu0 0.0
    %2603 = vmatpush1.xpose.msra.mxu0 0.0
    %2604 = vmatprep.subr.mxu0 0.0
    %2605 = vmatpush1.xpose.msra.mxu0 0.0
    %2606 = vmatprep.subr.mxu0 0.0
    %2607 = vmatpush1.xpose.msra.mxu0 0.0
    %2608 = vmatprep.subr.mxu0 0.0
    %2609 = vmatpush1.xpose.msra.mxu0 0.0
    %2610 = vmatprep.subr.mxu0 0.0
    %2611 = vmatpush1.xpose.msra.mxu0 0.0
    %2612 = vmatprep.mubr.f32.mxu0 0.0
    %2613 = vmatmul.mubr.f32.gmra.mrb[0].mxu0 %v2537
    %v2614 = vpop.f32.mrb[0].mxu0
    %v2615 = vadd.f32 %v2096, %v2614
    %v2616 = vpop.f32.mrb[0].mxu0
    %2617 = vmatprep.mubr.f32.mxu0 0.0
    %2618 = vmatmul.mubr.f32.gmra.mrb[0].mxu0 %v2540
    %v2619 = vpop.f32.mrb[0].mxu0
    %v2620 = vadd.f32 %v2097, %v2619
    %v2621 = vpop.f32.mrb[0].mxu0
    %2622 = vdwg.mxu0
    %v2624 = vsel %vm2100, %v2088, 0
    %v2627 = vsel %vm2100, %v2089, 0
    %v2630 = vsel %vm2100, %v2056, 0
    %v2633 = vsel %vm2100, %v2057, 0
    %2635 = vmatprep.subr.mxu0 0.0
    %2636 = vmatpush1.xpose.msra.mxu0 %v2630
    %2637 = vmatprep.subr.mxu0 0.0
    %2638 = vmatpush1.xpose.msra.mxu0 %v2633
    %2639 = vmatprep.subr.mxu0 0.0
    %2640 = vmatpush1.xpose.msra.mxu0 0.0
    %2641 = vmatprep.subr.mxu0 0.0
    %2642 = vmatpush1.xpose.msra.mxu0 0.0
    %2643 = vmatprep.subr.mxu0 0.0
    %2644 = vmatpush1.xpose.msra.mxu0 0.0
    %2645 = vmatprep.subr.mxu0 0.0
    %2646 = vmatpush1.xpose.msra.mxu0 0.0
    %2647 = vmatprep.subr.mxu0 0.0
    %2648 = vmatpush1.xpose.msra.mxu0 0.0
    %2649 = vmatprep.subr.mxu0 0.0
    %2650 = vmatpush1.xpose.msra.mxu0 0.0
    %2651 = vmatprep.subr.mxu0 0.0
    %2652 = vmatpush1.xpose.msra.mxu0 0.0
    %2653 = vmatprep.subr.mxu0 0.0
    %2654 = vmatpush1.xpose.msra.mxu0 0.0
    %2655 = vmatprep.subr.mxu0 0.0
    %2656 = vmatpush1.xpose.msra.mxu0 0.0
    %2657 = vmatprep.subr.mxu0 0.0
    %2658 = vmatpush1.xpose.msra.mxu0 0.0
    %2659 = vmatprep.subr.mxu0 0.0
    %2660 = vmatpush1.xpose.msra.mxu0 0.0
    %2661 = vmatprep.subr.mxu0 0.0
    %2662 = vmatpush1.xpose.msra.mxu0 0.0
    %2663 = vmatprep.subr.mxu0 0.0
    %2664 = vmatpush1.xpose.msra.mxu0 0.0
    %2665 = vmatprep.subr.mxu0 0.0
    %2666 = vmatpush1.xpose.msra.mxu0 0.0
    %2667 = vmatprep.subr.mxu0 0.0
    %2668 = vmatpush1.xpose.msra.mxu0 0.0
    %2669 = vmatprep.subr.mxu0 0.0
    %2670 = vmatpush1.xpose.msra.mxu0 0.0
    %2671 = vmatprep.subr.mxu0 0.0
    %2672 = vmatpush1.xpose.msra.mxu0 0.0
    %2673 = vmatprep.subr.mxu0 0.0
    %2674 = vmatpush1.xpose.msra.mxu0 0.0
    %2675 = vmatprep.subr.mxu0 0.0
    %2676 = vmatpush1.xpose.msra.mxu0 0.0
    %2677 = vmatprep.subr.mxu0 0.0
    %2678 = vmatpush1.xpose.msra.mxu0 0.0
    %2679 = vmatprep.subr.mxu0 0.0
    %2680 = vmatpush1.xpose.msra.mxu0 0.0
    %2681 = vmatprep.subr.mxu0 0.0
    %2682 = vmatpush1.xpose.msra.mxu0 0.0
    %2683 = vmatprep.subr.mxu0 0.0
    %2684 = vmatpush1.xpose.msra.mxu0 0.0
    %2685 = vmatprep.subr.mxu0 0.0
    %2686 = vmatpush1.xpose.msra.mxu0 0.0
    %2687 = vmatprep.subr.mxu0 0.0
    %2688 = vmatpush1.xpose.msra.mxu0 0.0
    %2689 = vmatprep.subr.mxu0 0.0
    %2690 = vmatpush1.xpose.msra.mxu0 0.0
    %2691 = vmatprep.subr.mxu0 0.0
    %2692 = vmatpush1.xpose.msra.mxu0 0.0
    %2693 = vmatprep.subr.mxu0 0.0
    %2694 = vmatpush1.xpose.msra.mxu0 0.0
    %2695 = vmatprep.subr.mxu0 0.0
    %2696 = vmatpush1.xpose.msra.mxu0 0.0
    %2697 = vmatprep.subr.mxu0 0.0
    %2698 = vmatpush1.xpose.msra.mxu0 0.0
    %2699 = vmatprep.mubr.f32.mxu0 0.0
    %2700 = vmatmul.mubr.f32.gmra.mrb[0].mxu0 %v2624
    %v2701 = vpop.f32.mrb[0].mxu0
    %v2702 = vadd.f32 %v2098, %v2701
    %v2703 = vpop.f32.mrb[0].mxu0
    %2704 = vmatprep.mubr.f32.mxu0 0.0
    %2705 = vmatmul.mubr.f32.gmra.mrb[0].mxu0 %v2627
    %v2706 = vpop.f32.mrb[0].mxu0
    %v2707 = vadd.f32 %v2099, %v2706
    %v2708 = vpop.f32.mrb[0].mxu0
    %2709 = vdwg.mxu0
    %v2711 = vsel %vm2100, %v2090, 0
    %v2714 = vsel %vm2100, %v2091, 0
    %v2717 = vsel %vm2100, %v2058, 0
    %v2720 = vsel %vm2100, %v2059, 0
    %2722 = vmatprep.subr.mxu0 0.0
    %2723 = vmatpush1.xpose.msra.mxu0 %v2717
    %2724 = vmatprep.subr.mxu0 0.0
    %2725 = vmatpush1.xpose.msra.mxu0 %v2720
    %2726 = vmatprep.subr.mxu0 0.0
    %2727 = vmatpush1.xpose.msra.mxu0 0.0
    %2728 = vmatprep.subr.mxu0 0.0
    %2729 = vmatpush1.xpose.msra.mxu0 0.0
    %2730 = vmatprep.subr.mxu0 0.0
    %2731 = vmatpush1.xpose.msra.mxu0 0.0
    %2732 = vmatprep.subr.mxu0 0.0
    %2733 = vmatpush1.xpose.msra.mxu0 0.0
    %2734 = vmatprep.subr.mxu0 0.0
    %2735 = vmatpush1.xpose.msra.mxu0 0.0
    %2736 = vmatprep.subr.mxu0 0.0
    %2737 = vmatpush1.xpose.msra.mxu0 0.0
    %2738 = vmatprep.subr.mxu0 0.0
    %2739 = vmatpush1.xpose.msra.mxu0 0.0
    %2740 = vmatprep.subr.mxu0 0.0
    %2741 = vmatpush1.xpose.msra.mxu0 0.0
    %2742 = vmatprep.subr.mxu0 0.0
    %2743 = vmatpush1.xpose.msra.mxu0 0.0
    %2744 = vmatprep.subr.mxu0 0.0
    %2745 = vmatpush1.xpose.msra.mxu0 0.0
    %2746 = vmatprep.subr.mxu0 0.0
    %2747 = vmatpush1.xpose.msra.mxu0 0.0
    %2748 = vmatprep.subr.mxu0 0.0
    %2749 = vmatpush1.xpose.msra.mxu0 0.0
    %2750 = vmatprep.subr.mxu0 0.0
    %2751 = vmatpush1.xpose.msra.mxu0 0.0
    %2752 = vmatprep.subr.mxu0 0.0
    %2753 = vmatpush1.xpose.msra.mxu0 0.0
    %2754 = vmatprep.subr.mxu0 0.0
    %2755 = vmatpush1.xpose.msra.mxu0 0.0
    %2756 = vmatprep.subr.mxu0 0.0
    %2757 = vmatpush1.xpose.msra.mxu0 0.0
    %2758 = vmatprep.subr.mxu0 0.0
    %2759 = vmatpush1.xpose.msra.mxu0 0.0
    %2760 = vmatprep.subr.mxu0 0.0
    %2761 = vmatpush1.xpose.msra.mxu0 0.0
    %2762 = vmatprep.subr.mxu0 0.0
    %2763 = vmatpush1.xpose.msra.mxu0 0.0
    %2764 = vmatprep.subr.mxu0 0.0
    %2765 = vmatpush1.xpose.msra.mxu0 0.0
    %2766 = vmatprep.subr.mxu0 0.0
    %2767 = vmatpush1.xpose.msra.mxu0 0.0
    %2768 = vmatprep.subr.mxu0 0.0
    %2769 = vmatpush1.xpose.msra.mxu0 0.0
    %2770 = vmatprep.subr.mxu0 0.0
    %2771 = vmatpush1.xpose.msra.mxu0 0.0
    %2772 = vmatprep.subr.mxu0 0.0
    %2773 = vmatpush1.xpose.msra.mxu0 0.0
    %2774 = vmatprep.subr.mxu0 0.0
    %2775 = vmatpush1.xpose.msra.mxu0 0.0
    %2776 = vmatprep.subr.mxu0 0.0
    %2777 = vmatpush1.xpose.msra.mxu0 0.0
    %2778 = vmatprep.subr.mxu0 0.0
    %2779 = vmatpush1.xpose.msra.mxu0 0.0
    %2780 = vmatprep.subr.mxu0 0.0
    %2781 = vmatpush1.xpose.msra.mxu0 0.0
    %2782 = vmatprep.subr.mxu0 0.0
    %2783 = vmatpush1.xpose.msra.mxu0 0.0
    %2784 = vmatprep.subr.mxu0 0.0
    %2785 = vmatpush1.xpose.msra.mxu0 0.0
    %2786 = vmatprep.mubr.f32.mxu0 0.0
    %2787 = vmatmul.mubr.f32.gmra.mrb[0].mxu0 %v2711
    %v2788 = vpop.f32.mrb[0].mxu0
    %v2789 = vadd.f32 %v2098, %v2788
    %v2790 = vpop.f32.mrb[0].mxu0
    %2791 = vmatprep.mubr.f32.mxu0 0.0
    %2792 = vmatmul.mubr.f32.gmra.mrb[0].mxu0 %v2714
    %v2793 = vpop.f32.mrb[0].mxu0
    %v2794 = vadd.f32 %v2099, %v2793
    %v2795 = vpop.f32.mrb[0].mxu0
    %2796 = vdwg.mxu0
    %vm2797 = vcmask 130048
    %v2798 = vsel %vm2797, %v2180, -inf
    %2799 = vmax.xlane.f32.xlu0 %v2798
    %v2800 = vpop.xlane.xlu0 %2799
    %v2801 = vsel %vm2797, %v2185, -inf
    %2802 = vmax.xlane.f32.xlu0 %v2801
    %v2803 = vpop.xlane.xlu0 %2802
    %v2804 = vsel %vm2797, %v2267, -inf
    %2805 = vmax.xlane.f32.xlu0 %v2804
    %v2806 = vpop.xlane.xlu0 %2805
    %v2807 = vsel %vm2797, %v2272, -inf
    %2808 = vmax.xlane.f32.xlu0 %v2807
    %v2809 = vpop.xlane.xlu0 %2808
    %v2810 = vsel %vm2797, %v2354, -inf
    %2811 = vmax.xlane.f32.xlu0 %v2810
    %v2812 = vpop.xlane.xlu0 %2811
    %v2813 = vsel %vm2797, %v2359, -inf
    %2814 = vmax.xlane.f32.xlu0 %v2813
    %v2815 = vpop.xlane.xlu0 %2814
    %v2816 = vsel %vm2797, %v2441, -inf
    %2817 = vmax.xlane.f32.xlu0 %v2816
    %v2818 = vpop.xlane.xlu0 %2817
    %v2819 = vsel %vm2797, %v2446, -inf
    %2820 = vmax.xlane.f32.xlu0 %v2819
    %v2821 = vpop.xlane.xlu0 %2820
    %v2822 = vsel %vm2797, %v2528, -inf
    %2823 = vmax.xlane.f32.xlu0 %v2822
    %v2824 = vpop.xlane.xlu0 %2823
    %v2825 = vsel %vm2797, %v2533, -inf
    %2826 = vmax.xlane.f32.xlu0 %v2825
    %v2827 = vpop.xlane.xlu0 %2826
    %v2828 = vsel %vm2797, %v2615, -inf
    %2829 = vmax.xlane.f32.xlu0 %v2828
    %v2830 = vpop.xlane.xlu0 %2829
    %v2831 = vsel %vm2797, %v2620, -inf
    %2832 = vmax.xlane.f32.xlu0 %v2831
    %v2833 = vpop.xlane.xlu0 %2832
    %v2834 = vsel %vm2797, %v2702, -inf
    %2835 = vmax.xlane.f32.xlu0 %v2834
    %v2836 = vpop.xlane.xlu0 %2835
    %v2837 = vsel %vm2797, %v2707, -inf
    %2838 = vmax.xlane.f32.xlu0 %v2837
    %v2839 = vpop.xlane.xlu0 %2838
    %v2840 = vsel %vm2797, %v2789, -inf
    %2841 = vmax.xlane.f32.xlu0 %v2840
    %v2842 = vpop.xlane.xlu0 %2841
    %v2843 = vsel %vm2797, %v2794, -inf
    %2844 = vmax.xlane.f32.xlu0 %v2843
    %v2845 = vpop.xlane.xlu0 %2844
    %v2846 = vsub.f32 %v2180, %v2800
    %v2847 = vsub.f32 %v2185, %v2803
    %v2848 = vsub.f32 %v2267, %v2806
    %v2849 = vsub.f32 %v2272, %v2809
    %v2850 = vsub.f32 %v2354, %v2812
    %v2851 = vsub.f32 %v2359, %v2815
    %v2852 = vsub.f32 %v2441, %v2818
    %v2853 = vsub.f32 %v2446, %v2821
    %v2854 = vsub.f32 %v2528, %v2824
    %v2855 = vsub.f32 %v2533, %v2827
    %v2856 = vsub.f32 %v2615, %v2830
    %v2857 = vsub.f32 %v2620, %v2833
    %v2858 = vsub.f32 %v2702, %v2836
    %v2859 = vsub.f32 %v2707, %v2839
    %v2860 = vsub.f32 %v2789, %v2842
    %v2861 = vsub.f32 %v2794, %v2845
    %v2862 = vmul.f32 %v2846, 1.442695
    %v2863 = vpow.pop %v2862
    %v2864 = vmul.f32 %v2847, 1.442695
    %v2865 = vpow.pop %v2864
    %v2866 = vmul.f32 %v2848, 1.442695
    %v2867 = vpow.pop %v2866
    %v2868 = vmul.f32 %v2849, 1.442695
    %v2869 = vpow.pop %v2868
    %v2870 = vmul.f32 %v2850, 1.442695
    %v2871 = vpow.pop %v2870
    %v2872 = vmul.f32 %v2851, 1.442695
    %v2873 = vpow.pop %v2872
    %v2874 = vmul.f32 %v2852, 1.442695
    %v2875 = vpow.pop %v2874
    %v2876 = vmul.f32 %v2853, 1.442695
    %v2877 = vpow.pop %v2876
    %v2878 = vmul.f32 %v2854, 1.442695
    %v2879 = vpow.pop %v2878
    %v2880 = vmul.f32 %v2855, 1.442695
    %v2881 = vpow.pop %v2880
    %v2882 = vmul.f32 %v2856, 1.442695
    %v2883 = vpow.pop %v2882
    %v2884 = vmul.f32 %v2857, 1.442695
    %v2885 = vpow.pop %v2884
    %v2886 = vmul.f32 %v2858, 1.442695
    %v2887 = vpow.pop %v2886
    %v2888 = vmul.f32 %v2859, 1.442695
    %v2889 = vpow.pop %v2888
    %v2890 = vmul.f32 %v2860, 1.442695
    %v2891 = vpow.pop %v2890
    %v2892 = vmul.f32 %v2861, 1.442695
    %v2893 = vpow.pop %v2892
    %v2894 = vsel %vm2797, %v2863, 0.0
    %2895 = vadd.xlane.f32.xlu0 %v2894
    %v2896 = vpop.xlane.xlu0 %2895
    %v2897 = vsel %vm2797, %v2865, 0.0
    %2898 = vadd.xlane.f32.xlu0 %v2897
    %v2899 = vpop.xlane.xlu0 %2898
    %v2900 = vsel %vm2797, %v2867, 0.0
    %2901 = vadd.xlane.f32.xlu0 %v2900
    %v2902 = vpop.xlane.xlu0 %2901
    %v2903 = vsel %vm2797, %v2869, 0.0
    %2904 = vadd.xlane.f32.xlu0 %v2903
    %v2905 = vpop.xlane.xlu0 %2904
    %v2906 = vsel %vm2797, %v2871, 0.0
    %2907 = vadd.xlane.f32.xlu0 %v2906
    %v2908 = vpop.xlane.xlu0 %2907
    %v2909 = vsel %vm2797, %v2873, 0.0
    %2910 = vadd.xlane.f32.xlu0 %v2909
    %v2911 = vpop.xlane.xlu0 %2910
    %v2912 = vsel %vm2797, %v2875, 0.0
    %2913 = vadd.xlane.f32.xlu0 %v2912
    %v2914 = vpop.xlane.xlu0 %2913
    %v2915 = vsel %vm2797, %v2877, 0.0
    %2916 = vadd.xlane.f32.xlu0 %v2915
    %v2917 = vpop.xlane.xlu0 %2916
    %v2918 = vsel %vm2797, %v2879, 0.0
    %2919 = vadd.xlane.f32.xlu0 %v2918
    %v2920 = vpop.xlane.xlu0 %2919
    %v2921 = vsel %vm2797, %v2881, 0.0
    %2922 = vadd.xlane.f32.xlu0 %v2921
    %v2923 = vpop.xlane.xlu0 %2922
    %v2924 = vsel %vm2797, %v2883, 0.0
    %2925 = vadd.xlane.f32.xlu0 %v2924
    %v2926 = vpop.xlane.xlu0 %2925
    %v2927 = vsel %vm2797, %v2885, 0.0
    %2928 = vadd.xlane.f32.xlu0 %v2927
    %v2929 = vpop.xlane.xlu0 %2928
    %v2930 = vsel %vm2797, %v2887, 0.0
    %2931 = vadd.xlane.f32.xlu0 %v2930
    %v2932 = vpop.xlane.xlu0 %2931
    %v2933 = vsel %vm2797, %v2889, 0.0
    %2934 = vadd.xlane.f32.xlu0 %v2933
    %v2935 = vpop.xlane.xlu0 %2934
    %v2936 = vsel %vm2797, %v2891, 0.0
    %2937 = vadd.xlane.f32.xlu0 %v2936
    %v2938 = vpop.xlane.xlu0 %2937
    %v2939 = vsel %vm2797, %v2893, 0.0
    %2940 = vadd.xlane.f32.xlu0 %v2939
    %v2941 = vpop.xlane.xlu0 %2940
    %v2942 = vrcp.pop %v2896
    %v2943 = vrcp.pop %v2899
    %v2944 = vrcp.pop %v2902
    %v2945 = vrcp.pop %v2905
    %v2946 = vrcp.pop %v2908
    %v2947 = vrcp.pop %v2911
    %v2948 = vrcp.pop %v2914
    %v2949 = vrcp.pop %v2917
    %v2950 = vrcp.pop %v2920
    %v2951 = vrcp.pop %v2923
    %v2952 = vrcp.pop %v2926
    %v2953 = vrcp.pop %v2929
    %v2954 = vrcp.pop %v2932
    %v2955 = vrcp.pop %v2935
    %v2956 = vrcp.pop %v2938
    %v2957 = vrcp.pop %v2941
    %v2958 = vmul.f32 %v2863, %v2942
    %v2959 = vmul.f32 %v2865, %v2943
    %v2960 = vmul.f32 %v2867, %v2944
    %v2961 = vmul.f32 %v2869, %v2945
    %v2962 = vmul.f32 %v2871, %v2946
    %v2963 = vmul.f32 %v2873, %v2947
    %v2964 = vmul.f32 %v2875, %v2948
    %v2965 = vmul.f32 %v2877, %v2949
    %v2966 = vmul.f32 %v2879, %v2950
    %v2967 = vmul.f32 %v2881, %v2951
    %v2968 = vmul.f32 %v2883, %v2952
    %v2969 = vmul.f32 %v2885, %v2953
    %v2970 = vmul.f32 %v2887, %v2954
    %v2971 = vmul.f32 %v2889, %v2955
    %v2972 = vmul.f32 %v2891, %v2956
    %v2973 = vmul.f32 %v2893, %v2957
    %v2975 = vsel %vm2797, %v2958, 0
    %v2978 = vsel %vm2797, %v2959, 0
    %2980 = vmatprep.subr.mxu0 0.0
    %2981 = vmatpush1.msra.mxu0 %v2060
    %2982 = vmatprep.subr.mxu0 0.0
    %2983 = vmatpush1.msra.mxu0 %v2061
    %2984 = vmatprep.subr.mxu0 0.0
    %2985 = vmatpush1.msra.mxu0 0.0
    %2986 = vmatprep.subr.mxu0 0.0
    %2987 = vmatpush1.msra.mxu0 0.0
    %2988 = vmatprep.subr.mxu0 0.0
    %2989 = vmatpush1.msra.mxu0 0.0
    %2990 = vmatprep.subr.mxu0 0.0
    %2991 = vmatpush1.msra.mxu0 0.0
    %2992 = vmatprep.subr.mxu0 0.0
    %2993 = vmatpush1.msra.mxu0 0.0
    %2994 = vmatprep.subr.mxu0 0.0
    %2995 = vmatpush1.msra.mxu0 0.0
    %2996 = vmatprep.subr.mxu0 0.0
    %2997 = vmatpush1.msra.mxu0 0.0
    %2998 = vmatprep.subr.mxu0 0.0
    %2999 = vmatpush1.msra.mxu0 0.0
    %3000 = vmatprep.subr.mxu0 0.0
    %3001 = vmatpush1.msra.mxu0 0.0
    %3002 = vmatprep.subr.mxu0 0.0
    %3003 = vmatpush1.msra.mxu0 0.0
    %3004 = vmatprep.subr.mxu0 0.0
    %3005 = vmatpush1.msra.mxu0 0.0
    %3006 = vmatprep.subr.mxu0 0.0
    %3007 = vmatpush1.msra.mxu0 0.0
    %3008 = vmatprep.subr.mxu0 0.0
    %3009 = vmatpush1.msra.mxu0 0.0
    %3010 = vmatprep.subr.mxu0 0.0
    %3011 = vmatpush1.msra.mxu0 0.0
    %3012 = vmatprep.subr.mxu0 0.0
    %3013 = vmatpush1.msra.mxu0 0.0
    %3014 = vmatprep.subr.mxu0 0.0
    %3015 = vmatpush1.msra.mxu0 0.0
    %3016 = vmatprep.subr.mxu0 0.0
    %3017 = vmatpush1.msra.mxu0 0.0
    %3018 = vmatprep.subr.mxu0 0.0
    %3019 = vmatpush1.msra.mxu0 0.0
    %3020 = vmatprep.subr.mxu0 0.0
    %3021 = vmatpush1.msra.mxu0 0.0
    %3022 = vmatprep.subr.mxu0 0.0
    %3023 = vmatpush1.msra.mxu0 0.0
    %3024 = vmatprep.subr.mxu0 0.0
    %3025 = vmatpush1.msra.mxu0 0.0
    %3026 = vmatprep.subr.mxu0 0.0
    %3027 = vmatpush1.msra.mxu0 0.0
    %3028 = vmatprep.subr.mxu0 0.0
    %3029 = vmatpush1.msra.mxu0 0.0
    %3030 = vmatprep.subr.mxu0 0.0
    %3031 = vmatpush1.msra.mxu0 0.0
    %3032 = vmatprep.subr.mxu0 0.0
    %3033 = vmatpush1.msra.mxu0 0.0
    %3034 = vmatprep.subr.mxu0 0.0
    %3035 = vmatpush1.msra.mxu0 0.0
    %3036 = vmatprep.subr.mxu0 0.0
    %3037 = vmatpush1.msra.mxu0 0.0
    %3038 = vmatprep.subr.mxu0 0.0
    %3039 = vmatpush1.msra.mxu0 0.0
    %3040 = vmatprep.subr.mxu0 0.0
    %3041 = vmatpush1.msra.mxu0 0.0
    %3042 = vmatprep.subr.mxu0 0.0
    %3043 = vmatpush1.msra.mxu0 0.0
    %3044 = vmatprep.mubr.f32.mxu0 0.0
    %3045 = vmatmul.mubr.f32.gmra.mrb[0].mxu0 %v2975
    %v3046 = vpop.f32.mrb[0].mxu0
    %v3047 = vadd.f32 0.0, %v3046
    %v3048 = vpop.f32.mrb[0].mxu0
    %3049 = vmatprep.mubr.f32.mxu0 0.0
    %3050 = vmatmul.mubr.f32.gmra.mrb[0].mxu0 %v2978
    %v3051 = vpop.f32.mrb[0].mxu0
    %v3052 = vadd.f32 0.0, %v3051
    %v3053 = vpop.f32.mrb[0].mxu0
    %3054 = vdwg.mxu0
    %v3056 = vsel %vm2797, %v2960, 0
    %v3059 = vsel %vm2797, %v2961, 0
    %3061 = vmatprep.subr.mxu0 0.0
    %3062 = vmatpush1.msra.mxu0 %v2062
    %3063 = vmatprep.subr.mxu0 0.0
    %3064 = vmatpush1.msra.mxu0 %v2063
    %3065 = vmatprep.subr.mxu0 0.0
    %3066 = vmatpush1.msra.mxu0 0.0
    %3067 = vmatprep.subr.mxu0 0.0
    %3068 = vmatpush1.msra.mxu0 0.0
    %3069 = vmatprep.subr.mxu0 0.0
    %3070 = vmatpush1.msra.mxu0 0.0
    %3071 = vmatprep.subr.mxu0 0.0
    %3072 = vmatpush1.msra.mxu0 0.0
    %3073 = vmatprep.subr.mxu0 0.0
    %3074 = vmatpush1.msra.mxu0 0.0
    %3075 = vmatprep.subr.mxu0 0.0
    %3076 = vmatpush1.msra.mxu0 0.0
    %3077 = vmatprep.subr.mxu0 0.0
    %3078 = vmatpush1.msra.mxu0 0.0
    %3079 = vmatprep.subr.mxu0 0.0
    %3080 = vmatpush1.msra.mxu0 0.0
    %3081 = vmatprep.subr.mxu0 0.0
    %3082 = vmatpush1.msra.mxu0 0.0
    %3083 = vmatprep.subr.mxu0 0.0
    %3084 = vmatpush1.msra.mxu0 0.0
    %3085 = vmatprep.subr.mxu0 0.0
    %3086 = vmatpush1.msra.mxu0 0.0
    %3087 = vmatprep.subr.mxu0 0.0
    %3088 = vmatpush1.msra.mxu0 0.0
    %3089 = vmatprep.subr.mxu0 0.0
    %3090 = vmatpush1.msra.mxu0 0.0
    %3091 = vmatprep.subr.mxu0 0.0
    %3092 = vmatpush1.msra.mxu0 0.0
    %3093 = vmatprep.subr.mxu0 0.0
    %3094 = vmatpush1.msra.mxu0 0.0
    %3095 = vmatprep.subr.mxu0 0.0
    %3096 = vmatpush1.msra.mxu0 0.0
    %3097 = vmatprep.subr.mxu0 0.0
    %3098 = vmatpush1.msra.mxu0 0.0
    %3099 = vmatprep.subr.mxu0 0.0
    %3100 = vmatpush1.msra.mxu0 0.0
    %3101 = vmatprep.subr.mxu0 0.0
    %3102 = vmatpush1.msra.mxu0 0.0
    %3103 = vmatprep.subr.mxu0 0.0
    %3104 = vmatpush1.msra.mxu0 0.0
    %3105 = vmatprep.subr.mxu0 0.0
    %3106 = vmatpush1.msra.mxu0 0.0
    %3107 = vmatprep.subr.mxu0 0.0
    %3108 = vmatpush1.msra.mxu0 0.0
    %3109 = vmatprep.subr.mxu0 0.0
    %3110 = vmatpush1.msra.mxu0 0.0
    %3111 = vmatprep.subr.mxu0 0.0
    %3112 = vmatpush1.msra.mxu0 0.0
    %3113 = vmatprep.subr.mxu0 0.0
    %3114 = vmatpush1.msra.mxu0 0.0
    %3115 = vmatprep.subr.mxu0 0.0
    %3116 = vmatpush1.msra.mxu0 0.0
    %3117 = vmatprep.subr.mxu0 0.0
    %3118 = vmatpush1.msra.mxu0 0.0
    %3119 = vmatprep.subr.mxu0 0.0
    %3120 = vmatpush1.msra.mxu0 0.0
    %3121 = vmatprep.subr.mxu0 0.0
    %3122 = vmatpush1.msra.mxu0 0.0
    %3123 = vmatprep.subr.mxu0 0.0
    %3124 = vmatpush1.msra.mxu0 0.0
    %3125 = vmatprep.mubr.f32.mxu0 0.0
    %3126 = vmatmul.mubr.f32.gmra.mrb[0].mxu0 %v3056
    %v3127 = vpop.f32.mrb[0].mxu0
    %v3128 = vadd.f32 0.0, %v3127
    %v3129 = vpop.f32.mrb[0].mxu0
    %3130 = vmatprep.mubr.f32.mxu0 0.0
    %3131 = vmatmul.mubr.f32.gmra.mrb[0].mxu0 %v3059
    %v3132 = vpop.f32.mrb[0].mxu0
    %v3133 = vadd.f32 0.0, %v3132
    %v3134 = vpop.f32.mrb[0].mxu0
    %3135 = vdwg.mxu0
    %v3137 = vsel %vm2797, %v2962, 0
    %v3140 = vsel %vm2797, %v2963, 0
    %3142 = vmatprep.subr.mxu0 0.0
    %3143 = vmatpush1.msra.mxu0 %v2064
    %3144 = vmatprep.subr.mxu0 0.0
    %3145 = vmatpush1.msra.mxu0 %v2065
    %3146 = vmatprep.subr.mxu0 0.0
    %3147 = vmatpush1.msra.mxu0 0.0
    %3148 = vmatprep.subr.mxu0 0.0
    %3149 = vmatpush1.msra.mxu0 0.0
    %3150 = vmatprep.subr.mxu0 0.0
    %3151 = vmatpush1.msra.mxu0 0.0
    %3152 = vmatprep.subr.mxu0 0.0
    %3153 = vmatpush1.msra.mxu0 0.0
    %3154 = vmatprep.subr.mxu0 0.0
    %3155 = vmatpush1.msra.mxu0 0.0
    %3156 = vmatprep.subr.mxu0 0.0
    %3157 = vmatpush1.msra.mxu0 0.0
    %3158 = vmatprep.subr.mxu0 0.0
    %3159 = vmatpush1.msra.mxu0 0.0
    %3160 = vmatprep.subr.mxu0 0.0
    %3161 = vmatpush1.msra.mxu0 0.0
    %3162 = vmatprep.subr.mxu0 0.0
    %3163 = vmatpush1.msra.mxu0 0.0
    %3164 = vmatprep.subr.mxu0 0.0
    %3165 = vmatpush1.msra.mxu0 0.0
    %3166 = vmatprep.subr.mxu0 0.0
    %3167 = vmatpush1.msra.mxu0 0.0
    %3168 = vmatprep.subr.mxu0 0.0
    %3169 = vmatpush1.msra.mxu0 0.0
    %3170 = vmatprep.subr.mxu0 0.0
    %3171 = vmatpush1.msra.mxu0 0.0
    %3172 = vmatprep.subr.mxu0 0.0
    %3173 = vmatpush1.msra.mxu0 0.0
    %3174 = vmatprep.subr.mxu0 0.0
    %3175 = vmatpush1.msra.mxu0 0.0
    %3176 = vmatprep.subr.mxu0 0.0
    %3177 = vmatpush1.msra.mxu0 0.0
    %3178 = vmatprep.subr.mxu0 0.0
    %3179 = vmatpush1.msra.mxu0 0.0
    %3180 = vmatprep.subr.mxu0 0.0
    %3181 = vmatpush1.msra.mxu0 0.0
    %3182 = vmatprep.subr.mxu0 0.0
    %3183 = vmatpush1.msra.mxu0 0.0
    %3184 = vmatprep.subr.mxu0 0.0
    %3185 = vmatpush1.msra.mxu0 0.0
    %3186 = vmatprep.subr.mxu0 0.0
    %3187 = vmatpush1.msra.mxu0 0.0
    %3188 = vmatprep.subr.mxu0 0.0
    %3189 = vmatpush1.msra.mxu0 0.0
    %3190 = vmatprep.subr.mxu0 0.0
    %3191 = vmatpush1.msra.mxu0 0.0
    %3192 = vmatprep.subr.mxu0 0.0
    %3193 = vmatpush1.msra.mxu0 0.0
    %3194 = vmatprep.subr.mxu0 0.0
    %3195 = vmatpush1.msra.mxu0 0.0
    %3196 = vmatprep.subr.mxu0 0.0
    %3197 = vmatpush1.msra.mxu0 0.0
    %3198 = vmatprep.subr.mxu0 0.0
    %3199 = vmatpush1.msra.mxu0 0.0
    %3200 = vmatprep.subr.mxu0 0.0
    %3201 = vmatpush1.msra.mxu0 0.0
    %3202 = vmatprep.subr.mxu0 0.0
    %3203 = vmatpush1.msra.mxu0 0.0
    %3204 = vmatprep.subr.mxu0 0.0
    %3205 = vmatpush1.msra.mxu0 0.0
    %3206 = vmatprep.mubr.f32.mxu0 0.0
    %3207 = vmatmul.mubr.f32.gmra.mrb[0].mxu0 %v3137
    %v3208 = vpop.f32.mrb[0].mxu0
    %v3209 = vadd.f32 0.0, %v3208
    %v3210 = vpop.f32.mrb[0].mxu0
    %3211 = vmatprep.mubr.f32.mxu0 0.0
    %3212 = vmatmul.mubr.f32.gmra.mrb[0].mxu0 %v3140
    %v3213 = vpop.f32.mrb[0].mxu0
    %v3214 = vadd.f32 0.0, %v3213
    %v3215 = vpop.f32.mrb[0].mxu0
    %3216 = vdwg.mxu0
    %v3218 = vsel %vm2797, %v2964, 0
    %v3221 = vsel %vm2797, %v2965, 0
    %3223 = vmatprep.subr.mxu0 0.0
    %3224 = vmatpush1.msra.mxu0 %v2066
    %3225 = vmatprep.subr.mxu0 0.0
    %3226 = vmatpush1.msra.mxu0 %v2067
    %3227 = vmatprep.subr.mxu0 0.0
    %3228 = vmatpush1.msra.mxu0 0.0
    %3229 = vmatprep.subr.mxu0 0.0
    %3230 = vmatpush1.msra.mxu0 0.0
    %3231 = vmatprep.subr.mxu0 0.0
    %3232 = vmatpush1.msra.mxu0 0.0
    %3233 = vmatprep.subr.mxu0 0.0
    %3234 = vmatpush1.msra.mxu0 0.0
    %3235 = vmatprep.subr.mxu0 0.0
    %3236 = vmatpush1.msra.mxu0 0.0
    %3237 = vmatprep.subr.mxu0 0.0
    %3238 = vmatpush1.msra.mxu0 0.0
    %3239 = vmatprep.subr.mxu0 0.0
    %3240 = vmatpush1.msra.mxu0 0.0
    %3241 = vmatprep.subr.mxu0 0.0
    %3242 = vmatpush1.msra.mxu0 0.0
    %3243 = vmatprep.subr.mxu0 0.0
    %3244 = vmatpush1.msra.mxu0 0.0
    %3245 = vmatprep.subr.mxu0 0.0
    %3246 = vmatpush1.msra.mxu0 0.0
    %3247 = vmatprep.subr.mxu0 0.0
    %3248 = vmatpush1.msra.mxu0 0.0
    %3249 = vmatprep.subr.mxu0 0.0
    %3250 = vmatpush1.msra.mxu0 0.0
    %3251 = vmatprep.subr.mxu0 0.0
    %3252 = vmatpush1.msra.mxu0 0.0
    %3253 = vmatprep.subr.mxu0 0.0
    %3254 = vmatpush1.msra.mxu0 0.0
    %3255 = vmatprep.subr.mxu0 0.0
    %3256 = vmatpush1.msra.mxu0 0.0
    %3257 = vmatprep.subr.mxu0 0.0
    %3258 = vmatpush1.msra.mxu0 0.0
    %3259 = vmatprep.subr.mxu0 0.0
    %3260 = vmatpush1.msra.mxu0 0.0
    %3261 = vmatprep.subr.mxu0 0.0
    %3262 = vmatpush1.msra.mxu0 0.0
    %3263 = vmatprep.subr.mxu0 0.0
    %3264 = vmatpush1.msra.mxu0 0.0
    %3265 = vmatprep.subr.mxu0 0.0
    %3266 = vmatpush1.msra.mxu0 0.0
    %3267 = vmatprep.subr.mxu0 0.0
    %3268 = vmatpush1.msra.mxu0 0.0
    %3269 = vmatprep.subr.mxu0 0.0
    %3270 = vmatpush1.msra.mxu0 0.0
    %3271 = vmatprep.subr.mxu0 0.0
    %3272 = vmatpush1.msra.mxu0 0.0
    %3273 = vmatprep.subr.mxu0 0.0
    %3274 = vmatpush1.msra.mxu0 0.0
    %3275 = vmatprep.subr.mxu0 0.0
    %3276 = vmatpush1.msra.mxu0 0.0
    %3277 = vmatprep.subr.mxu0 0.0
    %3278 = vmatpush1.msra.mxu0 0.0
    %3279 = vmatprep.subr.mxu0 0.0
    %3280 = vmatpush1.msra.mxu0 0.0
    %3281 = vmatprep.subr.mxu0 0.0
    %3282 = vmatpush1.msra.mxu0 0.0
    %3283 = vmatprep.subr.mxu0 0.0
    %3284 = vmatpush1.msra.mxu0 0.0
    %3285 = vmatprep.subr.mxu0 0.0
    %3286 = vmatpush1.msra.mxu0 0.0
    %3287 = vmatprep.mubr.f32.mxu0 0.0
    %3288 = vmatmul.mubr.f32.gmra.mrb[0].mxu0 %v3218
    %v3289 = vpop.f32.mrb[0].mxu0
    %v3290 = vadd.f32 0.0, %v3289
    %v3291 = vpop.f32.mrb[0].mxu0
    %3292 = vmatprep.mubr.f32.mxu0 0.0
    %3293 = vmatmul.mubr.f32.gmra.mrb[0].mxu0 %v3221
    %v3294 = vpop.f32.mrb[0].mxu0
    %v3295 = vadd.f32 0.0, %v3294
    %v3296 = vpop.f32.mrb[0].mxu0
    %3297 = vdwg.mxu0
    %v3299 = vsel %vm2797, %v2966, 0
    %v3302 = vsel %vm2797, %v2967, 0
    %3304 = vmatprep.subr.mxu0 0.0
    %3305 = vmatpush1.msra.mxu0 %v2068
    %3306 = vmatprep.subr.mxu0 0.0
    %3307 = vmatpush1.msra.mxu0 %v2069
    %3308 = vmatprep.subr.mxu0 0.0
    %3309 = vmatpush1.msra.mxu0 0.0
    %3310 = vmatprep.subr.mxu0 0.0
    %3311 = vmatpush1.msra.mxu0 0.0
    %3312 = vmatprep.subr.mxu0 0.0
    %3313 = vmatpush1.msra.mxu0 0.0
    %3314 = vmatprep.subr.mxu0 0.0
    %3315 = vmatpush1.msra.mxu0 0.0
    %3316 = vmatprep.subr.mxu0 0.0
    %3317 = vmatpush1.msra.mxu0 0.0
    %3318 = vmatprep.subr.mxu0 0.0
    %3319 = vmatpush1.msra.mxu0 0.0
    %3320 = vmatprep.subr.mxu0 0.0
    %3321 = vmatpush1.msra.mxu0 0.0
    %3322 = vmatprep.subr.mxu0 0.0
    %3323 = vmatpush1.msra.mxu0 0.0
    %3324 = vmatprep.subr.mxu0 0.0
    %3325 = vmatpush1.msra.mxu0 0.0
    %3326 = vmatprep.subr.mxu0 0.0
    %3327 = vmatpush1.msra.mxu0 0.0
    %3328 = vmatprep.subr.mxu0 0.0
    %3329 = vmatpush1.msra.mxu0 0.0
    %3330 = vmatprep.subr.mxu0 0.0
    %3331 = vmatpush1.msra.mxu0 0.0
    %3332 = vmatprep.subr.mxu0 0.0
    %3333 = vmatpush1.msra.mxu0 0.0
    %3334 = vmatprep.subr.mxu0 0.0
    %3335 = vmatpush1.msra.mxu0 0.0
    %3336 = vmatprep.subr.mxu0 0.0
    %3337 = vmatpush1.msra.mxu0 0.0
    %3338 = vmatprep.subr.mxu0 0.0
    %3339 = vmatpush1.msra.mxu0 0.0
    %3340 = vmatprep.subr.mxu0 0.0
    %3341 = vmatpush1.msra.mxu0 0.0
    %3342 = vmatprep.subr.mxu0 0.0
    %3343 = vmatpush1.msra.mxu0 0.0
    %3344 = vmatprep.subr.mxu0 0.0
    %3345 = vmatpush1.msra.mxu0 0.0
    %3346 = vmatprep.subr.mxu0 0.0
    %3347 = vmatpush1.msra.mxu0 0.0
    %3348 = vmatprep.subr.mxu0 0.0
    %3349 = vmatpush1.msra.mxu0 0.0
    %3350 = vmatprep.subr.mxu0 0.0
    %3351 = vmatpush1.msra.mxu0 0.0
    %3352 = vmatprep.subr.mxu0 0.0
    %3353 = vmatpush1.msra.mxu0 0.0
    %3354 = vmatprep.subr.mxu0 0.0
    %3355 = vmatpush1.msra.mxu0 0.0
    %3356 = vmatprep.subr.mxu0 0.0
    %3357 = vmatpush1.msra.mxu0 0.0
    %3358 = vmatprep.subr.mxu0 0.0
    %3359 = vmatpush1.msra.mxu0 0.0
    %3360 = vmatprep.subr.mxu0 0.0
    %3361 = vmatpush1.msra.mxu0 0.0
    %3362 = vmatprep.subr.mxu0 0.0
    %3363 = vmatpush1.msra.mxu0 0.0
    %3364 = vmatprep.subr.mxu0 0.0
    %3365 = vmatpush1.msra.mxu0 0.0
    %3366 = vmatprep.subr.mxu0 0.0
    %3367 = vmatpush1.msra.mxu0 0.0
    %3368 = vmatprep.mubr.f32.mxu0 0.0
    %3369 = vmatmul.mubr.f32.gmra.mrb[0].mxu0 %v3299
    %v3370 = vpop.f32.mrb[0].mxu0
    %v3371 = vadd.f32 0.0, %v3370
    %v3372 = vpop.f32.mrb[0].mxu0
    %3373 = vmatprep.mubr.f32.mxu0 0.0
    %3374 = vmatmul.mubr.f32.gmra.mrb[0].mxu0 %v3302
    %v3375 = vpop.f32.mrb[0].mxu0
    %v3376 = vadd.f32 0.0, %v3375
    %v3377 = vpop.f32.mrb[0].mxu0
    %3378 = vdwg.mxu0
    %v3380 = vsel %vm2797, %v2968, 0
    %v3383 = vsel %vm2797, %v2969, 0
    %3385 = vmatprep.subr.mxu0 0.0
    %3386 = vmatpush1.msra.mxu0 %v2070
    %3387 = vmatprep.subr.mxu0 0.0
    %3388 = vmatpush1.msra.mxu0 %v2071
    %3389 = vmatprep.subr.mxu0 0.0
    %3390 = vmatpush1.msra.mxu0 0.0
    %3391 = vmatprep.subr.mxu0 0.0
    %3392 = vmatpush1.msra.mxu0 0.0
    %3393 = vmatprep.subr.mxu0 0.0
    %3394 = vmatpush1.msra.mxu0 0.0
    %3395 = vmatprep.subr.mxu0 0.0
    %3396 = vmatpush1.msra.mxu0 0.0
    %3397 = vmatprep.subr.mxu0 0.0
    %3398 = vmatpush1.msra.mxu0 0.0
    %3399 = vmatprep.subr.mxu0 0.0
    %3400 = vmatpush1.msra.mxu0 0.0
    %3401 = vmatprep.subr.mxu0 0.0
    %3402 = vmatpush1.msra.mxu0 0.0
    %3403 = vmatprep.subr.mxu0 0.0
    %3404 = vmatpush1.msra.mxu0 0.0
    %3405 = vmatprep.subr.mxu0 0.0
    %3406 = vmatpush1.msra.mxu0 0.0
    %3407 = vmatprep.subr.mxu0 0.0
    %3408 = vmatpush1.msra.mxu0 0.0
    %3409 = vmatprep.subr.mxu0 0.0
    %3410 = vmatpush1.msra.mxu0 0.0
    %3411 = vmatprep.subr.mxu0 0.0
    %3412 = vmatpush1.msra.mxu0 0.0
    %3413 = vmatprep.subr.mxu0 0.0
    %3414 = vmatpush1.msra.mxu0 0.0
    %3415 = vmatprep.subr.mxu0 0.0
    %3416 = vmatpush1.msra.mxu0 0.0
    %3417 = vmatprep.subr.mxu0 0.0
    %3418 = vmatpush1.msra.mxu0 0.0
    %3419 = vmatprep.subr.mxu0 0.0
    %3420 = vmatpush1.msra.mxu0 0.0
    %3421 = vmatprep.subr.mxu0 0.0
    %3422 = vmatpush1.msra.mxu0 0.0
    %3423 = vmatprep.subr.mxu0 0.0
    %3424 = vmatpush1.msra.mxu0 0.0
    %3425 = vmatprep.subr.mxu0 0.0
    %3426 = vmatpush1.msra.mxu0 0.0
    %3427 = vmatprep.subr.mxu0 0.0
    %3428 = vmatpush1.msra.mxu0 0.0
    %3429 = vmatprep.subr.mxu0 0.0
    %3430 = vmatpush1.msra.mxu0 0.0
    %3431 = vmatprep.subr.mxu0 0.0
    %3432 = vmatpush1.msra.mxu0 0.0
    %3433 = vmatprep.subr.mxu0 0.0
    %3434 = vmatpush1.msra.mxu0 0.0
    %3435 = vmatprep.subr.mxu0 0.0
    %3436 = vmatpush1.msra.mxu0 0.0
    %3437 = vmatprep.subr.mxu0 0.0
    %3438 = vmatpush1.msra.mxu0 0.0
    %3439 = vmatprep.subr.mxu0 0.0
    %3440 = vmatpush1.msra.mxu0 0.0
    %3441 = vmatprep.subr.mxu0 0.0
    %3442 = vmatpush1.msra.mxu0 0.0
    %3443 = vmatprep.subr.mxu0 0.0
    %3444 = vmatpush1.msra.mxu0 0.0
    %3445 = vmatprep.subr.mxu0 0.0
    %3446 = vmatpush1.msra.mxu0 0.0
    %3447 = vmatprep.subr.mxu0 0.0
    %3448 = vmatpush1.msra.mxu0 0.0
    %3449 = vmatprep.mubr.f32.mxu0 0.0
    %3450 = vmatmul.mubr.f32.gmra.mrb[0].mxu0 %v3380
    %v3451 = vpop.f32.mrb[0].mxu0
    %v3452 = vadd.f32 0.0, %v3451
    %v3453 = vpop.f32.mrb[0].mxu0
    %3454 = vmatprep.mubr.f32.mxu0 0.0
    %3455 = vmatmul.mubr.f32.gmra.mrb[0].mxu0 %v3383
    %v3456 = vpop.f32.mrb[0].mxu0
    %v3457 = vadd.f32 0.0, %v3456
    %v3458 = vpop.f32.mrb[0].mxu0
    %3459 = vdwg.mxu0
    %v3461 = vsel %vm2797, %v2970, 0
    %v3464 = vsel %vm2797, %v2971, 0
    %3466 = vmatprep.subr.mxu0 0.0
    %3467 = vmatpush1.msra.mxu0 %v2072
    %3468 = vmatprep.subr.mxu0 0.0
    %3469 = vmatpush1.msra.mxu0 %v2073
    %3470 = vmatprep.subr.mxu0 0.0
    %3471 = vmatpush1.msra.mxu0 0.0
    %3472 = vmatprep.subr.mxu0 0.0
    %3473 = vmatpush1.msra.mxu0 0.0
    %3474 = vmatprep.subr.mxu0 0.0
    %3475 = vmatpush1.msra.mxu0 0.0
    %3476 = vmatprep.subr.mxu0 0.0
    %3477 = vmatpush1.msra.mxu0 0.0
    %3478 = vmatprep.subr.mxu0 0.0
    %3479 = vmatpush1.msra.mxu0 0.0
    %3480 = vmatprep.subr.mxu0 0.0
    %3481 = vmatpush1.msra.mxu0 0.0
    %3482 = vmatprep.subr.mxu0 0.0
    %3483 = vmatpush1.msra.mxu0 0.0
    %3484 = vmatprep.subr.mxu0 0.0
    %3485 = vmatpush1.msra.mxu0 0.0
    %3486 = vmatprep.subr.mxu0 0.0
    %3487 = vmatpush1.msra.mxu0 0.0
    %3488 = vmatprep.subr.mxu0 0.0
    %3489 = vmatpush1.msra.mxu0 0.0
    %3490 = vmatprep.subr.mxu0 0.0
    %3491 = vmatpush1.msra.mxu0 0.0
    %3492 = vmatprep.subr.mxu0 0.0
    %3493 = vmatpush1.msra.mxu0 0.0
    %3494 = vmatprep.subr.mxu0 0.0
    %3495 = vmatpush1.msra.mxu0 0.0
    %3496 = vmatprep.subr.mxu0 0.0
    %3497 = vmatpush1.msra.mxu0 0.0
    %3498 = vmatprep.subr.mxu0 0.0
    %3499 = vmatpush1.msra.mxu0 0.0
    %3500 = vmatprep.subr.mxu0 0.0
    %3501 = vmatpush1.msra.mxu0 0.0
    %3502 = vmatprep.subr.mxu0 0.0
    %3503 = vmatpush1.msra.mxu0 0.0
    %3504 = vmatprep.subr.mxu0 0.0
    %3505 = vmatpush1.msra.mxu0 0.0
    %3506 = vmatprep.subr.mxu0 0.0
    %3507 = vmatpush1.msra.mxu0 0.0
    %3508 = vmatprep.subr.mxu0 0.0
    %3509 = vmatpush1.msra.mxu0 0.0
    %3510 = vmatprep.subr.mxu0 0.0
    %3511 = vmatpush1.msra.mxu0 0.0
    %3512 = vmatprep.subr.mxu0 0.0
    %3513 = vmatpush1.msra.mxu0 0.0
    %3514 = vmatprep.subr.mxu0 0.0
    %3515 = vmatpush1.msra.mxu0 0.0
    %3516 = vmatprep.subr.mxu0 0.0
    %3517 = vmatpush1.msra.mxu0 0.0
    %3518 = vmatprep.subr.mxu0 0.0
    %3519 = vmatpush1.msra.mxu0 0.0
    %3520 = vmatprep.subr.mxu0 0.0
    %3521 = vmatpush1.msra.mxu0 0.0
    %3522 = vmatprep.subr.mxu0 0.0
    %3523 = vmatpush1.msra.mxu0 0.0
    %3524 = vmatprep.subr.mxu0 0.0
    %3525 = vmatpush1.msra.mxu0 0.0
    %3526 = vmatprep.subr.mxu0 0.0
    %3527 = vmatpush1.msra.mxu0 0.0
    %3528 = vmatprep.subr.mxu0 0.0
    %3529 = vmatpush1.msra.mxu0 0.0
    %3530 = vmatprep.mubr.f32.mxu0 0.0
    %3531 = vmatmul.mubr.f32.gmra.mrb[0].mxu0 %v3461
    %v3532 = vpop.f32.mrb[0].mxu0
    %v3533 = vadd.f32 0.0, %v3532
    %v3534 = vpop.f32.mrb[0].mxu0
    %3535 = vmatprep.mubr.f32.mxu0 0.0
    %3536 = vmatmul.mubr.f32.gmra.mrb[0].mxu0 %v3464
    %v3537 = vpop.f32.mrb[0].mxu0
    %v3538 = vadd.f32 0.0, %v3537
    %v3539 = vpop.f32.mrb[0].mxu0
    %3540 = vdwg.mxu0
    %v3542 = vsel %vm2797, %v2972, 0
    %v3545 = vsel %vm2797, %v2973, 0
    %3547 = vmatprep.subr.mxu0 0.0
    %3548 = vmatpush1.msra.mxu0 %v2074
    %3549 = vmatprep.subr.mxu0 0.0
    %3550 = vmatpush1.msra.mxu0 %v2075
    %3551 = vmatprep.subr.mxu0 0.0
    %3552 = vmatpush1.msra.mxu0 0.0
    %3553 = vmatprep.subr.mxu0 0.0
    %3554 = vmatpush1.msra.mxu0 0.0
    %3555 = vmatprep.subr.mxu0 0.0
    %3556 = vmatpush1.msra.mxu0 0.0
    %3557 = vmatprep.subr.mxu0 0.0
    %3558 = vmatpush1.msra.mxu0 0.0
    %3559 = vmatprep.subr.mxu0 0.0
    %3560 = vmatpush1.msra.mxu0 0.0
    %3561 = vmatprep.subr.mxu0 0.0
    %3562 = vmatpush1.msra.mxu0 0.0
    %3563 = vmatprep.subr.mxu0 0.0
    %3564 = vmatpush1.msra.mxu0 0.0
    %3565 = vmatprep.subr.mxu0 0.0
    %3566 = vmatpush1.msra.mxu0 0.0
    %3567 = vmatprep.subr.mxu0 0.0
    %3568 = vmatpush1.msra.mxu0 0.0
    %3569 = vmatprep.subr.mxu0 0.0
    %3570 = vmatpush1.msra.mxu0 0.0
    %3571 = vmatprep.subr.mxu0 0.0
    %3572 = vmatpush1.msra.mxu0 0.0
    %3573 = vmatprep.subr.mxu0 0.0
    %3574 = vmatpush1.msra.mxu0 0.0
    %3575 = vmatprep.subr.mxu0 0.0
    %3576 = vmatpush1.msra.mxu0 0.0
    %3577 = vmatprep.subr.mxu0 0.0
    %3578 = vmatpush1.msra.mxu0 0.0
    %3579 = vmatprep.subr.mxu0 0.0
    %3580 = vmatpush1.msra.mxu0 0.0
    %3581 = vmatprep.subr.mxu0 0.0
    %3582 = vmatpush1.msra.mxu0 0.0
    %3583 = vmatprep.subr.mxu0 0.0
    %3584 = vmatpush1.msra.mxu0 0.0
    %3585 = vmatprep.subr.mxu0 0.0
    %3586 = vmatpush1.msra.mxu0 0.0
    %3587 = vmatprep.subr.mxu0 0.0
    %3588 = vmatpush1.msra.mxu0 0.0
    %3589 = vmatprep.subr.mxu0 0.0
    %3590 = vmatpush1.msra.mxu0 0.0
    %3591 = vmatprep.subr.mxu0 0.0
    %3592 = vmatpush1.msra.mxu0 0.0
    %3593 = vmatprep.subr.mxu0 0.0
    %3594 = vmatpush1.msra.mxu0 0.0
    %3595 = vmatprep.subr.mxu0 0.0
    %3596 = vmatpush1.msra.mxu0 0.0
    %3597 = vmatprep.subr.mxu0 0.0
    %3598 = vmatpush1.msra.mxu0 0.0
    %3599 = vmatprep.subr.mxu0 0.0
    %3600 = vmatpush1.msra.mxu0 0.0
    %3601 = vmatprep.subr.mxu0 0.0
    %3602 = vmatpush1.msra.mxu0 0.0
    %3603 = vmatprep.subr.mxu0 0.0
    %3604 = vmatpush1.msra.mxu0 0.0
    %3605 = vmatprep.subr.mxu0 0.0
    %3606 = vmatpush1.msra.mxu0 0.0
    %3607 = vmatprep.subr.mxu0 0.0
    %3608 = vmatpush1.msra.mxu0 0.0
    %3609 = vmatprep.subr.mxu0 0.0
    %3610 = vmatpush1.msra.mxu0 0.0
    %3611 = vmatprep.mubr.f32.mxu0 0.0
    %3612 = vmatmul.mubr.f32.gmra.mrb[0].mxu0 %v3542
    %v3613 = vpop.f32.mrb[0].mxu0
    %v3614 = vadd.f32 0.0, %v3613
    %v3615 = vpop.f32.mrb[0].mxu0
    %3616 = vmatprep.mubr.f32.mxu0 0.0
    %3617 = vmatmul.mubr.f32.gmra.mrb[0].mxu0 %v3545
    %v3618 = vpop.f32.mrb[0].mxu0
    %v3619 = vadd.f32 0.0, %v3618
    %v3620 = vpop.f32.mrb[0].mxu0
    %3621 = vdwg.mxu0
    %v3622 = vld [vmem:[#allocation7] sm:$0xff]
    %v3623 = vld [vmem:[#allocation7 + $0x8] sm:$0xff]
    %v3624 = vld [vmem:[#allocation7 + $0x10] sm:$0xff]
    %v3625 = vld [vmem:[#allocation7 + $0x18] sm:$0xff]
    %v3627 = vsel %vm2100, %v3047, 0
    %v3630 = vsel %vm2100, %v3052, 0
    %3632 = vmatprep.subr.mxu0 0.0
    %3633 = vmatpush1.msra.mxu0 %v3622
    %3634 = vmatprep.subr.mxu0 0.0
    %3635 = vmatpush1.msra.mxu0 0.0
    %3636 = vmatprep.subr.mxu0 0.0
    %3637 = vmatpush1.msra.mxu0 0.0
    %3638 = vmatprep.subr.mxu0 0.0
    %3639 = vmatpush1.msra.mxu0 0.0
    %3640 = vmatprep.subr.mxu0 0.0
    %3641 = vmatpush1.msra.mxu0 0.0
    %3642 = vmatprep.subr.mxu0 0.0
    %3643 = vmatpush1.msra.mxu0 0.0
    %3644 = vmatprep.subr.mxu0 0.0
    %3645 = vmatpush1.msra.mxu0 0.0
    %3646 = vmatprep.subr.mxu0 0.0
    %3647 = vmatpush1.msra.mxu0 0.0
    %3648 = vmatprep.subr.mxu0 0.0
    %3649 = vmatpush1.msra.mxu0 0.0
    %3650 = vmatprep.subr.mxu0 0.0
    %3651 = vmatpush1.msra.mxu0 0.0
    %3652 = vmatprep.subr.mxu0 0.0
    %3653 = vmatpush1.msra.mxu0 0.0
    %3654 = vmatprep.subr.mxu0 0.0
    %3655 = vmatpush1.msra.mxu0 0.0
    %3656 = vmatprep.subr.mxu0 0.0
    %3657 = vmatpush1.msra.mxu0 0.0
    %3658 = vmatprep.subr.mxu0 0.0
    %3659 = vmatpush1.msra.mxu0 0.0
    %3660 = vmatprep.subr.mxu0 0.0
    %3661 = vmatpush1.msra.mxu0 0.0
    %3662 = vmatprep.subr.mxu0 0.0
    %3663 = vmatpush1.msra.mxu0 0.0
    %3664 = vmatprep.subr.mxu0 0.0
    %3665 = vmatpush1.msra.mxu0 0.0
    %3666 = vmatprep.subr.mxu0 0.0
    %3667 = vmatpush1.msra.mxu0 0.0
    %3668 = vmatprep.subr.mxu0 0.0
    %3669 = vmatpush1.msra.mxu0 0.0
    %3670 = vmatprep.subr.mxu0 0.0
    %3671 = vmatpush1.msra.mxu0 0.0
    %3672 = vmatprep.subr.mxu0 0.0
    %3673 = vmatpush1.msra.mxu0 0.0
    %3674 = vmatprep.subr.mxu0 0.0
    %3675 = vmatpush1.msra.mxu0 0.0
    %3676 = vmatprep.subr.mxu0 0.0
    %3677 = vmatpush1.msra.mxu0 0.0
    %3678 = vmatprep.subr.mxu0 0.0
    %3679 = vmatpush1.msra.mxu0 0.0
    %3680 = vmatprep.subr.mxu0 0.0
    %3681 = vmatpush1.msra.mxu0 0.0
    %3682 = vmatprep.subr.mxu0 0.0
    %3683 = vmatpush1.msra.mxu0 0.0
    %3684 = vmatprep.subr.mxu0 0.0
    %3685 = vmatpush1.msra.mxu0 0.0
    %3686 = vmatprep.subr.mxu0 0.0
    %3687 = vmatpush1.msra.mxu0 0.0
    %3688 = vmatprep.subr.mxu0 0.0
    %3689 = vmatpush1.msra.mxu0 0.0
    %3690 = vmatprep.subr.mxu0 0.0
    %3691 = vmatpush1.msra.mxu0 0.0
    %3692 = vmatprep.subr.mxu0 0.0
    %3693 = vmatpush1.msra.mxu0 0.0
    %3694 = vmatprep.subr.mxu0 0.0
    %3695 = vmatpush1.msra.mxu0 0.0
    %3696 = vmatprep.mubr.f32.mxu0 0.0
    %3697 = vmatmul.mubr.f32.gmra.mrb[0].mxu0 %v3627
    %v3698 = vpop.f32.mrb[0].mxu0
    %v3699 = vadd.f32 0.0, %v3698
    %v3700 = vpop.f32.mrb[0].mxu0
    %3701 = vmatprep.mubr.f32.mxu0 0.0
    %3702 = vmatmul.mubr.f32.gmra.mrb[0].mxu0 %v3630
    %v3703 = vpop.f32.mrb[0].mxu0
    %v3704 = vadd.f32 0.0, %v3703
    %v3705 = vpop.f32.mrb[0].mxu0
    %3706 = vdwg.mxu0
    %v3708 = vsel %vm2100, %v3128, 0
    %v3711 = vsel %vm2100, %v3133, 0
    %3713 = vmatprep.subr.mxu0 0.0
    %3714 = vmatpush1.msra.mxu0 %v3622
    %3715 = vmatprep.subr.mxu0 0.0
    %3716 = vmatpush1.msra.mxu0 0.0
    %3717 = vmatprep.subr.mxu0 0.0
    %3718 = vmatpush1.msra.mxu0 0.0
    %3719 = vmatprep.subr.mxu0 0.0
    %3720 = vmatpush1.msra.mxu0 0.0
    %3721 = vmatprep.subr.mxu0 0.0
    %3722 = vmatpush1.msra.mxu0 0.0
    %3723 = vmatprep.subr.mxu0 0.0
    %3724 = vmatpush1.msra.mxu0 0.0
    %3725 = vmatprep.subr.mxu0 0.0
    %3726 = vmatpush1.msra.mxu0 0.0
    %3727 = vmatprep.subr.mxu0 0.0
    %3728 = vmatpush1.msra.mxu0 0.0
    %3729 = vmatprep.subr.mxu0 0.0
    %3730 = vmatpush1.msra.mxu0 0.0
    %3731 = vmatprep.subr.mxu0 0.0
    %3732 = vmatpush1.msra.mxu0 0.0
    %3733 = vmatprep.subr.mxu0 0.0
    %3734 = vmatpush1.msra.mxu0 0.0
    %3735 = vmatprep.subr.mxu0 0.0
    %3736 = vmatpush1.msra.mxu0 0.0
    %3737 = vmatprep.subr.mxu0 0.0
    %3738 = vmatpush1.msra.mxu0 0.0
    %3739 = vmatprep.subr.mxu0 0.0
    %3740 = vmatpush1.msra.mxu0 0.0
    %3741 = vmatprep.subr.mxu0 0.0
    %3742 = vmatpush1.msra.mxu0 0.0
    %3743 = vmatprep.subr.mxu0 0.0
    %3744 = vmatpush1.msra.mxu0 0.0
    %3745 = vmatprep.subr.mxu0 0.0
    %3746 = vmatpush1.msra.mxu0 0.0
    %3747 = vmatprep.subr.mxu0 0.0
    %3748 = vmatpush1.msra.mxu0 0.0
    %3749 = vmatprep.subr.mxu0 0.0
    %3750 = vmatpush1.msra.mxu0 0.0
    %3751 = vmatprep.subr.mxu0 0.0
    %3752 = vmatpush1.msra.mxu0 0.0
    %3753 = vmatprep.subr.mxu0 0.0
    %3754 = vmatpush1.msra.mxu0 0.0
    %3755 = vmatprep.subr.mxu0 0.0
    %3756 = vmatpush1.msra.mxu0 0.0
    %3757 = vmatprep.subr.mxu0 0.0
    %3758 = vmatpush1.msra.mxu0 0.0
    %3759 = vmatprep.subr.mxu0 0.0
    %3760 = vmatpush1.msra.mxu0 0.0
    %3761 = vmatprep.subr.mxu0 0.0
    %3762 = vmatpush1.msra.mxu0 0.0
    %3763 = vmatprep.subr.mxu0 0.0
    %3764 = vmatpush1.msra.mxu0 0.0
    %3765 = vmatprep.subr.mxu0 0.0
    %3766 = vmatpush1.msra.mxu0 0.0
    %3767 = vmatprep.subr.mxu0 0.0
    %3768 = vmatpush1.msra.mxu0 0.0
    %3769 = vmatprep.subr.mxu0 0.0
    %3770 = vmatpush1.msra.mxu0 0.0
    %3771 = vmatprep.subr.mxu0 0.0
    %3772 = vmatpush1.msra.mxu0 0.0
    %3773 = vmatprep.subr.mxu0 0.0
    %3774 = vmatpush1.msra.mxu0 0.0
    %3775 = vmatprep.subr.mxu0 0.0
    %3776 = vmatpush1.msra.mxu0 0.0
    %3777 = vmatprep.mubr.f32.mxu0 0.0
    %3778 = vmatmul.mubr.f32.gmra.mrb[0].mxu0 %v3708
    %v3779 = vpop.f32.mrb[0].mxu0
    %v3780 = vadd.f32 0.0, %v3779
    %v3781 = vpop.f32.mrb[0].mxu0
    %3782 = vmatprep.mubr.f32.mxu0 0.0
    %3783 = vmatmul.mubr.f32.gmra.mrb[0].mxu0 %v3711
    %v3784 = vpop.f32.mrb[0].mxu0
    %v3785 = vadd.f32 0.0, %v3784
    %v3786 = vpop.f32.mrb[0].mxu0
    %3787 = vdwg.mxu0
    %v3789 = vsel %vm2100, %v3209, 0
    %v3792 = vsel %vm2100, %v3214, 0
    %3794 = vmatprep.subr.mxu0 0.0
    %3795 = vmatpush1.msra.mxu0 %v3623
    %3796 = vmatprep.subr.mxu0 0.0
    %3797 = vmatpush1.msra.mxu0 0.0
    %3798 = vmatprep.subr.mxu0 0.0
    %3799 = vmatpush1.msra.mxu0 0.0
    %3800 = vmatprep.subr.mxu0 0.0
    %3801 = vmatpush1.msra.mxu0 0.0
    %3802 = vmatprep.subr.mxu0 0.0
    %3803 = vmatpush1.msra.mxu0 0.0
    %3804 = vmatprep.subr.mxu0 0.0
    %3805 = vmatpush1.msra.mxu0 0.0
    %3806 = vmatprep.subr.mxu0 0.0
    %3807 = vmatpush1.msra.mxu0 0.0
    %3808 = vmatprep.subr.mxu0 0.0
    %3809 = vmatpush1.msra.mxu0 0.0
    %3810 = vmatprep.subr.mxu0 0.0
    %3811 = vmatpush1.msra.mxu0 0.0
    %3812 = vmatprep.subr.mxu0 0.0
    %3813 = vmatpush1.msra.mxu0 0.0
    %3814 = vmatprep.subr.mxu0 0.0
    %3815 = vmatpush1.msra.mxu0 0.0
    %3816 = vmatprep.subr.mxu0 0.0
    %3817 = vmatpush1.msra.mxu0 0.0
    %3818 = vmatprep.subr.mxu0 0.0
    %3819 = vmatpush1.msra.mxu0 0.0
    %3820 = vmatprep.subr.mxu0 0.0
    %3821 = vmatpush1.msra.mxu0 0.0
    %3822 = vmatprep.subr.mxu0 0.0
    %3823 = vmatpush1.msra.mxu0 0.0
    %3824 = vmatprep.subr.mxu0 0.0
    %3825 = vmatpush1.msra.mxu0 0.0
    %3826 = vmatprep.subr.mxu0 0.0
    %3827 = vmatpush1.msra.mxu0 0.0
    %3828 = vmatprep.subr.mxu0 0.0
    %3829 = vmatpush1.msra.mxu0 0.0
    %3830 = vmatprep.subr.mxu0 0.0
    %3831 = vmatpush1.msra.mxu0 0.0
    %3832 = vmatprep.subr.mxu0 0.0
    %3833 = vmatpush1.msra.mxu0 0.0
    %3834 = vmatprep.subr.mxu0 0.0
    %3835 = vmatpush1.msra.mxu0 0.0
    %3836 = vmatprep.subr.mxu0 0.0
    %3837 = vmatpush1.msra.mxu0 0.0
    %3838 = vmatprep.subr.mxu0 0.0
    %3839 = vmatpush1.msra.mxu0 0.0
    %3840 = vmatprep.subr.mxu0 0.0
    %3841 = vmatpush1.msra.mxu0 0.0
    %3842 = vmatprep.subr.mxu0 0.0
    %3843 = vmatpush1.msra.mxu0 0.0
    %3844 = vmatprep.subr.mxu0 0.0
    %3845 = vmatpush1.msra.mxu0 0.0
    %3846 = vmatprep.subr.mxu0 0.0
    %3847 = vmatpush1.msra.mxu0 0.0
    %3848 = vmatprep.subr.mxu0 0.0
    %3849 = vmatpush1.msra.mxu0 0.0
    %3850 = vmatprep.subr.mxu0 0.0
    %3851 = vmatpush1.msra.mxu0 0.0
    %3852 = vmatprep.subr.mxu0 0.0
    %3853 = vmatpush1.msra.mxu0 0.0
    %3854 = vmatprep.subr.mxu0 0.0
    %3855 = vmatpush1.msra.mxu0 0.0
    %3856 = vmatprep.subr.mxu0 0.0
    %3857 = vmatpush1.msra.mxu0 0.0
    %3858 = vmatprep.mubr.f32.mxu0 0.0
    %3859 = vmatmul.mubr.f32.gmra.mrb[0].mxu0 %v3789
    %v3860 = vpop.f32.mrb[0].mxu0
    %v3861 = vadd.f32 0.0, %v3860
    %v3862 = vpop.f32.mrb[0].mxu0
    %3863 = vmatprep.mubr.f32.mxu0 0.0
    %3864 = vmatmul.mubr.f32.gmra.mrb[0].mxu0 %v3792
    %v3865 = vpop.f32.mrb[0].mxu0
    %v3866 = vadd.f32 0.0, %v3865
    %v3867 = vpop.f32.mrb[0].mxu0
    %3868 = vdwg.mxu0
    %v3870 = vsel %vm2100, %v3290, 0
    %v3873 = vsel %vm2100, %v3295, 0
    %3875 = vmatprep.subr.mxu0 0.0
    %3876 = vmatpush1.msra.mxu0 %v3623
    %3877 = vmatprep.subr.mxu0 0.0
    %3878 = vmatpush1.msra.mxu0 0.0
    %3879 = vmatprep.subr.mxu0 0.0
    %3880 = vmatpush1.msra.mxu0 0.0
    %3881 = vmatprep.subr.mxu0 0.0
    %3882 = vmatpush1.msra.mxu0 0.0
    %3883 = vmatprep.subr.mxu0 0.0
    %3884 = vmatpush1.msra.mxu0 0.0
    %3885 = vmatprep.subr.mxu0 0.0
    %3886 = vmatpush1.msra.mxu0 0.0
    %3887 = vmatprep.subr.mxu0 0.0
    %3888 = vmatpush1.msra.mxu0 0.0
    %3889 = vmatprep.subr.mxu0 0.0
    %3890 = vmatpush1.msra.mxu0 0.0
    %3891 = vmatprep.subr.mxu0 0.0
    %3892 = vmatpush1.msra.mxu0 0.0
    %3893 = vmatprep.subr.mxu0 0.0
    %3894 = vmatpush1.msra.mxu0 0.0
    %3895 = vmatprep.subr.mxu0 0.0
    %3896 = vmatpush1.msra.mxu0 0.0
    %3897 = vmatprep.subr.mxu0 0.0
    %3898 = vmatpush1.msra.mxu0 0.0
    %3899 = vmatprep.subr.mxu0 0.0
    %3900 = vmatpush1.msra.mxu0 0.0
    %3901 = vmatprep.subr.mxu0 0.0
    %3902 = vmatpush1.msra.mxu0 0.0
    %3903 = vmatprep.subr.mxu0 0.0
    %3904 = vmatpush1.msra.mxu0 0.0
    %3905 = vmatprep.subr.mxu0 0.0
    %3906 = vmatpush1.msra.mxu0 0.0
    %3907 = vmatprep.subr.mxu0 0.0
    %3908 = vmatpush1.msra.mxu0 0.0
    %3909 = vmatprep.subr.mxu0 0.0
    %3910 = vmatpush1.msra.mxu0 0.0
    %3911 = vmatprep.subr.mxu0 0.0
    %3912 = vmatpush1.msra.mxu0 0.0
    %3913 = vmatprep.subr.mxu0 0.0
    %3914 = vmatpush1.msra.mxu0 0.0
    %3915 = vmatprep.subr.mxu0 0.0
    %3916 = vmatpush1.msra.mxu0 0.0
    %3917 = vmatprep.subr.mxu0 0.0
    %3918 = vmatpush1.msra.mxu0 0.0
    %3919 = vmatprep.subr.mxu0 0.0
    %3920 = vmatpush1.msra.mxu0 0.0
    %3921 = vmatprep.subr.mxu0 0.0
    %3922 = vmatpush1.msra.mxu0 0.0
    %3923 = vmatprep.subr.mxu0 0.0
    %3924 = vmatpush1.msra.mxu0 0.0
    %3925 = vmatprep.subr.mxu0 0.0
    %3926 = vmatpush1.msra.mxu0 0.0
    %3927 = vmatprep.subr.mxu0 0.0
    %3928 = vmatpush1.msra.mxu0 0.0
    %3929 = vmatprep.subr.mxu0 0.0
    %3930 = vmatpush1.msra.mxu0 0.0
    %3931 = vmatprep.subr.mxu0 0.0
    %3932 = vmatpush1.msra.mxu0 0.0
    %3933 = vmatprep.subr.mxu0 0.0
    %3934 = vmatpush1.msra.mxu0 0.0
    %3935 = vmatprep.subr.mxu0 0.0
    %3936 = vmatpush1.msra.mxu0 0.0
    %3937 = vmatprep.subr.mxu0 0.0
    %3938 = vmatpush1.msra.mxu0 0.0
    %3939 = vmatprep.mubr.f32.mxu0 0.0
    %3940 = vmatmul.mubr.f32.gmra.mrb[0].mxu0 %v3870
    %v3941 = vpop.f32.mrb[0].mxu0
    %v3942 = vadd.f32 0.0, %v3941
    %v3943 = vpop.f32.mrb[0].mxu0
    %3944 = vmatprep.mubr.f32.mxu0 0.0
    %3945 = vmatmul.mubr.f32.gmra.mrb[0].mxu0 %v3873
    %v3946 = vpop.f32.mrb[0].mxu0
    %v3947 = vadd.f32 0.0, %v3946
    %v3948 = vpop.f32.mrb[0].mxu0
    %3949 = vdwg.mxu0
    %v3951 = vsel %vm2100, %v3371, 0
    %v3954 = vsel %vm2100, %v3376, 0
    %3956 = vmatprep.subr.mxu0 0.0
    %3957 = vmatpush1.msra.mxu0 %v3624
    %3958 = vmatprep.subr.mxu0 0.0
    %3959 = vmatpush1.msra.mxu0 0.0
    %3960 = vmatprep.subr.mxu0 0.0
    %3961 = vmatpush1.msra.mxu0 0.0
    %3962 = vmatprep.subr.mxu0 0.0
    %3963 = vmatpush1.msra.mxu0 0.0
    %3964 = vmatprep.subr.mxu0 0.0
    %3965 = vmatpush1.msra.mxu0 0.0
    %3966 = vmatprep.subr.mxu0 0.0
    %3967 = vmatpush1.msra.mxu0 0.0
    %3968 = vmatprep.subr.mxu0 0.0
    %3969 = vmatpush1.msra.mxu0 0.0
    %3970 = vmatprep.subr.mxu0 0.0
    %3971 = vmatpush1.msra.mxu0 0.0
    %3972 = vmatprep.subr.mxu0 0.0
    %3973 = vmatpush1.msra.mxu0 0.0
    %3974 = vmatprep.subr.mxu0 0.0
    %3975 = vmatpush1.msra.mxu0 0.0
    %3976 = vmatprep.subr.mxu0 0.0
    %3977 = vmatpush1.msra.mxu0 0.0
    %3978 = vmatprep.subr.mxu0 0.0
    %3979 = vmatpush1.msra.mxu0 0.0
    %3980 = vmatprep.subr.mxu0 0.0
    %3981 = vmatpush1.msra.mxu0 0.0
    %3982 = vmatprep.subr.mxu0 0.0
    %3983 = vmatpush1.msra.mxu0 0.0
    %3984 = vmatprep.subr.mxu0 0.0
    %3985 = vmatpush1.msra.mxu0 0.0
    %3986 = vmatprep.subr.mxu0 0.0
    %3987 = vmatpush1.msra.mxu0 0.0
    %3988 = vmatprep.subr.mxu0 0.0
    %3989 = vmatpush1.msra.mxu0 0.0
    %3990 = vmatprep.subr.mxu0 0.0
    %3991 = vmatpush1.msra.mxu0 0.0
    %3992 = vmatprep.subr.mxu0 0.0
    %3993 = vmatpush1.msra.mxu0 0.0
    %3994 = vmatprep.subr.mxu0 0.0
    %3995 = vmatpush1.msra.mxu0 0.0
    %3996 = vmatprep.subr.mxu0 0.0
    %3997 = vmatpush1.msra.mxu0 0.0
    %3998 = vmatprep.subr.mxu0 0.0
    %3999 = vmatpush1.msra.mxu0 0.0
    %4000 = vmatprep.subr.mxu0 0.0
    %4001 = vmatpush1.msra.mxu0 0.0
    %4002 = vmatprep.subr.mxu0 0.0
    %4003 = vmatpush1.msra.mxu0 0.0
    %4004 = vmatprep.subr.mxu0 0.0
    %4005 = vmatpush1.msra.mxu0 0.0
    %4006 = vmatprep.subr.mxu0 0.0
    %4007 = vmatpush1.msra.mxu0 0.0
    %4008 = vmatprep.subr.mxu0 0.0
    %4009 = vmatpush1.msra.mxu0 0.0
    %4010 = vmatprep.subr.mxu0 0.0
    %4011 = vmatpush1.msra.mxu0 0.0
    %4012 = vmatprep.subr.mxu0 0.0
    %4013 = vmatpush1.msra.mxu0 0.0
    %4014 = vmatprep.subr.mxu0 0.0
    %4015 = vmatpush1.msra.mxu0 0.0
    %4016 = vmatprep.subr.mxu0 0.0
    %4017 = vmatpush1.msra.mxu0 0.0
    %4018 = vmatprep.subr.mxu0 0.0
    %4019 = vmatpush1.msra.mxu0 0.0
    %4020 = vmatprep.mubr.f32.mxu0 0.0
    %4021 = vmatmul.mubr.f32.gmra.mrb[0].mxu0 %v3951
    %v4022 = vpop.f32.mrb[0].mxu0
    %v4023 = vadd.f32 0.0, %v4022
    %v4024 = vpop.f32.mrb[0].mxu0
    %4025 = vmatprep.mubr.f32.mxu0 0.0
    %4026 = vmatmul.mubr.f32.gmra.mrb[0].mxu0 %v3954
    %v4027 = vpop.f32.mrb[0].mxu0
    %v4028 = vadd.f32 0.0, %v4027
    %v4029 = vpop.f32.mrb[0].mxu0
    %4030 = vdwg.mxu0
    %v4032 = vsel %vm2100, %v3452, 0
    %v4035 = vsel %vm2100, %v3457, 0
    %4037 = vmatprep.subr.mxu0 0.0
    %4038 = vmatpush1.msra.mxu0 %v3624
    %4039 = vmatprep.subr.mxu0 0.0
    %4040 = vmatpush1.msra.mxu0 0.0
    %4041 = vmatprep.subr.mxu0 0.0
    %4042 = vmatpush1.msra.mxu0 0.0
    %4043 = vmatprep.subr.mxu0 0.0
    %4044 = vmatpush1.msra.mxu0 0.0
    %4045 = vmatprep.subr.mxu0 0.0
    %4046 = vmatpush1.msra.mxu0 0.0
    %4047 = vmatprep.subr.mxu0 0.0
    %4048 = vmatpush1.msra.mxu0 0.0
    %4049 = vmatprep.subr.mxu0 0.0
    %4050 = vmatpush1.msra.mxu0 0.0
    %4051 = vmatprep.subr.mxu0 0.0
    %4052 = vmatpush1.msra.mxu0 0.0
    %4053 = vmatprep.subr.mxu0 0.0
    %4054 = vmatpush1.msra.mxu0 0.0
    %4055 = vmatprep.subr.mxu0 0.0
    %4056 = vmatpush1.msra.mxu0 0.0
    %4057 = vmatprep.subr.mxu0 0.0
    %4058 = vmatpush1.msra.mxu0 0.0
    %4059 = vmatprep.subr.mxu0 0.0
    %4060 = vmatpush1.msra.mxu0 0.0
    %4061 = vmatprep.subr.mxu0 0.0
    %4062 = vmatpush1.msra.mxu0 0.0
    %4063 = vmatprep.subr.mxu0 0.0
    %4064 = vmatpush1.msra.mxu0 0.0
    %4065 = vmatprep.subr.mxu0 0.0
    %4066 = vmatpush1.msra.mxu0 0.0
    %4067 = vmatprep.subr.mxu0 0.0
    %4068 = vmatpush1.msra.mxu0 0.0
    %4069 = vmatprep.subr.mxu0 0.0
    %4070 = vmatpush1.msra.mxu0 0.0
    %4071 = vmatprep.subr.mxu0 0.0
    %4072 = vmatpush1.msra.mxu0 0.0
    %4073 = vmatprep.subr.mxu0 0.0
    %4074 = vmatpush1.msra.mxu0 0.0
    %4075 = vmatprep.subr.mxu0 0.0
    %4076 = vmatpush1.msra.mxu0 0.0
    %4077 = vmatprep.subr.mxu0 0.0
    %4078 = vmatpush1.msra.mxu0 0.0
    %4079 = vmatprep.subr.mxu0 0.0
    %4080 = vmatpush1.msra.mxu0 0.0
    %4081 = vmatprep.subr.mxu0 0.0
    %4082 = vmatpush1.msra.mxu0 0.0
    %4083 = vmatprep.subr.mxu0 0.0
    %4084 = vmatpush1.msra.mxu0 0.0
    %4085 = vmatprep.subr.mxu0 0.0
    %4086 = vmatpush1.msra.mxu0 0.0
    %4087 = vmatprep.subr.mxu0 0.0
    %4088 = vmatpush1.msra.mxu0 0.0
    %4089 = vmatprep.subr.mxu0 0.0
    %4090 = vmatpush1.msra.mxu0 0.0
    %4091 = vmatprep.subr.mxu0 0.0
    %4092 = vmatpush1.msra.mxu0 0.0
    %4093 = vmatprep.subr.mxu0 0.0
    %4094 = vmatpush1.msra.mxu0 0.0
    %4095 = vmatprep.subr.mxu0 0.0
    %4096 = vmatpush1.msra.mxu0 0.0
    %4097 = vmatprep.subr.mxu0 0.0
    %4098 = vmatpush1.msra.mxu0 0.0
    %4099 = vmatprep.subr.mxu0 0.0
    %4100 = vmatpush1.msra.mxu0 0.0
    %4101 = vmatprep.mubr.f32.mxu0 0.0
    %4102 = vmatmul.mubr.f32.gmra.mrb[0].mxu0 %v4032
    %v4103 = vpop.f32.mrb[0].mxu0
    %v4104 = vadd.f32 0.0, %v4103
    %v4105 = vpop.f32.mrb[0].mxu0
    %4106 = vmatprep.mubr.f32.mxu0 0.0
    %4107 = vmatmul.mubr.f32.gmra.mrb[0].mxu0 %v4035
    %v4108 = vpop.f32.mrb[0].mxu0
    %v4109 = vadd.f32 0.0, %v4108
    %v4110 = vpop.f32.mrb[0].mxu0
    %4111 = vdwg.mxu0
    %v4113 = vsel %vm2100, %v3533, 0
    %v4116 = vsel %vm2100, %v3538, 0
    %4118 = vmatprep.subr.mxu0 0.0
    %4119 = vmatpush1.msra.mxu0 %v3625
    %4120 = vmatprep.subr.mxu0 0.0
    %4121 = vmatpush1.msra.mxu0 0.0
    %4122 = vmatprep.subr.mxu0 0.0
    %4123 = vmatpush1.msra.mxu0 0.0
    %4124 = vmatprep.subr.mxu0 0.0
    %4125 = vmatpush1.msra.mxu0 0.0
    %4126 = vmatprep.subr.mxu0 0.0
    %4127 = vmatpush1.msra.mxu0 0.0
    %4128 = vmatprep.subr.mxu0 0.0
    %4129 = vmatpush1.msra.mxu0 0.0
    %4130 = vmatprep.subr.mxu0 0.0
    %4131 = vmatpush1.msra.mxu0 0.0
    %4132 = vmatprep.subr.mxu0 0.0
    %4133 = vmatpush1.msra.mxu0 0.0
    %4134 = vmatprep.subr.mxu0 0.0
    %4135 = vmatpush1.msra.mxu0 0.0
    %4136 = vmatprep.subr.mxu0 0.0
    %4137 = vmatpush1.msra.mxu0 0.0
    %4138 = vmatprep.subr.mxu0 0.0
    %4139 = vmatpush1.msra.mxu0 0.0
    %4140 = vmatprep.subr.mxu0 0.0
    %4141 = vmatpush1.msra.mxu0 0.0
    %4142 = vmatprep.subr.mxu0 0.0
    %4143 = vmatpush1.msra.mxu0 0.0
    %4144 = vmatprep.subr.mxu0 0.0
    %4145 = vmatpush1.msra.mxu0 0.0
    %4146 = vmatprep.subr.mxu0 0.0
    %4147 = vmatpush1.msra.mxu0 0.0
    %4148 = vmatprep.subr.mxu0 0.0
    %4149 = vmatpush1.msra.mxu0 0.0
    %4150 = vmatprep.subr.mxu0 0.0
    %4151 = vmatpush1.msra.mxu0 0.0
    %4152 = vmatprep.subr.mxu0 0.0
    %4153 = vmatpush1.msra.mxu0 0.0
    %4154 = vmatprep.subr.mxu0 0.0
    %4155 = vmatpush1.msra.mxu0 0.0
    %4156 = vmatprep.subr.mxu0 0.0
    %4157 = vmatpush1.msra.mxu0 0.0
    %4158 = vmatprep.subr.mxu0 0.0
    %4159 = vmatpush1.msra.mxu0 0.0
    %4160 = vmatprep.subr.mxu0 0.0
    %4161 = vmatpush1.msra.mxu0 0.0
    %4162 = vmatprep.subr.mxu0 0.0
    %4163 = vmatpush1.msra.mxu0 0.0
    %4164 = vmatprep.subr.mxu0 0.0
    %4165 = vmatpush1.msra.mxu0 0.0
    %4166 = vmatprep.subr.mxu0 0.0
    %4167 = vmatpush1.msra.mxu0 0.0
    %4168 = vmatprep.subr.mxu0 0.0
    %4169 = vmatpush1.msra.mxu0 0.0
    %4170 = vmatprep.subr.mxu0 0.0
    %4171 = vmatpush1.msra.mxu0 0.0
    %4172 = vmatprep.subr.mxu0 0.0
    %4173 = vmatpush1.msra.mxu0 0.0
    %4174 = vmatprep.subr.mxu0 0.0
    %4175 = vmatpush1.msra.mxu0 0.0
    %4176 = vmatprep.subr.mxu0 0.0
    %4177 = vmatpush1.msra.mxu0 0.0
    %4178 = vmatprep.subr.mxu0 0.0
    %4179 = vmatpush1.msra.mxu0 0.0
    %4180 = vmatprep.subr.mxu0 0.0
    %4181 = vmatpush1.msra.mxu0 0.0
    %4182 = vmatprep.mubr.f32.mxu0 0.0
    %4183 = vmatmul.mubr.f32.gmra.mrb[0].mxu0 %v4113
    %v4184 = vpop.f32.mrb[0].mxu0
    %v4185 = vadd.f32 0.0, %v4184
    %v4186 = vpop.f32.mrb[0].mxu0
    %4187 = vmatprep.mubr.f32.mxu0 0.0
    %4188 = vmatmul.mubr.f32.gmra.mrb[0].mxu0 %v4116
    %v4189 = vpop.f32.mrb[0].mxu0
    %v4190 = vadd.f32 0.0, %v4189
    %v4191 = vpop.f32.mrb[0].mxu0
    %4192 = vdwg.mxu0
    %v4194 = vsel %vm2100, %v3614, 0
    %v4197 = vsel %vm2100, %v3619, 0
    %4199 = vmatprep.subr.mxu0 0.0
    %4200 = vmatpush1.msra.mxu0 %v3625
    %4201 = vmatprep.subr.mxu0 0.0
    %4202 = vmatpush1.msra.mxu0 0.0
    %4203 = vmatprep.subr.mxu0 0.0
    %4204 = vmatpush1.msra.mxu0 0.0
    %4205 = vmatprep.subr.mxu0 0.0
    %4206 = vmatpush1.msra.mxu0 0.0
    %4207 = vmatprep.subr.mxu0 0.0
    %4208 = vmatpush1.msra.mxu0 0.0
    %4209 = vmatprep.subr.mxu0 0.0
    %4210 = vmatpush1.msra.mxu0 0.0
    %4211 = vmatprep.subr.mxu0 0.0
    %4212 = vmatpush1.msra.mxu0 0.0
    %4213 = vmatprep.subr.mxu0 0.0
    %4214 = vmatpush1.msra.mxu0 0.0
    %4215 = vmatprep.subr.mxu0 0.0
    %4216 = vmatpush1.msra.mxu0 0.0
    %4217 = vmatprep.subr.mxu0 0.0
    %4218 = vmatpush1.msra.mxu0 0.0
    %4219 = vmatprep.subr.mxu0 0.0
    %4220 = vmatpush1.msra.mxu0 0.0
    %4221 = vmatprep.subr.mxu0 0.0
    %4222 = vmatpush1.msra.mxu0 0.0
    %4223 = vmatprep.subr.mxu0 0.0
    %4224 = vmatpush1.msra.mxu0 0.0
    %4225 = vmatprep.subr.mxu0 0.0
    %4226 = vmatpush1.msra.mxu0 0.0
    %4227 = vmatprep.subr.mxu0 0.0
    %4228 = vmatpush1.msra.mxu0 0.0
    %4229 = vmatprep.subr.mxu0 0.0
    %4230 = vmatpush1.msra.mxu0 0.0
    %4231 = vmatprep.subr.mxu0 0.0
    %4232 = vmatpush1.msra.mxu0 0.0
    %4233 = vmatprep.subr.mxu0 0.0
    %4234 = vmatpush1.msra.mxu0 0.0
    %4235 = vmatprep.subr.mxu0 0.0
    %4236 = vmatpush1.msra.mxu0 0.0
    %4237 = vmatprep.subr.mxu0 0.0
    %4238 = vmatpush1.msra.mxu0 0.0
    %4239 = vmatprep.subr.mxu0 0.0
    %4240 = vmatpush1.msra.mxu0 0.0
    %4241 = vmatprep.subr.mxu0 0.0
    %4242 = vmatpush1.msra.mxu0 0.0
    %4243 = vmatprep.subr.mxu0 0.0
    %4244 = vmatpush1.msra.mxu0 0.0
    %4245 = vmatprep.subr.mxu0 0.0
    %4246 = vmatpush1.msra.mxu0 0.0
    %4247 = vmatprep.subr.mxu0 0.0
    %4248 = vmatpush1.msra.mxu0 0.0
    %4249 = vmatprep.subr.mxu0 0.0
    %4250 = vmatpush1.msra.mxu0 0.0
    %4251 = vmatprep.subr.mxu0 0.0
    %4252 = vmatpush1.msra.mxu0 0.0
    %4253 = vmatprep.subr.mxu0 0.0
    %4254 = vmatpush1.msra.mxu0 0.0
    %4255 = vmatprep.subr.mxu0 0.0
    %4256 = vmatpush1.msra.mxu0 0.0
    %4257 = vmatprep.subr.mxu0 0.0
    %4258 = vmatpush1.msra.mxu0 0.0
    %4259 = vmatprep.subr.mxu0 0.0
    %4260 = vmatpush1.msra.mxu0 0.0
    %4261 = vmatprep.subr.mxu0 0.0
    %4262 = vmatpush1.msra.mxu0 0.0
    %4263 = vmatprep.mubr.f32.mxu0 0.0
    %4264 = vmatmul.mubr.f32.gmra.mrb[0].mxu0 %v4194
    %v4265 = vpop.f32.mrb[0].mxu0
    %v4266 = vadd.f32 0.0, %v4265
    %v4267 = vpop.f32.mrb[0].mxu0
    %4268 = vmatprep.mubr.f32.mxu0 0.0
    %4269 = vmatmul.mubr.f32.gmra.mrb[0].mxu0 %v4197
    %v4270 = vpop.f32.mrb[0].mxu0
    %v4271 = vadd.f32 0.0, %v4270
    %v4272 = vpop.f32.mrb[0].mxu0
    %4273 = vdwg.mxu0
    %v4274 = vsel %vm95, %v3699, 0.0
    %v4275 = vsel %vm95, %v3861, 0.0
    %v4276 = vadd.f32 %v4274, %v4275
    %v4277 = vsel %vm95, %v4023, 0.0
    %v4278 = vadd.f32 %v4276, %v4277
    %v4279 = vsel %vm95, %v4185, 0.0
    %v4280 = vadd.f32 %v4278, %v4279
    %v4281 = vsel %vm95, %v3704, 0.0
    %v4282 = vsel %vm95, %v3866, 0.0
    %v4283 = vadd.f32 %v4281, %v4282
    %v4284 = vsel %vm95, %v4028, 0.0
    %v4285 = vadd.f32 %v4283, %v4284
    %v4286 = vsel %vm95, %v4190, 0.0
    %v4287 = vadd.f32 %v4285, %v4286
    %v4288 = vsel %vm95, %v3780, 0.0
    %v4289 = vsel %vm95, %v3942, 0.0
    %v4290 = vadd.f32 %v4288, %v4289
    %v4291 = vsel %vm95, %v4104, 0.0
    %v4292 = vadd.f32 %v4290, %v4291
    %v4293 = vsel %vm95, %v4266, 0.0
    %v4294 = vadd.f32 %v4292, %v4293
    %v4295 = vsel %vm95, %v3785, 0.0
    %v4296 = vsel %vm95, %v3947, 0.0
    %v4297 = vadd.f32 %v4295, %v4296
    %v4298 = vsel %vm95, %v4109, 0.0
    %v4299 = vadd.f32 %v4297, %v4298
    %v4300 = vsel %vm95, %v4271, 0.0
    %v4301 = vadd.f32 %v4299, %v4300
    %v4302 = vld [vmem:[%s4] sm:$0x1]
    %v4304 = vlaneseq
    %v4305 = vshrl.u32 %v4304, 7
    %v4306 = vsub.s32 0, %v4305
    %v4307 = vrot.slane %v4302, %v4306
    %v4309 = vadd.f32 %v4280, %v4307
    %v4310 = vadd.f32 %v4287, %v4307
    %v4311 = vadd.f32 %v4294, %v4307
    %v4312 = vadd.f32 %v4301, %v4307
    %4313 = vst.msk [vmem:[#allocation10] sm:$0xff] %vm95, %v4309
    %4314 = vst.msk [vmem:[#allocation10 + $0x8] sm:$0xff] %vm95, %v4310
    %4315 = vst.msk [vmem:[#allocation10 + $0x10] sm:$0xff] %vm95, %v4311
    %4316 = vst.msk [vmem:[#allocation10 + $0x18] sm:$0xff] %vm95, %v4312
    // Predicated region
    $region42: #{tpu_custom_call.1} parent=1 // pred_check
      _
    $region43: #{tpu_custom_call.1} parent=1 // pred_check_branch
      %4318 = sbr.rel (0) target = $region45
    $region44: #{tpu_custom_call.1} parent=1 // pred_region
      %s4320 = ssub.s32 512, 512
      %4321 = vsyncadd [#allocation4], %s4320
      %s4322 = sshll.u32 [#allocation10], 4
      %s4323 = int_to_ptr.vmem [resolvable:$true] %s4322
      %4328 = dma.vmem_to_hbm [thread:$0]  %s4323, 512, %s6, [#allocation4], 128, 128, 8
    $region45: #{tpu_custom_call.1} parent=1 // pred_fallthru
      _
    // Predicated region
    $region46: #{tpu_custom_call.1} parent=1 // pred_check
      _
    $region47: #{tpu_custom_call.1} parent=1 // pred_check_branch
      %4330 = sbr.rel (0) target = $region49
    $region48: #{tpu_custom_call.1} parent=1 // pred_region
      %4331 = dma.done [#allocation4], 512
    $region49: #{tpu_custom_call.1} parent=1 // pred_fallthru
      _
    %4332 = vsyncpa [#allocation3], 1
    %4333 = vsyncpa [#allocation6], 1
    %4334 = vsyncpa [#allocation9], 1
    %4335 = vsyncpa [#allocation4], 1

</llo_original>
